<compile_context>
chip_gen: v5e
topology: v5e:2x2
jax: 0.10.0
libtpu: 0.0.40
codegen_flags: <defaults>
</compile_context>

<pallas_src>
import jax
import jax.numpy as jnp
import numpy as np
from jax import lax
from jax.experimental import pallas as pl
from jax.experimental.pallas import tpu as pltpu

NUM_CLASSES = 4
CPAD = 128  # lane-dense channel padding for conv outputs / fc2 logits


# ----------------------------- Pallas kernels -----------------------------


def _conv_relu_pool_kernel(x_ref, w_ref, b_ref, o_ref):
    """Fused conv-GEMM + bias + ReLU + 2x2 max-pool.

    One pool-window position per grid step:
      x_ref: (1, M, K) bf16 im2col patches for pool position p = program_id(0)
      w_ref: (K, N)    bf16 packed conv weight (resident across the grid)
      b_ref: (1, N)    f32  bias
      o_ref: (M, N)    bf16 pooled output, used as a max-accumulator over p
    """
    p = pl.program_id(0)
    acc = jnp.dot(x_ref[0], w_ref[...], preferred_element_type=jnp.float32)
    val = jnp.maximum(acc + b_ref[...], 0.0).astype(o_ref.dtype)

    @pl.when(p == 0)
    def _():
        o_ref[...] = val

    @pl.when(p != 0)
    def _():
        o_ref[...] = jnp.maximum(o_ref[...], val)


def conv_relu_pool(groups, w, b):
    """groups: (4, M, K) pool-grouped patches, w: (K, N), b: (1, N) -> (M, N)."""
    P, M, K = groups.shape
    _, N = w.shape
    return pl.pallas_call(
        _conv_relu_pool_kernel,
        grid=(P,),
        out_shape=jax.ShapeDtypeStruct((M, N), jnp.bfloat16),
        in_specs=[
            pl.BlockSpec((1, M, K), lambda p: (p, 0, 0)),
            pl.BlockSpec((K, N), lambda p: (0, 0)),
            pl.BlockSpec((1, N), lambda p: (0, 0)),
        ],
        out_specs=pl.BlockSpec((M, N), lambda p: (0, 0)),
        compiler_params=pltpu.CompilerParams(
            dimension_semantics=("arbitrary",)),
    )(groups, w, b)


def _fc_relu_fc_kernel(x_ref, w1_ref, b1_ref, w2_ref, b2_ref, o_ref):
    """o = relu(x @ w1 + b1) @ w2 + b2, both weights resident in VMEM."""
    h = jnp.dot(x_ref[...], w1_ref[...], preferred_element_type=jnp.float32)
    h = jnp.maximum(h + b1_ref[...], 0.0)
    # nn.Dropout(0.25): identity at inference time.
    # TODO(synk): training-mode dropout (pltpu.prng_*) not implemented; eval semantics only.
    out = jnp.dot(h.astype(w2_ref.dtype), w2_ref[...],
                  preferred_element_type=jnp.float32)
    o_ref[...] = (out + b2_ref[...]).astype(o_ref.dtype)


def fc_relu_fc(x, w1, b1, w2, b2):
    B, K1 = x.shape
    _, N1 = w1.shape
    _, N2 = w2.shape
    return pl.pallas_call(
        _fc_relu_fc_kernel,
        grid=(1,),
        out_shape=jax.ShapeDtypeStruct((B, N2), jnp.float32),
        in_specs=[
            pl.BlockSpec((B, K1), lambda i: (0, 0)),
            pl.BlockSpec((K1, N1), lambda i: (0, 0)),
            pl.BlockSpec((1, N1), lambda i: (0, 0)),
            pl.BlockSpec((N1, N2), lambda i: (0, 0)),
            pl.BlockSpec((1, N2), lambda i: (0, 0)),
        ],
        out_specs=pl.BlockSpec((B, N2), lambda i: (0, 0)),
        compiler_params=pltpu.CompilerParams(
            dimension_semantics=("arbitrary",)),
    )(x, w1, b1, w2, b2)


# ------------------------------- glue / model ------------------------------


def pool_grouped_patches(x):
    """NHWC -> pool-grouped im2col patches for 3x3 conv (pad=1) + 2x2 pool.

    x: (B, H, W, C) -> (4, B*OH*OW, 9*C).  Group p = 2*py + px holds the patch
    rows whose conv-output position is (2*oh+py, 2*ow+px); column order is
    (ky, kx, c_in), matching the packed weight layout.
    # TODO(synk): move this halo/patch extraction into the kernel (in-VMEM
    # im2col) to avoid materializing the 9x patch matrix in HBM.
    """
    B, H, W, C = x.shape
    OH, OW = H // 2, W // 2
    xp = jnp.pad(x, ((0, 0), (1, 1), (1, 1), (0, 0)))
    cols = [xp[:, dy:dy + H, dx:dx + W, :] for dy in range(3) for dx in range(3)]
    patches = jnp.concatenate(cols, axis=-1)  # (B, H, W, 9*C)
    groups = [
        patches[:, py:py + 2 * OH:2, px:px + 2 * OW:2, :].reshape(B * OH * OW, 9 * C)
        for py in range(2) for px in range(2)
    ]
    return jnp.stack(groups, axis=0)


def init_params(key, num_classes=NUM_CLASSES):
    """Deterministic synthetic parameters in PyTorch layouts."""
    ks = jax.random.split(key, 10)

    def w(k, shape, fan_in):
        return (jax.random.normal(k, shape, jnp.float32) / jnp.sqrt(fan_in)).astype(jnp.float32)

    return {
        "conv1": (w(ks[0], (32, 1, 3, 3), 1 * 9), w(ks[1], (32,), 1 * 9)),
        "conv2": (w(ks[2], (64, 32, 3, 3), 32 * 9), w(ks[3], (64,), 32 * 9)),
        "conv3": (w(ks[4], (128, 64, 3, 3), 64 * 9), w(ks[5], (128,), 64 * 9)),
        "fc1": (w(ks[6], (256, 128 * 3 * 3), 128 * 3 * 3), w(ks[7], (256,), 128 * 3 * 3)),
        "fc2": (w(ks[8], (num_classes, 256), 256), w(ks[9], (num_classes,), 256)),
    }


def prepack_params(params, num_classes=NUM_CLASSES):
    """One-time weight packing (outside the forward pass).

    conv: (Cout,Cin,3,3) -> (9*Cin_carried, 128) bf16, columns ordered (ky,kx,cin);
          Cout (and the carried Cin of conv2/conv3, whose inputs include the
          previous layer's zero-padded channels) are zero-padded to 128.
    fc1:  columns permuted from PyTorch (c,h,w) order to NHWC (h,w,c), then (K,N).
    fc2:  (K,N) with N padded 4 -> 128 (sliced back in glue).
    """
    packed = {}
    cin_total = {"conv1": 1, "conv2": CPAD, "conv3": CPAD}
    for name in ("conv1", "conv2", "conv3"):
        w, b = params[name]
        cout, cin = w.shape[0], w.shape[1]
        wk = jnp.transpose(w, (2, 3, 1, 0))  # (KH, KW, Cin, Cout)
        wk = jnp.pad(wk, ((0, 0), (0, 0),
                          (0, cin_total[name] - cin), (0, CPAD - cout)))
        packed[name] = (
            wk.reshape(9 * cin_total[name], CPAD).astype(jnp.bfloat16),
            jnp.pad(b, (0, CPAD - cout)).reshape(1, CPAD).astype(jnp.float32),
        )

    w1, b1 = params["fc1"]
    w1 = w1.reshape(256, 128, 3, 3).transpose(0, 2, 3, 1).reshape(256, 9 * 128)
    packed["fc1"] = (jnp.transpose(w1).astype(jnp.bfloat16),
                     b1.reshape(1, 256).astype(jnp.float32))

    w2, b2 = params["fc2"]
    packed["fc2"] = (
        jnp.pad(jnp.transpose(w2), ((0, 0), (0, CPAD - num_classes))).astype(jnp.bfloat16),
        jnp.pad(b2, (0, CPAD - num_classes)).reshape(1, CPAD).astype(jnp.float32),
    )
    return packed


def shape_classifier_forward(x_nchw, packed, num_classes=NUM_CLASSES):
    """Forward pass of ShapeClassifier. x_nchw: (B, 1, 28, 28) float32."""
    x = jnp.transpose(x_nchw, (0, 2, 3, 1)).astype(jnp.bfloat16)  # NHWC
    for name in ("conv1", "conv2", "conv3"):
        w, b = packed[name]
        B, H, W, _ = x.shape
        OH, OW = H // 2, W // 2
        grp = pool_grouped_patches(x)           # (4, B*OH*OW, 9*C)
        y = conv_relu_pool(grp, w, b)           # fused conv+bias+ReLU+pool
        x = y.reshape(B, OH, OW, CPAD)

    B = x.shape[0]
    feat = x.reshape(B, x.shape[1] * x.shape[2] * x.shape[3])  # (B, 1152), (h,w,c) order
    w1, b1 = packed["fc1"]
    w2, b2 = packed["fc2"]
    logits = fc_relu_fc(feat, w1, b1, w2, b2)   # (B, 128) f32
    return logits[:, :num_classes]


def reference_forward(x_nchw, params):
    """Pure-JAX f32 reference matching the PyTorch module (eval mode)."""
    x = x_nchw
    for name in ("conv1", "conv2", "conv3"):
        w, b = params[name]
        x = lax.conv_general_dilated(
            x, w, window_strides=(1, 1), padding=((1, 1), (1, 1)),
            dimension_numbers=("NCHW", "OIHW", "NCHW"))
        x = jnp.maximum(x + b[None, :, None, None], 0.0)
        OH, OW = x.shape[2] // 2, x.shape[3] // 2
        x = jnp.maximum(
            jnp.maximum(x[:, :, 0:2 * OH:2, 0:2 * OW:2],
                        x[:, :, 0:2 * OH:2, 1:2 * OW:2]),
            jnp.maximum(x[:, :, 1:2 * OH:2, 0:2 * OW:2],
                        x[:, :, 1:2 * OH:2, 1:2 * OW:2]))
    feat = x.reshape(x.shape[0], -1)  # NCHW flatten == torch view(-1, 128*3*3)
    w1, b1 = params["fc1"]
    h = jnp.maximum(feat @ w1.T + b1, 0.0)
    w2, b2 = params["fc2"]
    return h @ w2.T + b2


if __name__ == "__main__":
    key = jax.random.PRNGKey(0)
    k_param, k_x = jax.random.split(key)

    params = init_params(k_param, num_classes=NUM_CLASSES)
    packed = prepack_params(params, num_classes=NUM_CLASSES)

    # Input: batch=2, 1 channel, 28x28 (required so the features are 128*3*3).
    x = jax.random.normal(k_x, (2, 1, 28, 28), jnp.float32)

    fwd = jax.jit(shape_classifier_forward)
    logits = fwd(x, packed)
    jax.block_until_ready(logits)

    assert logits.shape == (2, NUM_CLASSES), logits.shape
    assert logits.dtype == jnp.float32

    ref = reference_forward(x, params)
    np.testing.assert_allclose(np.asarray(logits), np.asarray(ref), rtol=0.1, atol=0.1)

    print("KERNEL_OK")
</pallas_src>

<mosaic_0001>
module attributes {stable_mosaic.version = 11 : i64} {
  func.func @_conv_relu_pool_kernel(%arg0: i32, %arg1: memref<1x392x9xbf16, #tpu.memory_space<vmem>>, %arg2: memref<9x128xbf16, #tpu.memory_space<vmem>>, %arg3: memref<1x128xf32, #tpu.memory_space<vmem>>, %arg4: memref<392x128xbf16, #tpu.memory_space<vmem>>) attributes {dimension_semantics = [#tpu.dimension_semantics<arbitrary>], iteration_bounds = array<i64: 4>, scalar_prefetch = 0 : i64, scratch_operands = 0 : i64, tpu.core_type = #tpu.core_type<tc>, window_params = [{transform_indices = @transform_0, window_bounds = array<i64: 1, 392, 9>}, {pipeline_mode = #tpu.pipeline_mode<synchronous>, transform_indices = @transform_1, window_bounds = array<i64: 9, 128>}, {pipeline_mode = #tpu.pipeline_mode<synchronous>, transform_indices = @transform_2, window_bounds = array<i64: 1, 128>}, {pipeline_mode = #tpu.pipeline_mode<synchronous>, transform_indices = @transform_3, window_bounds = array<i64: 392, 128>}]} {
    %c0 = arith.constant 0 : index
    %c0_0 = arith.constant 0 : index
    %c0_1 = arith.constant 0 : index
    %0 = vector.load %arg1[%c0, %c0_0, %c0_1] : memref<1x392x9xbf16, #tpu.memory_space<vmem>>, vector<1x392x9xbf16>
    %1 = vector.shape_cast %0 : vector<1x392x9xbf16> to vector<392x9xbf16>
    %c0_2 = arith.constant 0 : index
    %c0_3 = arith.constant 0 : index
    %2 = vector.load %arg2[%c0_2, %c0_3] : memref<9x128xbf16, #tpu.memory_space<vmem>>, vector<9x128xbf16>
    %cst = arith.constant dense<0.000000e+00> : vector<392x128xf32>
    %3 = tpu.matmul %1, %2, %cst {dimension_numbers = #tpu.dot_dimension_numbers<[1], [0], [0], [1], [0, 0, 1, 1], [], []>} : vector<392x9xbf16>, vector<9x128xbf16>, vector<392x128xf32> -> vector<392x128xf32>
    %c0_4 = arith.constant 0 : index
    %c0_5 = arith.constant 0 : index
    %4 = vector.load %arg3[%c0_4, %c0_5] : memref<1x128xf32, #tpu.memory_space<vmem>>, vector<1x128xf32>
    %5 = vector.broadcast %4 : vector<1x128xf32> to vector<392x128xf32>
    %6 = arith.addf %3, %5 : vector<392x128xf32>
    %cst_6 = arith.constant 0.000000e+00 : f32
    %7 = vector.broadcast %cst_6 : f32 to vector<392x128xf32>
    %8 = arith.maximumf %6, %7 : vector<392x128xf32>
    %9 = arith.truncf %8 : vector<392x128xf32> to vector<392x128xbf16>
    %c0_i32 = arith.constant 0 : i32
    %10 = arith.cmpi eq, %arg0, %c0_i32 : i32
    %11 = arith.extui %10 : i1 to i32
    %c0_i32_7 = arith.constant 0 : i32
    %12 = arith.cmpi ne, %11, %c0_i32_7 : i32
    scf.if %12 {
      %c0_10 = arith.constant 0 : index
      %c0_11 = arith.constant 0 : index
      %16 = vector.load %arg4[%c0_10, %c0_11] : memref<392x128xbf16, #tpu.memory_space<vmem>>, vector<392x128xbf16>
      tpu.vector_store %arg4[%c0_10, %c0_11], %9 {strides = array<i32>} : memref<392x128xbf16, #tpu.memory_space<vmem>>, vector<392x128xbf16>,
    } else {
    }
    %c0_i32_8 = arith.constant 0 : i32
    %13 = arith.cmpi ne, %arg0, %c0_i32_8 : i32
    %14 = arith.extui %13 : i1 to i32
    %c0_i32_9 = arith.constant 0 : i32
    %15 = arith.cmpi ne, %14, %c0_i32_9 : i32
    scf.if %15 {
      %c0_10 = arith.constant 0 : index
      %c0_11 = arith.constant 0 : index
      %16 = vector.load %arg4[%c0_10, %c0_11] : memref<392x128xbf16, #tpu.memory_space<vmem>>, vector<392x128xbf16>
      %17 = arith.maximumf %16, %9 : vector<392x128xbf16>
      %c0_12 = arith.constant 0 : index
      %c0_13 = arith.constant 0 : index
      %18 = vector.load %arg4[%c0_12, %c0_13] : memref<392x128xbf16, #tpu.memory_space<vmem>>, vector<392x128xbf16>
      tpu.vector_store %arg4[%c0_12, %c0_13], %17 {strides = array<i32>} : memref<392x128xbf16, #tpu.memory_space<vmem>>, vector<392x128xbf16>,
    } else {
    }
    return
  }
  func.func @transform_0(%arg0: i32) -> (i32, i32, i32) {
    %c0_i32 = arith.constant 0 : i32
    %c0_i32_0 = arith.constant 0 : i32
    %c0_i32_1 = arith.constant 0 : i32
    return %arg0, %c0_i32, %c0_i32_0 : i32, i32, i32
  }
  func.func @transform_1(%arg0: i32) -> (i32, i32) {
    %c0_i32 = arith.constant 0 : i32
    %c0_i32_0 = arith.constant 0 : i32
    %c0_i32_1 = arith.constant 0 : i32
    return %c0_i32, %c0_i32_0 : i32, i32
  }
  func.func @transform_2(%arg0: i32) -> (i32, i32) {
    %c0_i32 = arith.constant 0 : i32
    %c0_i32_0 = arith.constant 0 : i32
    %c0_i32_1 = arith.constant 0 : i32
    return %c0_i32, %c0_i32_0 : i32, i32
  }
  func.func @transform_3(%arg0: i32) -> (i32, i32) {
    %c0_i32 = arith.constant 0 : i32
    %c0_i32_0 = arith.constant 0 : i32
    %c0_i32_1 = arith.constant 0 : i32
    return %c0_i32, %c0_i32_0 : i32, i32
  }
}

module attributes {stable_mosaic.version = 11 : i64} {
  func.func @_conv_relu_pool_kernel(%arg0: i32, %arg1: memref<1x98x1152xbf16, #tpu.memory_space<vmem>>, %arg2: memref<1152x128xbf16, #tpu.memory_space<vmem>>, %arg3: memref<1x128xf32, #tpu.memory_space<vmem>>, %arg4: memref<98x128xbf16, #tpu.memory_space<vmem>>) attributes {dimension_semantics = [#tpu.dimension_semantics<arbitrary>], iteration_bounds = array<i64: 4>, scalar_prefetch = 0 : i64, scratch_operands = 0 : i64, tpu.core_type = #tpu.core_type<tc>, window_params = [{transform_indices = @transform_0, window_bounds = array<i64: 1, 98, 1152>}, {pipeline_mode = #tpu.pipeline_mode<synchronous>, transform_indices = @transform_1, window_bounds = array<i64: 1152, 128>}, {pipeline_mode = #tpu.pipeline_mode<synchronous>, transform_indices = @transform_2, window_bounds = array<i64: 1, 128>}, {pipeline_mode = #tpu.pipeline_mode<synchronous>, transform_indices = @transform_3, window_bounds = array<i64: 98, 128>}]} {
    %c0 = arith.constant 0 : index
    %c0_0 = arith.constant 0 : index
    %c0_1 = arith.constant 0 : index
    %0 = vector.load %arg1[%c0, %c0_0, %c0_1] : memref<1x98x1152xbf16, #tpu.memory_space<vmem>>, vector<1x98x1152xbf16>
    %1 = vector.shape_cast %0 : vector<1x98x1152xbf16> to vector<98x1152xbf16>
    %c0_2 = arith.constant 0 : index
    %c0_3 = arith.constant 0 : index
    %2 = vector.load %arg2[%c0_2, %c0_3] : memref<1152x128xbf16, #tpu.memory_space<vmem>>, vector<1152x128xbf16>
    %cst = arith.constant dense<0.000000e+00> : vector<98x128xf32>
    %3 = tpu.matmul %1, %2, %cst {dimension_numbers = #tpu.dot_dimension_numbers<[1], [0], [0], [1], [0, 0, 1, 1], [], []>} : vector<98x1152xbf16>, vector<1152x128xbf16>, vector<98x128xf32> -> vector<98x128xf32>
    %c0_4 = arith.constant 0 : index
    %c0_5 = arith.constant 0 : index
    %4 = vector.load %arg3[%c0_4, %c0_5] : memref<1x128xf32, #tpu.memory_space<vmem>>, vector<1x128xf32>
    %5 = vector.broadcast %4 : vector<1x128xf32> to vector<98x128xf32>
    %6 = arith.addf %3, %5 : vector<98x128xf32>
    %cst_6 = arith.constant 0.000000e+00 : f32
    %7 = vector.broadcast %cst_6 : f32 to vector<98x128xf32>
    %8 = arith.maximumf %6, %7 : vector<98x128xf32>
    %9 = arith.truncf %8 : vector<98x128xf32> to vector<98x128xbf16>
    %c0_i32 = arith.constant 0 : i32
    %10 = arith.cmpi eq, %arg0, %c0_i32 : i32
    %11 = arith.extui %10 : i1 to i32
    %c0_i32_7 = arith.constant 0 : i32
    %12 = arith.cmpi ne, %11, %c0_i32_7 : i32
    scf.if %12 {
      %c0_10 = arith.constant 0 : index
      %c0_11 = arith.constant 0 : index
      %16 = vector.load %arg4[%c0_10, %c0_11] : memref<98x128xbf16, #tpu.memory_space<vmem>>, vector<98x128xbf16>
      tpu.vector_store %arg4[%c0_10, %c0_11], %9 {strides = array<i32>} : memref<98x128xbf16, #tpu.memory_space<vmem>>, vector<98x128xbf16>,
    } else {
    }
    %c0_i32_8 = arith.constant 0 : i32
    %13 = arith.cmpi ne, %arg0, %c0_i32_8 : i32
    %14 = arith.extui %13 : i1 to i32
    %c0_i32_9 = arith.constant 0 : i32
    %15 = arith.cmpi ne, %14, %c0_i32_9 : i32
    scf.if %15 {
      %c0_10 = arith.constant 0 : index
      %c0_11 = arith.constant 0 : index
      %16 = vector.load %arg4[%c0_10, %c0_11] : memref<98x128xbf16, #tpu.memory_space<vmem>>, vector<98x128xbf16>
      %17 = arith.maximumf %16, %9 : vector<98x128xbf16>
      %c0_12 = arith.constant 0 : index
      %c0_13 = arith.constant 0 : index
      %18 = vector.load %arg4[%c0_12, %c0_13] : memref<98x128xbf16, #tpu.memory_space<vmem>>, vector<98x128xbf16>
      tpu.vector_store %arg4[%c0_12, %c0_13], %17 {strides = array<i32>} : memref<98x128xbf16, #tpu.memory_space<vmem>>, vector<98x128xbf16>,
    } else {
    }
    return
  }
  func.func @transform_0(%arg0: i32) -> (i32, i32, i32) {
    %c0_i32 = arith.constant 0 : i32
    %c0_i32_0 = arith.constant 0 : i32
    %c0_i32_1 = arith.constant 0 : i32
    return %arg0, %c0_i32, %c0_i32_0 : i32, i32, i32
  }
  func.func @transform_1(%arg0: i32) -> (i32, i32) {
    %c0_i32 = arith.constant 0 : i32
    %c0_i32_0 = arith.constant 0 : i32
    %c0_i32_1 = arith.constant 0 : i32
    return %c0_i32, %c0_i32_0 : i32, i32
  }
  func.func @transform_2(%arg0: i32) -> (i32, i32) {
    %c0_i32 = arith.constant 0 : i32
    %c0_i32_0 = arith.constant 0 : i32
    %c0_i32_1 = arith.constant 0 : i32
    return %c0_i32, %c0_i32_0 : i32, i32
  }
  func.func @transform_3(%arg0: i32) -> (i32, i32) {
    %c0_i32 = arith.constant 0 : i32
    %c0_i32_0 = arith.constant 0 : i32
    %c0_i32_1 = arith.constant 0 : i32
    return %c0_i32, %c0_i32_0 : i32, i32
  }
}

module attributes {stable_mosaic.version = 11 : i64} {
  func.func @_conv_relu_pool_kernel(%arg0: i32, %arg1: memref<1x18x1152xbf16, #tpu.memory_space<vmem>>, %arg2: memref<1152x128xbf16, #tpu.memory_space<vmem>>, %arg3: memref<1x128xf32, #tpu.memory_space<vmem>>, %arg4: memref<18x128xbf16, #tpu.memory_space<vmem>>) attributes {dimension_semantics = [#tpu.dimension_semantics<arbitrary>], iteration_bounds = array<i64: 4>, scalar_prefetch = 0 : i64, scratch_operands = 0 : i64, tpu.core_type = #tpu.core_type<tc>, window_params = [{transform_indices = @transform_0, window_bounds = array<i64: 1, 18, 1152>}, {pipeline_mode = #tpu.pipeline_mode<synchronous>, transform_indices = @transform_1, window_bounds = array<i64: 1152, 128>}, {pipeline_mode = #tpu.pipeline_mode<synchronous>, transform_indices = @transform_2, window_bounds = array<i64: 1, 128>}, {pipeline_mode = #tpu.pipeline_mode<synchronous>, transform_indices = @transform_3, window_bounds = array<i64: 18, 128>}]} {
    %c0 = arith.constant 0 : index
    %c0_0 = arith.constant 0 : index
    %c0_1 = arith.constant 0 : index
    %0 = vector.load %arg1[%c0, %c0_0, %c0_1] : memref<1x18x1152xbf16, #tpu.memory_space<vmem>>, vector<1x18x1152xbf16>
    %1 = vector.shape_cast %0 : vector<1x18x1152xbf16> to vector<18x1152xbf16>
    %c0_2 = arith.constant 0 : index
    %c0_3 = arith.constant 0 : index
    %2 = vector.load %arg2[%c0_2, %c0_3] : memref<1152x128xbf16, #tpu.memory_space<vmem>>, vector<1152x128xbf16>
    %cst = arith.constant dense<0.000000e+00> : vector<18x128xf32>
    %3 = tpu.matmul %1, %2, %cst {dimension_numbers = #tpu.dot_dimension_numbers<[1], [0], [0], [1], [0, 0, 1, 1], [], []>} : vector<18x1152xbf16>, vector<1152x128xbf16>, vector<18x128xf32> -> vector<18x128xf32>
    %c0_4 = arith.constant 0 : index
    %c0_5 = arith.constant 0 : index
    %4 = vector.load %arg3[%c0_4, %c0_5] : memref<1x128xf32, #tpu.memory_space<vmem>>, vector<1x128xf32>
    %5 = vector.broadcast %4 : vector<1x128xf32> to vector<18x128xf32>
    %6 = arith.addf %3, %5 : vector<18x128xf32>
    %cst_6 = arith.constant 0.000000e+00 : f32
    %7 = vector.broadcast %cst_6 : f32 to vector<18x128xf32>
    %8 = arith.maximumf %6, %7 : vector<18x128xf32>
    %9 = arith.truncf %8 : vector<18x128xf32> to vector<18x128xbf16>
    %c0_i32 = arith.constant 0 : i32
    %10 = arith.cmpi eq, %arg0, %c0_i32 : i32
    %11 = arith.extui %10 : i1 to i32
    %c0_i32_7 = arith.constant 0 : i32
    %12 = arith.cmpi ne, %11, %c0_i32_7 : i32
    scf.if %12 {
      %c0_10 = arith.constant 0 : index
      %c0_11 = arith.constant 0 : index
      %16 = vector.load %arg4[%c0_10, %c0_11] : memref<18x128xbf16, #tpu.memory_space<vmem>>, vector<18x128xbf16>
      tpu.vector_store %arg4[%c0_10, %c0_11], %9 {strides = array<i32>} : memref<18x128xbf16, #tpu.memory_space<vmem>>, vector<18x128xbf16>,
    } else {
    }
    %c0_i32_8 = arith.constant 0 : i32
    %13 = arith.cmpi ne, %arg0, %c0_i32_8 : i32
    %14 = arith.extui %13 : i1 to i32
    %c0_i32_9 = arith.constant 0 : i32
    %15 = arith.cmpi ne, %14, %c0_i32_9 : i32
    scf.if %15 {
      %c0_10 = arith.constant 0 : index
      %c0_11 = arith.constant 0 : index
      %16 = vector.load %arg4[%c0_10, %c0_11] : memref<18x128xbf16, #tpu.memory_space<vmem>>, vector<18x128xbf16>
      %17 = arith.maximumf %16, %9 : vector<18x128xbf16>
      %c0_12 = arith.constant 0 : index
      %c0_13 = arith.constant 0 : index
      %18 = vector.load %arg4[%c0_12, %c0_13] : memref<18x128xbf16, #tpu.memory_space<vmem>>, vector<18x128xbf16>
      tpu.vector_store %arg4[%c0_12, %c0_13], %17 {strides = array<i32>} : memref<18x128xbf16, #tpu.memory_space<vmem>>, vector<18x128xbf16>,
    } else {
    }
    return
  }
  func.func @transform_0(%arg0: i32) -> (i32, i32, i32) {
    %c0_i32 = arith.constant 0 : i32
    %c0_i32_0 = arith.constant 0 : i32
    %c0_i32_1 = arith.constant 0 : i32
    return %arg0, %c0_i32, %c0_i32_0 : i32, i32, i32
  }
  func.func @transform_1(%arg0: i32) -> (i32, i32) {
    %c0_i32 = arith.constant 0 : i32
    %c0_i32_0 = arith.constant 0 : i32
    %c0_i32_1 = arith.constant 0 : i32
    return %c0_i32, %c0_i32_0 : i32, i32
  }
  func.func @transform_2(%arg0: i32) -> (i32, i32) {
    %c0_i32 = arith.constant 0 : i32
    %c0_i32_0 = arith.constant 0 : i32
    %c0_i32_1 = arith.constant 0 : i32
    return %c0_i32, %c0_i32_0 : i32, i32
  }
  func.func @transform_3(%arg0: i32) -> (i32, i32) {
    %c0_i32 = arith.constant 0 : i32
    %c0_i32_0 = arith.constant 0 : i32
    %c0_i32_1 = arith.constant 0 : i32
    return %c0_i32, %c0_i32_0 : i32, i32
  }
}

module attributes {stable_mosaic.version = 11 : i64} {
  func.func @_fc_relu_fc_kernel(%arg0: i32, %arg1: memref<2x1152xbf16, #tpu.memory_space<vmem>>, %arg2: memref<1152x256xbf16, #tpu.memory_space<vmem>>, %arg3: memref<1x256xf32, #tpu.memory_space<vmem>>, %arg4: memref<256x128xbf16, #tpu.memory_space<vmem>>, %arg5: memref<1x128xf32, #tpu.memory_space<vmem>>, %arg6: memref<2x128xf32, #tpu.memory_space<vmem>>) attributes {dimension_semantics = [#tpu.dimension_semantics<arbitrary>], iteration_bounds = array<i64: 1>, scalar_prefetch = 0 : i64, scratch_operands = 0 : i64, tpu.core_type = #tpu.core_type<tc>, window_params = [{pipeline_mode = #tpu.pipeline_mode<synchronous>, transform_indices = @transform_0, window_bounds = array<i64: 2, 1152>}, {pipeline_mode = #tpu.pipeline_mode<synchronous>, transform_indices = @transform_1, window_bounds = array<i64: 1152, 256>}, {pipeline_mode = #tpu.pipeline_mode<synchronous>, transform_indices = @transform_2, window_bounds = array<i64: 1, 256>}, {pipeline_mode = #tpu.pipeline_mode<synchronous>, transform_indices = @transform_3, window_bounds = array<i64: 256, 128>}, {pipeline_mode = #tpu.pipeline_mode<synchronous>, transform_indices = @transform_4, window_bounds = array<i64: 1, 128>}, {pipeline_mode = #tpu.pipeline_mode<synchronous>, transform_indices = @transform_5, window_bounds = array<i64: 2, 128>}]} {
    %c0 = arith.constant 0 : index
    %c0_0 = arith.constant 0 : index
    %0 = vector.load %arg1[%c0, %c0_0] : memref<2x1152xbf16, #tpu.memory_space<vmem>>, vector<2x1152xbf16>
    %c0_1 = arith.constant 0 : index
    %c0_2 = arith.constant 0 : index
    %1 = vector.load %arg2[%c0_1, %c0_2] : memref<1152x256xbf16, #tpu.memory_space<vmem>>, vector<1152x256xbf16>
    %cst = arith.constant dense<0.000000e+00> : vector<2x256xf32>
    %2 = tpu.matmul %0, %1, %cst {dimension_numbers = #tpu.dot_dimension_numbers<[1], [0], [0], [1], [0, 0, 1, 1], [], []>} : vector<2x1152xbf16>, vector<1152x256xbf16>, vector<2x256xf32> -> vector<2x256xf32>
    %c0_3 = arith.constant 0 : index
    %c0_4 = arith.constant 0 : index
    %3 = vector.load %arg3[%c0_3, %c0_4] : memref<1x256xf32, #tpu.memory_space<vmem>>, vector<1x256xf32>
    %4 = vector.broadcast %3 : vector<1x256xf32> to vector<2x256xf32>
    %5 = arith.addf %2, %4 : vector<2x256xf32>
    %cst_5 = arith.constant 0.000000e+00 : f32
    %6 = vector.broadcast %cst_5 : f32 to vector<2x256xf32>
    %7 = arith.maximumf %5, %6 : vector<2x256xf32>
    %8 = arith.truncf %7 : vector<2x256xf32> to vector<2x256xbf16>
    %c0_6 = arith.constant 0 : index
    %c0_7 = arith.constant 0 : index
    %9 = vector.load %arg4[%c0_6, %c0_7] : memref<256x128xbf16, #tpu.memory_space<vmem>>, vector<256x128xbf16>
    %cst_8 = arith.constant dense<0.000000e+00> : vector<2x128xf32>
    %10 = tpu.matmul %8, %9, %cst_8 {dimension_numbers = #tpu.dot_dimension_numbers<[1], [0], [0], [1], [0, 0, 1, 1], [], []>} : vector<2x256xbf16>, vector<256x128xbf16>, vector<2x128xf32> -> vector<2x128xf32>
    %c0_9 = arith.constant 0 : index
    %c0_10 = arith.constant 0 : index
    %11 = vector.load %arg5[%c0_9, %c0_10] : memref<1x128xf32, #tpu.memory_space<vmem>>, vector<1x128xf32>
    %12 = vector.broadcast %11 : vector<1x128xf32> to vector<2x128xf32>
    %13 = arith.addf %10, %12 : vector<2x128xf32>
    %c0_11 = arith.constant 0 : index
    %c0_12 = arith.constant 0 : index
    %14 = vector.load %arg6[%c0_11, %c0_12] : memref<2x128xf32, #tpu.memory_space<vmem>>, vector<2x128xf32>
    tpu.vector_store %arg6[%c0_11, %c0_12], %13 {strides = array<i32>} : memref<2x128xf32, #tpu.memory_space<vmem>>, vector<2x128xf32>,
    return
  }
  func.func @transform_0(%arg0: i32) -> (i32, i32) {
    %c0_i32 = arith.constant 0 : i32
    %c0_i32_0 = arith.constant 0 : i32
    %c0_i32_1 = arith.constant 0 : i32
    return %c0_i32, %c0_i32_0 : i32, i32
  }
  func.func @transform_1(%arg0: i32) -> (i32, i32) {
    %c0_i32 = arith.constant 0 : i32
    %c0_i32_0 = arith.constant 0 : i32
    %c0_i32_1 = arith.constant 0 : i32
    return %c0_i32, %c0_i32_0 : i32, i32
  }
  func.func @transform_2(%arg0: i32) -> (i32, i32) {
    %c0_i32 = arith.constant 0 : i32
    %c0_i32_0 = arith.constant 0 : i32
    %c0_i32_1 = arith.constant 0 : i32
    return %c0_i32, %c0_i32_0 : i32, i32
  }
  func.func @transform_3(%arg0: i32) -> (i32, i32) {
    %c0_i32 = arith.constant 0 : i32
    %c0_i32_0 = arith.constant 0 : i32
    %c0_i32_1 = arith.constant 0 : i32
    return %c0_i32, %c0_i32_0 : i32, i32
  }
  func.func @transform_4(%arg0: i32) -> (i32, i32) {
    %c0_i32 = arith.constant 0 : i32
    %c0_i32_0 = arith.constant 0 : i32
    %c0_i32_1 = arith.constant 0 : i32
    return %c0_i32, %c0_i32_0 : i32, i32
  }
  func.func @transform_5(%arg0: i32) -> (i32, i32) {
    %c0_i32 = arith.constant 0 : i32
    %c0_i32_0 = arith.constant 0 : i32
    %c0_i32_1 = arith.constant 0 : i32
    return %c0_i32, %c0_i32_0 : i32, i32
  }
}

</mosaic_0001>

<llo_original>
// kernel: shape_classifier_forward.4
$region0: #{shape_classifier_forward.4}
  #allocation0 [shape = 'u32[]', space=smem, size = 0x4, offset = 0x4, fixed_abs, tag = 'smem constant byte address 0x4 - core index']
  #allocation1 [shape = 'u32[72,128]{1,0:T(1,128)}', space=vmem, size = 0x9000, scoped, tag = 'internal scratch']
  %s0 = inlined_call_operand.vmem [shape: bf16[4,392,9], index: 0, kind: input, shape index: {}]
  %s1 = inlined_call_operand.vmem [shape: bf16[9,128], index: 1, kind: input, shape index: {}]
  %s2 = inlined_call_operand.vmem [shape: f32[1,128], index: 2, kind: input, shape index: {}]
  %s3 = inlined_call_operand.vmem [shape: bf16[392,128], index: 3, kind: output, shape index: {}]
  %s4 = sld [smem:[#allocation0]]
  $region53: #{shape_classifier_forward.4} parent=0
    _
  %s6 = ssub.s32 1, %s4
  %s7 = scalar_select 0, %s6, %s4
  loop: start=0, step=1, limit=6
  $region2: #{shape_classifier_forward.4} parent=0 // loop_pre_header
    _
  $region3: #{shape_classifier_forward.4} parent=0 // loop_header
    %s9 = sphi 0, %s13
    %p10 = scmp.ge.s32.totalorder %s9, 6
    %s19 = sphi 0, %s21
    %s22 = sphi 0, %s19
    %s23 = sphi 0, %s22
    %s39 = sphi 0, %s23
    %s43 = sphi 0, %s43
    %s45 = sphi 0, %s43
    %s46 = sphi 0, %s45
    %s60 = sphi 0, %s46
    %s64 = sphi 0, %s64
    %s66 = sphi 0, %s64
    %s67 = sphi 0, %s66
    %s81 = sphi 0, %s67
    %s85 = sphi 0, %s85
    %s87 = sphi 0, %s85
    %s88 = sphi 0, %s87
    %s102 = sphi 0, %s88
  $region4: #{shape_classifier_forward.4} parent=0 // loop_header_branch
    %12 = sbr.rel (%p10) target = $region8
  $region5: #{shape_classifier_forward.4} parent=0 // loop_body
    %s14 = ssub.s32 %s9, 1
    %s15 = ssub.s32 %s9, 2
    %s16 = sadd.s32 %s9, 1
    %s17 = ssub.s32 %s9, %s16
    %p18 = scmp.eq.s32.totalorder %s17, 0
    %s20 = sadd.s32 %s19, 1
    %s21 = scalar_select %p18, %s19, %s20
    %p24 = pneg %p18
    %p25 = scmp.eq.s32.totalorder %s9, 3
    %p26 = por %p24, %p25
    %p27 = scmp.ne.s32.totalorder %s19, %s22
    %p28 = scmp.eq.s32.totalorder %s9, 0
    %p29 = por %p27, %p28
    %p30 = scmp.ne.s32.totalorder %s19, %s22
    %p31 = scmp.eq.s32.totalorder %s14, 3
    %p32 = por %p30, %p31
    %p33 = scmp.ne.s32.totalorder %s22, %s23
    %p34 = scmp.eq.s32.totalorder %s14, 0
    %p35 = por %p33, %p34
    %p36 = scmp.ne.s32.totalorder %s22, %s23
    %p37 = scmp.eq.s32.totalorder %s15, 3
    %p38 = por %p36, %p37
    %p40 = scmp.ne.s32.totalorder %s23, %s39
    %p41 = scmp.eq.s32.totalorder %s15, 0
    %p42 = por %p40, %p41
    %s44 = sadd.s32 %s43, 1
    %p47 = scmp.eq.s32.totalorder %s9, 3
    %p48 = scmp.ne.s32.totalorder %s43, %s45
    %p49 = scmp.eq.s32.totalorder %s9, 0
    %p50 = por %p48, %p49
    %p51 = scmp.ne.s32.totalorder %s43, %s45
    %p52 = scmp.eq.s32.totalorder %s14, 3
    %p53 = por %p51, %p52
    %p54 = scmp.ne.s32.totalorder %s45, %s46
    %p55 = scmp.eq.s32.totalorder %s14, 0
    %p56 = por %p54, %p55
    %p57 = scmp.ne.s32.totalorder %s45, %s46
    %p58 = scmp.eq.s32.totalorder %s15, 3
    %p59 = por %p57, %p58
    %p61 = scmp.ne.s32.totalorder %s46, %s60
    %p62 = scmp.eq.s32.totalorder %s15, 0
    %p63 = por %p61, %p62
    %s65 = sadd.s32 %s64, 1
    %p68 = scmp.eq.s32.totalorder %s9, 3
    %p69 = scmp.ne.s32.totalorder %s64, %s66
    %p70 = scmp.eq.s32.totalorder %s9, 0
    %p71 = por %p69, %p70
    %p72 = scmp.ne.s32.totalorder %s64, %s66
    %p73 = scmp.eq.s32.totalorder %s14, 3
    %p74 = por %p72, %p73
    %p75 = scmp.ne.s32.totalorder %s66, %s67
    %p76 = scmp.eq.s32.totalorder %s14, 0
    %p77 = por %p75, %p76
    %p78 = scmp.ne.s32.totalorder %s66, %s67
    %p79 = scmp.eq.s32.totalorder %s15, 3
    %p80 = por %p78, %p79
    %p82 = scmp.ne.s32.totalorder %s67, %s81
    %p83 = scmp.eq.s32.totalorder %s15, 0
    %p84 = por %p82, %p83
    %s86 = sadd.s32 %s85, 1
    %p89 = scmp.eq.s32.totalorder %s9, 3
    %p90 = scmp.ne.s32.totalorder %s85, %s87
    %p91 = scmp.eq.s32.totalorder %s9, 0
    %p92 = por %p90, %p91
    %p93 = scmp.ne.s32.totalorder %s85, %s87
    %p94 = scmp.eq.s32.totalorder %s14, 3
    %p95 = por %p93, %p94
    %p96 = scmp.ne.s32.totalorder %s87, %s88
    %p97 = scmp.eq.s32.totalorder %s14, 0
    %p98 = por %p96, %p97
    %p99 = scmp.ne.s32.totalorder %s87, %s88
    %p100 = scmp.eq.s32.totalorder %s15, 3
    %p101 = por %p99, %p100
    %p103 = scmp.ne.s32.totalorder %s88, %s102
    %p104 = scmp.eq.s32.totalorder %s15, 0
    %p105 = por %p103, %p104
    %p106 = scmp.le.s32.totalorder 1, %s9
    %p107 = scmp.lt.s32.totalorder %s9, 5
    %p108 = pnand %p106, %p107
    %p109 = pneg %p108
    // Predicated region
    $region9: #{shape_classifier_forward.4} parent=5 // pred_check
      _
    $region10: #{shape_classifier_forward.4} parent=5 // pred_check_branch
      %111 = sbr.rel (%p108) target = $region12
    $region11: #{shape_classifier_forward.4} parent=5 // pred_region
      %s112 = ssub.s32 %s9, 1
      // Predicated region
      $region13: #{shape_classifier_forward.4} parent=11 // pred_check
        %p113 = pneg %p56
      $region14: #{shape_classifier_forward.4} parent=11 // pred_check_branch
        %115 = sbr.rel (%p113) target = $region16
      $region15: #{shape_classifier_forward.4} parent=11 // pred_region
        _
      $region16: #{shape_classifier_forward.4} parent=11 // pred_fallthru
        _
      // Predicated region
      $region17: #{shape_classifier_forward.4} parent=11 // pred_check
        %p116 = pneg %p77
      $region18: #{shape_classifier_forward.4} parent=11 // pred_check_branch
        %118 = sbr.rel (%p116) target = $region20
      $region19: #{shape_classifier_forward.4} parent=11 // pred_region
        _
      $region20: #{shape_classifier_forward.4} parent=11 // pred_fallthru
        _
    $region12: #{shape_classifier_forward.4} parent=5 // pred_fallthru
      _
    %p119 = scmp.lt.s32.totalorder %s9, 4
    // Predicated region
    $region21: #{shape_classifier_forward.4} parent=5 // pred_check
      %p120 = pneg %p119
    $region22: #{shape_classifier_forward.4} parent=5 // pred_check_branch
      %122 = sbr.rel (%p120) target = $region24
    $region23: #{shape_classifier_forward.4} parent=5 // pred_region
      // Predicated region
      $region25: #{shape_classifier_forward.4} parent=23 // pred_check
        %p123 = pneg %p29
      $region26: #{shape_classifier_forward.4} parent=23 // pred_check_branch
        %125 = sbr.rel (%p123) target = $region28
      $region27: #{shape_classifier_forward.4} parent=23 // pred_region
        %p126 = scmp.lt.s32.totalorder %s9, 3
        %s127 = scalar_select %p126, %s9, 3
        %s128 = smul.addr %s127, 49
        %s129 = smul.addr %s128, 4
        %s130 = scalar_lea.vmem %s0, %s129
      $region28: #{shape_classifier_forward.4} parent=23 // pred_fallthru
        _
    $region24: #{shape_classifier_forward.4} parent=5 // pred_fallthru
      _
    %p131 = scmp.le.s32.totalorder 1, %s9
    %p132 = scmp.lt.s32.totalorder %s9, 5
    %p133 = pnand %p131, %p132
    %p134 = pneg %p133
    // Predicated region
    $region29: #{shape_classifier_forward.4} parent=5 // pred_check
      _
    $region30: #{shape_classifier_forward.4} parent=5 // pred_check_branch
      %136 = sbr.rel (%p133) target = $region32
    $region31: #{shape_classifier_forward.4} parent=5 // pred_region
      %s137 = ssub.s32 %s9, 1
      %p138 = scmp.lt.s32.totalorder %s14, 3
      %s139 = scalar_select %p138, %s14, 3
      %s140 = smul.addr %s139, 49
      %s141 = smul.addr %s140, 4
      %s142 = scalar_lea.vmem %s0, %s141
      %p143 = pneg %p35
      %p144 = pneg %p32
      %p145 = pneg %p56
      %p146 = pneg %p53
      %p147 = pneg %p77
      %p148 = pneg %p74
      %p149 = pneg %p98
      %p150 = pneg %p95
      %p151 = scmp.lt.s32.totalorder %s14, 3
      %s152 = scalar_select %p151, %s14, 3
      %s153 = smul.addr %s152, 49
      %s154 = smul.addr %s153, 4
      %s155 = scalar_lea.vmem %s0, %s154
      %v157 = vld [vmem:[%s155] sm:$0xf]
      %v158 = vld [vmem:[%s155 + $0x4] sm:$0xf]
      %v159 = vld [vmem:[%s155 + $0x8] sm:$0xf]
      %v160 = vld [vmem:[%s155 + $0xc] sm:$0xf]
      %v161 = vld [vmem:[%s155 + $0x10] sm:$0xf]
      %v162 = vld [vmem:[%s155 + $0x14] sm:$0xf]
      %v163 = vld [vmem:[%s155 + $0x18] sm:$0xf]
      %v164 = vld [vmem:[%s155 + $0x1c] sm:$0xf]
      %v165 = vld [vmem:[%s155 + $0x20] sm:$0xf]
      %v166 = vld [vmem:[%s155 + $0x24] sm:$0xf]
      %v167 = vld [vmem:[%s155 + $0x28] sm:$0xf]
      %v168 = vld [vmem:[%s155 + $0x2c] sm:$0xf]
      %v169 = vld [vmem:[%s155 + $0x30] sm:$0xf]
      %v170 = vld [vmem:[%s155 + $0x34] sm:$0xf]
      %v171 = vld [vmem:[%s155 + $0x38] sm:$0xf]
      %v172 = vld [vmem:[%s155 + $0x3c] sm:$0xf]
      %v173 = vld [vmem:[%s155 + $0x40] sm:$0xf]
      %v174 = vld [vmem:[%s155 + $0x44] sm:$0xf]
      %v175 = vld [vmem:[%s155 + $0x48] sm:$0xf]
      %v176 = vld [vmem:[%s155 + $0x4c] sm:$0xf]
      %v177 = vld [vmem:[%s155 + $0x50] sm:$0xf]
      %v178 = vld [vmem:[%s155 + $0x54] sm:$0xf]
      %v179 = vld [vmem:[%s155 + $0x58] sm:$0xf]
      %v180 = vld [vmem:[%s155 + $0x5c] sm:$0xf]
      %v181 = vld [vmem:[%s155 + $0x60] sm:$0xf]
      %v182 = vld [vmem:[%s155 + $0x64] sm:$0xf]
      %v183 = vld [vmem:[%s155 + $0x68] sm:$0xf]
      %v184 = vld [vmem:[%s155 + $0x6c] sm:$0xf]
      %v185 = vld [vmem:[%s155 + $0x70] sm:$0xf]
      %v186 = vld [vmem:[%s155 + $0x74] sm:$0xf]
      %v187 = vld [vmem:[%s155 + $0x78] sm:$0xf]
      %v188 = vld [vmem:[%s155 + $0x7c] sm:$0xf]
      %v189 = vld [vmem:[%s155 + $0x80] sm:$0xf]
      %v190 = vld [vmem:[%s155 + $0x84] sm:$0xf]
      %v191 = vld [vmem:[%s155 + $0x88] sm:$0xf]
      %v192 = vld [vmem:[%s155 + $0x8c] sm:$0xf]
      %v193 = vld [vmem:[%s155 + $0x90] sm:$0xf]
      %v194 = vld [vmem:[%s155 + $0x94] sm:$0xf]
      %v195 = vld [vmem:[%s155 + $0x98] sm:$0xf]
      %v196 = vld [vmem:[%s155 + $0x9c] sm:$0xf]
      %v197 = vld [vmem:[%s155 + $0xa0] sm:$0xf]
      %v198 = vld [vmem:[%s155 + $0xa4] sm:$0xf]
      %v199 = vld [vmem:[%s155 + $0xa8] sm:$0xf]
      %v200 = vld [vmem:[%s155 + $0xac] sm:$0xf]
      %v201 = vld [vmem:[%s155 + $0xb0] sm:$0xf]
      %v202 = vld [vmem:[%s155 + $0xb4] sm:$0xf]
      %v203 = vld [vmem:[%s155 + $0xb8] sm:$0xf]
      %v204 = vld [vmem:[%s155 + $0xbc] sm:$0xf]
      %v205 = vld [vmem:[%s155 + $0xc0] sm:$0xf]
      %v206 = vld [vmem:[%s1] sm:$0xf]
      %v207 = vld [vmem:[%s1 + $0x4] sm:$0x1]
      %v208 = vld [vmem:[%s2] sm:$0x1]
      %v210 = vperm.slane %v208, 0
      %v261 = vunpack.c.l.b16 %v157
      %v262 = vunpack.c.l.b16 %v158
      %v263 = vunpack.c.l.b16 %v159
      %v264 = vunpack.c.l.b16 %v160
      %v265 = vunpack.c.l.b16 %v161
      %v266 = vunpack.c.l.b16 %v162
      %v267 = vunpack.c.l.b16 %v163
      %v268 = vunpack.c.l.b16 %v164
      %v269 = vunpack.c.l.b16 %v165
      %v270 = vunpack.c.l.b16 %v166
      %v271 = vunpack.c.l.b16 %v167
      %v272 = vunpack.c.l.b16 %v168
      %v273 = vunpack.c.l.b16 %v169
      %v274 = vunpack.c.l.b16 %v170
      %v275 = vunpack.c.l.b16 %v171
      %v276 = vunpack.c.l.b16 %v172
      %v277 = vunpack.c.l.b16 %v173
      %v278 = vunpack.c.l.b16 %v174
      %v279 = vunpack.c.l.b16 %v175
      %v280 = vunpack.c.l.b16 %v176
      %v281 = vunpack.c.l.b16 %v177
      %v282 = vunpack.c.l.b16 %v178
      %v283 = vunpack.c.l.b16 %v179
      %v284 = vunpack.c.l.b16 %v180
      %v285 = vunpack.c.l.b16 %v181
      %v286 = vunpack.c.l.b16 %v182
      %v287 = vunpack.c.l.b16 %v183
      %v288 = vunpack.c.l.b16 %v184
      %v289 = vunpack.c.l.b16 %v185
      %v290 = vunpack.c.l.b16 %v186
      %v291 = vunpack.c.l.b16 %v187
      %v292 = vunpack.c.l.b16 %v188
      %v293 = vunpack.c.l.b16 %v189
      %v294 = vunpack.c.l.b16 %v190
      %v295 = vunpack.c.l.b16 %v191
      %v296 = vunpack.c.l.b16 %v192
      %v297 = vunpack.c.l.b16 %v193
      %v298 = vunpack.c.l.b16 %v194
      %v299 = vunpack.c.l.b16 %v195
      %v300 = vunpack.c.l.b16 %v196
      %v301 = vunpack.c.l.b16 %v197
      %v302 = vunpack.c.l.b16 %v198
      %v303 = vunpack.c.l.b16 %v199
      %v304 = vunpack.c.l.b16 %v200
      %v305 = vunpack.c.l.b16 %v201
      %v306 = vunpack.c.l.b16 %v202
      %v307 = vunpack.c.l.b16 %v203
      %v308 = vunpack.c.l.b16 %v204
      %v309 = vunpack.c.l.b16 %v205
      %v310 = vpack.c.b16 %v262, %v261
      %v311 = vpack.c.b16 %v264, %v263
      %v312 = vpack.c.b16 %v266, %v265
      %v313 = vpack.c.b16 %v268, %v267
      %v314 = vpack.c.b16 %v270, %v269
      %v315 = vpack.c.b16 %v272, %v271
      %v316 = vpack.c.b16 %v274, %v273
      %v317 = vpack.c.b16 %v276, %v275
      %v318 = vpack.c.b16 %v278, %v277
      %v319 = vpack.c.b16 %v280, %v279
      %v320 = vpack.c.b16 %v282, %v281
      %v321 = vpack.c.b16 %v284, %v283
      %v322 = vpack.c.b16 %v286, %v285
      %v323 = vpack.c.b16 %v288, %v287
      %v324 = vpack.c.b16 %v290, %v289
      %v325 = vpack.c.b16 %v292, %v291
      %v326 = vpack.c.b16 %v294, %v293
      %v327 = vpack.c.b16 %v296, %v295
      %v328 = vpack.c.b16 %v298, %v297
      %v329 = vpack.c.b16 %v300, %v299
      %v330 = vpack.c.b16 %v302, %v301
      %v331 = vpack.c.b16 %v304, %v303
      %v332 = vpack.c.b16 %v306, %v305
      %v333 = vpack.c.b16 %v308, %v307
      %v334 = vpack.c.b16 %v309, %v309
      %v337 = vunpack.c.l.b16 %v206
      %v338 = vunpack.c.l.b16 %v207
      %v339 = vpack.c.b16 %v338, %v337
      %vm340 = vcmask 72704
      %v342 = vsel %vm340, %v310, 0
      %v345 = vsel %vm340, %v311, 0
      %v348 = vsel %vm340, %v312, 0
      %v351 = vsel %vm340, %v313, 0
      %v354 = vsel %vm340, %v314, 0
      %v357 = vsel %vm340, %v315, 0
      %v360 = vsel %vm340, %v316, 0
      %v363 = vsel %vm340, %v317, 0
      %v366 = vsel %vm340, %v318, 0
      %v369 = vsel %vm340, %v319, 0
      %v372 = vsel %vm340, %v320, 0
      %v375 = vsel %vm340, %v321, 0
      %v378 = vsel %vm340, %v322, 0
      %v381 = vsel %vm340, %v323, 0
      %v384 = vsel %vm340, %v324, 0
      %v387 = vsel %vm340, %v325, 0
      %v390 = vsel %vm340, %v326, 0
      %v393 = vsel %vm340, %v327, 0
      %v396 = vsel %vm340, %v328, 0
      %v399 = vsel %vm340, %v329, 0
      %v402 = vsel %vm340, %v330, 0
      %v405 = vsel %vm340, %v331, 0
      %v408 = vsel %vm340, %v332, 0
      %v411 = vsel %vm340, %v333, 0
      %v414 = vsel %vm340, %v334, 0
      %vm416 = vcmask 1043456
      %vm417 = vcmask 1044480
      %v418 = vsel %vm416, 4294967295, 65535
      %v419 = vsel %vm417, %v418, 0
      %v421 = vand.u32 %v339, %v419
      %423 = vmatpush.bf16.msra.mxu0 0
      %424 = vmatpush.bf16.msra.mxu0 0
      %425 = vmatpush.bf16.msra.mxu0 0
      %426 = vmatpush.bf16.msra.mxu0 0
      %427 = vmatpush.bf16.msra.mxu0 0
      %428 = vmatpush.bf16.msra.mxu0 0
      %429 = vmatpush.bf16.msra.mxu0 0
      %430 = vmatpush.bf16.msra.mxu0 %v421
      %431 = vmatmul.bf16.gmra.mxu0 %v342
      %v432 = vpop.f32.mrf.mxu0
      %v433 = vadd.f32 %v210, %v432
      %v434 = vpop.f32.mrf.mxu0
      %v435 = vadd.f32 %v210, %v434
      %436 = vmatmul.bf16.gmra.mxu0 %v345
      %v437 = vpop.f32.mrf.mxu0
      %v438 = vadd.f32 %v210, %v437
      %v439 = vpop.f32.mrf.mxu0
      %v440 = vadd.f32 %v210, %v439
      %441 = vmatmul.bf16.gmra.mxu0 %v348
      %v442 = vpop.f32.mrf.mxu0
      %v443 = vadd.f32 %v210, %v442
      %v444 = vpop.f32.mrf.mxu0
      %v445 = vadd.f32 %v210, %v444
      %446 = vmatmul.bf16.gmra.mxu0 %v351
      %v447 = vpop.f32.mrf.mxu0
      %v448 = vadd.f32 %v210, %v447
      %v449 = vpop.f32.mrf.mxu0
      %v450 = vadd.f32 %v210, %v449
      %451 = vmatmul.bf16.gmra.mxu0 %v354
      %v452 = vpop.f32.mrf.mxu0
      %v453 = vadd.f32 %v210, %v452
      %v454 = vpop.f32.mrf.mxu0
      %v455 = vadd.f32 %v210, %v454
      %456 = vmatmul.bf16.gmra.mxu0 %v357
      %v457 = vpop.f32.mrf.mxu0
      %v458 = vadd.f32 %v210, %v457
      %v459 = vpop.f32.mrf.mxu0
      %v460 = vadd.f32 %v210, %v459
      %461 = vmatmul.bf16.gmra.mxu0 %v360
      %v462 = vpop.f32.mrf.mxu0
      %v463 = vadd.f32 %v210, %v462
      %v464 = vpop.f32.mrf.mxu0
      %v465 = vadd.f32 %v210, %v464
      %466 = vmatmul.bf16.gmra.mxu0 %v363
      %v467 = vpop.f32.mrf.mxu0
      %v468 = vadd.f32 %v210, %v467
      %v469 = vpop.f32.mrf.mxu0
      %v470 = vadd.f32 %v210, %v469
      %471 = vmatmul.bf16.gmra.mxu0 %v366
      %v472 = vpop.f32.mrf.mxu0
      %v473 = vadd.f32 %v210, %v472
      %v474 = vpop.f32.mrf.mxu0
      %v475 = vadd.f32 %v210, %v474
      %476 = vmatmul.bf16.gmra.mxu0 %v369
      %v477 = vpop.f32.mrf.mxu0
      %v478 = vadd.f32 %v210, %v477
      %v479 = vpop.f32.mrf.mxu0
      %v480 = vadd.f32 %v210, %v479
      %481 = vmatmul.bf16.gmra.mxu0 %v372
      %v482 = vpop.f32.mrf.mxu0
      %v483 = vadd.f32 %v210, %v482
      %v484 = vpop.f32.mrf.mxu0
      %v485 = vadd.f32 %v210, %v484
      %486 = vmatmul.bf16.gmra.mxu0 %v375
      %v487 = vpop.f32.mrf.mxu0
      %v488 = vadd.f32 %v210, %v487
      %v489 = vpop.f32.mrf.mxu0
      %v490 = vadd.f32 %v210, %v489
      %491 = vmatmul.bf16.gmra.mxu0 %v378
      %v492 = vpop.f32.mrf.mxu0
      %v493 = vadd.f32 %v210, %v492
      %v494 = vpop.f32.mrf.mxu0
      %v495 = vadd.f32 %v210, %v494
      %496 = vmatmul.bf16.gmra.mxu0 %v381
      %v497 = vpop.f32.mrf.mxu0
      %v498 = vadd.f32 %v210, %v497
      %v499 = vpop.f32.mrf.mxu0
      %v500 = vadd.f32 %v210, %v499
      %501 = vmatmul.bf16.gmra.mxu0 %v384
      %v502 = vpop.f32.mrf.mxu0
      %v503 = vadd.f32 %v210, %v502
      %v504 = vpop.f32.mrf.mxu0
      %v505 = vadd.f32 %v210, %v504
      %506 = vmatmul.bf16.gmra.mxu0 %v387
      %v507 = vpop.f32.mrf.mxu0
      %v508 = vadd.f32 %v210, %v507
      %v509 = vpop.f32.mrf.mxu0
      %v510 = vadd.f32 %v210, %v509
      %511 = vmatmul.bf16.gmra.mxu0 %v390
      %v512 = vpop.f32.mrf.mxu0
      %v513 = vadd.f32 %v210, %v512
      %v514 = vpop.f32.mrf.mxu0
      %v515 = vadd.f32 %v210, %v514
      %516 = vmatmul.bf16.gmra.mxu0 %v393
      %v517 = vpop.f32.mrf.mxu0
      %v518 = vadd.f32 %v210, %v517
      %v519 = vpop.f32.mrf.mxu0
      %v520 = vadd.f32 %v210, %v519
      %521 = vmatmul.bf16.gmra.mxu0 %v396
      %v522 = vpop.f32.mrf.mxu0
      %v523 = vadd.f32 %v210, %v522
      %v524 = vpop.f32.mrf.mxu0
      %v525 = vadd.f32 %v210, %v524
      %526 = vmatmul.bf16.gmra.mxu0 %v399
      %v527 = vpop.f32.mrf.mxu0
      %v528 = vadd.f32 %v210, %v527
      %v529 = vpop.f32.mrf.mxu0
      %v530 = vadd.f32 %v210, %v529
      %531 = vmatmul.bf16.gmra.mxu0 %v402
      %v532 = vpop.f32.mrf.mxu0
      %v533 = vadd.f32 %v210, %v532
      %v534 = vpop.f32.mrf.mxu0
      %v535 = vadd.f32 %v210, %v534
      %536 = vmatmul.bf16.gmra.mxu0 %v405
      %v537 = vpop.f32.mrf.mxu0
      %v538 = vadd.f32 %v210, %v537
      %v539 = vpop.f32.mrf.mxu0
      %v540 = vadd.f32 %v210, %v539
      %541 = vmatmul.bf16.gmra.mxu0 %v408
      %v542 = vpop.f32.mrf.mxu0
      %v543 = vadd.f32 %v210, %v542
      %v544 = vpop.f32.mrf.mxu0
      %v545 = vadd.f32 %v210, %v544
      %546 = vmatmul.bf16.gmra.mxu0 %v411
      %v547 = vpop.f32.mrf.mxu0
      %v548 = vadd.f32 %v210, %v547
      %v549 = vpop.f32.mrf.mxu0
      %v550 = vadd.f32 %v210, %v549
      %551 = vmatmul.bf16.gmra.mxu0 %v414
      %v552 = vpop.f32.mrf.mxu0
      %v553 = vadd.f32 %v210, %v552
      %v554 = vpop.f32.mrf.mxu0
      %555 = vdwg.mxu0
      %v556 = vmax.f32 %v433, 0.0
      %v557 = vmax.f32 %v435, 0.0
      %v558 = vmax.f32 %v438, 0.0
      %v559 = vmax.f32 %v440, 0.0
      %v560 = vmax.f32 %v443, 0.0
      %v561 = vmax.f32 %v445, 0.0
      %v562 = vmax.f32 %v448, 0.0
      %v563 = vmax.f32 %v450, 0.0
      %v564 = vmax.f32 %v453, 0.0
      %v565 = vmax.f32 %v455, 0.0
      %v566 = vmax.f32 %v458, 0.0
      %v567 = vmax.f32 %v460, 0.0
      %v568 = vmax.f32 %v463, 0.0
      %v569 = vmax.f32 %v465, 0.0
      %v570 = vmax.f32 %v468, 0.0
      %v571 = vmax.f32 %v470, 0.0
      %v572 = vmax.f32 %v473, 0.0
      %v573 = vmax.f32 %v475, 0.0
      %v574 = vmax.f32 %v478, 0.0
      %v575 = vmax.f32 %v480, 0.0
      %v576 = vmax.f32 %v483, 0.0
      %v577 = vmax.f32 %v485, 0.0
      %v578 = vmax.f32 %v488, 0.0
      %v579 = vmax.f32 %v490, 0.0
      %v580 = vmax.f32 %v493, 0.0
      %v581 = vmax.f32 %v495, 0.0
      %v582 = vmax.f32 %v498, 0.0
      %v583 = vmax.f32 %v500, 0.0
      %v584 = vmax.f32 %v503, 0.0
      %v585 = vmax.f32 %v505, 0.0
      %v586 = vmax.f32 %v508, 0.0
      %v587 = vmax.f32 %v510, 0.0
      %v588 = vmax.f32 %v513, 0.0
      %v589 = vmax.f32 %v515, 0.0
      %v590 = vmax.f32 %v518, 0.0
      %v591 = vmax.f32 %v520, 0.0
      %v592 = vmax.f32 %v523, 0.0
      %v593 = vmax.f32 %v525, 0.0
      %v594 = vmax.f32 %v528, 0.0
      %v595 = vmax.f32 %v530, 0.0
      %v596 = vmax.f32 %v533, 0.0
      %v597 = vmax.f32 %v535, 0.0
      %v598 = vmax.f32 %v538, 0.0
      %v599 = vmax.f32 %v540, 0.0
      %v600 = vmax.f32 %v543, 0.0
      %v601 = vmax.f32 %v545, 0.0
      %v602 = vmax.f32 %v548, 0.0
      %v603 = vmax.f32 %v550, 0.0
      %v604 = vmax.f32 %v553, 0.0
      %v605 = vpack.c.bf16 %v556, %v556
      %v606 = vpack.c.bf16 %v557, %v557
      %v607 = vpack.c.bf16 %v558, %v558
      %v608 = vpack.c.bf16 %v559, %v559
      %v609 = vpack.c.bf16 %v560, %v560
      %v610 = vpack.c.bf16 %v561, %v561
      %v611 = vpack.c.bf16 %v562, %v562
      %v612 = vpack.c.bf16 %v563, %v563
      %v613 = vpack.c.bf16 %v564, %v564
      %v614 = vpack.c.bf16 %v565, %v565
      %v615 = vpack.c.bf16 %v566, %v566
      %v616 = vpack.c.bf16 %v567, %v567
      %v617 = vpack.c.bf16 %v568, %v568
      %v618 = vpack.c.bf16 %v569, %v569
      %v619 = vpack.c.bf16 %v570, %v570
      %v620 = vpack.c.bf16 %v571, %v571
      %v621 = vpack.c.bf16 %v572, %v572
      %v622 = vpack.c.bf16 %v573, %v573
      %v623 = vpack.c.bf16 %v574, %v574
      %v624 = vpack.c.bf16 %v575, %v575
      %v625 = vpack.c.bf16 %v576, %v576
      %v626 = vpack.c.bf16 %v577, %v577
      %v627 = vpack.c.bf16 %v578, %v578
      %v628 = vpack.c.bf16 %v579, %v579
      %v629 = vpack.c.bf16 %v580, %v580
      %v630 = vpack.c.bf16 %v581, %v581
      %v631 = vpack.c.bf16 %v582, %v582
      %v632 = vpack.c.bf16 %v583, %v583
      %v633 = vpack.c.bf16 %v584, %v584
      %v634 = vpack.c.bf16 %v585, %v585
      %v635 = vpack.c.bf16 %v586, %v586
      %v636 = vpack.c.bf16 %v587, %v587
      %v637 = vpack.c.bf16 %v588, %v588
      %v638 = vpack.c.bf16 %v589, %v589
      %v639 = vpack.c.bf16 %v590, %v590
      %v640 = vpack.c.bf16 %v591, %v591
      %v641 = vpack.c.bf16 %v592, %v592
      %v642 = vpack.c.bf16 %v593, %v593
      %v643 = vpack.c.bf16 %v594, %v594
      %v644 = vpack.c.bf16 %v595, %v595
      %v645 = vpack.c.bf16 %v596, %v596
      %v646 = vpack.c.bf16 %v597, %v597
      %v647 = vpack.c.bf16 %v598, %v598
      %v648 = vpack.c.bf16 %v599, %v599
      %v649 = vpack.c.bf16 %v600, %v600
      %v650 = vpack.c.bf16 %v601, %v601
      %v651 = vpack.c.bf16 %v602, %v602
      %v652 = vpack.c.bf16 %v603, %v603
      %v653 = vpack.c.bf16 %v604, %v604
      %p654 = scmp.eq.s32.totalorder %s14, 0
      // Predicated region
      $region33: #{shape_classifier_forward.4} parent=31 // pred_check
        %p655 = pneg %p654
      $region34: #{shape_classifier_forward.4} parent=31 // pred_check_branch
        %657 = sbr.rel (%p655) target = $region36
      $region35: #{shape_classifier_forward.4} parent=31 // pred_region
        %658 = vst [vmem:[%s3] sm:$0xf] %v605
        %659 = vst [vmem:[%s3 + $0x4] sm:$0xf] %v606
        %660 = vst [vmem:[%s3 + $0x8] sm:$0xf] %v607
        %661 = vst [vmem:[%s3 + $0xc] sm:$0xf] %v608
        %662 = vst [vmem:[%s3 + $0x10] sm:$0xf] %v609
        %663 = vst [vmem:[%s3 + $0x14] sm:$0xf] %v610
        %664 = vst [vmem:[%s3 + $0x18] sm:$0xf] %v611
        %665 = vst [vmem:[%s3 + $0x1c] sm:$0xf] %v612
        %666 = vst [vmem:[%s3 + $0x20] sm:$0xf] %v613
        %667 = vst [vmem:[%s3 + $0x24] sm:$0xf] %v614
        %668 = vst [vmem:[%s3 + $0x28] sm:$0xf] %v615
        %669 = vst [vmem:[%s3 + $0x2c] sm:$0xf] %v616
        %670 = vst [vmem:[%s3 + $0x30] sm:$0xf] %v617
        %671 = vst [vmem:[%s3 + $0x34] sm:$0xf] %v618
        %672 = vst [vmem:[%s3 + $0x38] sm:$0xf] %v619
        %673 = vst [vmem:[%s3 + $0x3c] sm:$0xf] %v620
        %674 = vst [vmem:[%s3 + $0x40] sm:$0xf] %v621
        %675 = vst [vmem:[%s3 + $0x44] sm:$0xf] %v622
        %676 = vst [vmem:[%s3 + $0x48] sm:$0xf] %v623
        %677 = vst [vmem:[%s3 + $0x4c] sm:$0xf] %v624
        %678 = vst [vmem:[%s3 + $0x50] sm:$0xf] %v625
        %679 = vst [vmem:[%s3 + $0x54] sm:$0xf] %v626
        %680 = vst [vmem:[%s3 + $0x58] sm:$0xf] %v627
        %681 = vst [vmem:[%s3 + $0x5c] sm:$0xf] %v628
        %682 = vst [vmem:[%s3 + $0x60] sm:$0xf] %v629
        %683 = vst [vmem:[%s3 + $0x64] sm:$0xf] %v630
        %684 = vst [vmem:[%s3 + $0x68] sm:$0xf] %v631
        %685 = vst [vmem:[%s3 + $0x6c] sm:$0xf] %v632
        %686 = vst [vmem:[%s3 + $0x70] sm:$0xf] %v633
        %687 = vst [vmem:[%s3 + $0x74] sm:$0xf] %v634
        %688 = vst [vmem:[%s3 + $0x78] sm:$0xf] %v635
        %689 = vst [vmem:[%s3 + $0x7c] sm:$0xf] %v636
        %690 = vst [vmem:[%s3 + $0x80] sm:$0xf] %v637
        %691 = vst [vmem:[%s3 + $0x84] sm:$0xf] %v638
        %692 = vst [vmem:[%s3 + $0x88] sm:$0xf] %v639
        %693 = vst [vmem:[%s3 + $0x8c] sm:$0xf] %v640
        %694 = vst [vmem:[%s3 + $0x90] sm:$0xf] %v641
        %695 = vst [vmem:[%s3 + $0x94] sm:$0xf] %v642
        %696 = vst [vmem:[%s3 + $0x98] sm:$0xf] %v643
        %697 = vst [vmem:[%s3 + $0x9c] sm:$0xf] %v644
        %698 = vst [vmem:[%s3 + $0xa0] sm:$0xf] %v645
        %699 = vst [vmem:[%s3 + $0xa4] sm:$0xf] %v646
        %700 = vst [vmem:[%s3 + $0xa8] sm:$0xf] %v647
        %701 = vst [vmem:[%s3 + $0xac] sm:$0xf] %v648
        %702 = vst [vmem:[%s3 + $0xb0] sm:$0xf] %v649
        %703 = vst [vmem:[%s3 + $0xb4] sm:$0xf] %v650
        %704 = vst [vmem:[%s3 + $0xb8] sm:$0xf] %v651
        %705 = vst [vmem:[%s3 + $0xbc] sm:$0xf] %v652
        %706 = vst [vmem:[%s3 + $0xc0] sm:$0xf] %v653
      $region36: #{shape_classifier_forward.4} parent=31 // pred_fallthru
        _
      %p707 = scmp.ne.s32.totalorder %s14, 0
      // Predicated region
      $region37: #{shape_classifier_forward.4} parent=31 // pred_check
        %p708 = pneg %p707
      $region38: #{shape_classifier_forward.4} parent=31 // pred_check_branch
        %710 = sbr.rel (%p708) target = $region40
      $region39: #{shape_classifier_forward.4} parent=31 // pred_region
        %v711 = vld [vmem:[%s3] sm:$0xf]
        %v712 = vld [vmem:[%s3 + $0x4] sm:$0xf]
        %v713 = vld [vmem:[%s3 + $0x8] sm:$0xf]
        %v714 = vld [vmem:[%s3 + $0xc] sm:$0xf]
        %v715 = vld [vmem:[%s3 + $0x10] sm:$0xf]
        %v716 = vld [vmem:[%s3 + $0x14] sm:$0xf]
        %v717 = vld [vmem:[%s3 + $0x18] sm:$0xf]
        %v718 = vld [vmem:[%s3 + $0x1c] sm:$0xf]
        %v719 = vld [vmem:[%s3 + $0x20] sm:$0xf]
        %v720 = vld [vmem:[%s3 + $0x24] sm:$0xf]
        %v721 = vld [vmem:[%s3 + $0x28] sm:$0xf]
        %v722 = vld [vmem:[%s3 + $0x2c] sm:$0xf]
        %v723 = vld [vmem:[%s3 + $0x30] sm:$0xf]
        %v724 = vld [vmem:[%s3 + $0x34] sm:$0xf]
        %v725 = vld [vmem:[%s3 + $0x38] sm:$0xf]
        %v726 = vld [vmem:[%s3 + $0x3c] sm:$0xf]
        %v727 = vld [vmem:[%s3 + $0x40] sm:$0xf]
        %v728 = vld [vmem:[%s3 + $0x44] sm:$0xf]
        %v729 = vld [vmem:[%s3 + $0x48] sm:$0xf]
        %v730 = vld [vmem:[%s3 + $0x4c] sm:$0xf]
        %v731 = vld [vmem:[%s3 + $0x50] sm:$0xf]
        %v732 = vld [vmem:[%s3 + $0x54] sm:$0xf]
        %v733 = vld [vmem:[%s3 + $0x58] sm:$0xf]
        %v734 = vld [vmem:[%s3 + $0x5c] sm:$0xf]
        %v735 = vld [vmem:[%s3 + $0x60] sm:$0xf]
        %v736 = vld [vmem:[%s3 + $0x64] sm:$0xf]
        %v737 = vld [vmem:[%s3 + $0x68] sm:$0xf]
        %v738 = vld [vmem:[%s3 + $0x6c] sm:$0xf]
        %v739 = vld [vmem:[%s3 + $0x70] sm:$0xf]
        %v740 = vld [vmem:[%s3 + $0x74] sm:$0xf]
        %v741 = vld [vmem:[%s3 + $0x78] sm:$0xf]
        %v742 = vld [vmem:[%s3 + $0x7c] sm:$0xf]
        %v743 = vld [vmem:[%s3 + $0x80] sm:$0xf]
        %v744 = vld [vmem:[%s3 + $0x84] sm:$0xf]
        %v745 = vld [vmem:[%s3 + $0x88] sm:$0xf]
        %v746 = vld [vmem:[%s3 + $0x8c] sm:$0xf]
        %v747 = vld [vmem:[%s3 + $0x90] sm:$0xf]
        %v748 = vld [vmem:[%s3 + $0x94] sm:$0xf]
        %v749 = vld [vmem:[%s3 + $0x98] sm:$0xf]
        %v750 = vld [vmem:[%s3 + $0x9c] sm:$0xf]
        %v751 = vld [vmem:[%s3 + $0xa0] sm:$0xf]
        %v752 = vld [vmem:[%s3 + $0xa4] sm:$0xf]
        %v753 = vld [vmem:[%s3 + $0xa8] sm:$0xf]
        %v754 = vld [vmem:[%s3 + $0xac] sm:$0xf]
        %v755 = vld [vmem:[%s3 + $0xb0] sm:$0xf]
        %v756 = vld [vmem:[%s3 + $0xb4] sm:$0xf]
        %v757 = vld [vmem:[%s3 + $0xb8] sm:$0xf]
        %v758 = vld [vmem:[%s3 + $0xbc] sm:$0xf]
        %v759 = vld [vmem:[%s3 + $0xc0] sm:$0xf]
        %v760 = vunpack.c.l.bf16 %v711
        %v761 = vunpack.c.l.bf16 %v712
        %v762 = vunpack.c.l.bf16 %v713
        %v763 = vunpack.c.l.bf16 %v714
        %v764 = vunpack.c.l.bf16 %v715
        %v765 = vunpack.c.l.bf16 %v716
        %v766 = vunpack.c.l.bf16 %v717
        %v767 = vunpack.c.l.bf16 %v718
        %v768 = vunpack.c.l.bf16 %v719
        %v769 = vunpack.c.l.bf16 %v720
        %v770 = vunpack.c.l.bf16 %v721
        %v771 = vunpack.c.l.bf16 %v722
        %v772 = vunpack.c.l.bf16 %v723
        %v773 = vunpack.c.l.bf16 %v724
        %v774 = vunpack.c.l.bf16 %v725
        %v775 = vunpack.c.l.bf16 %v726
        %v776 = vunpack.c.l.bf16 %v727
        %v777 = vunpack.c.l.bf16 %v728
        %v778 = vunpack.c.l.bf16 %v729
        %v779 = vunpack.c.l.bf16 %v730
        %v780 = vunpack.c.l.bf16 %v731
        %v781 = vunpack.c.l.bf16 %v732
        %v782 = vunpack.c.l.bf16 %v733
        %v783 = vunpack.c.l.bf16 %v734
        %v784 = vunpack.c.l.bf16 %v735
        %v785 = vunpack.c.l.bf16 %v736
        %v786 = vunpack.c.l.bf16 %v737
        %v787 = vunpack.c.l.bf16 %v738
        %v788 = vunpack.c.l.bf16 %v739
        %v789 = vunpack.c.l.bf16 %v740
        %v790 = vunpack.c.l.bf16 %v741
        %v791 = vunpack.c.l.bf16 %v742
        %v792 = vunpack.c.l.bf16 %v743
        %v793 = vunpack.c.l.bf16 %v744
        %v794 = vunpack.c.l.bf16 %v745
        %v795 = vunpack.c.l.bf16 %v746
        %v796 = vunpack.c.l.bf16 %v747
        %v797 = vunpack.c.l.bf16 %v748
        %v798 = vunpack.c.l.bf16 %v749
        %v799 = vunpack.c.l.bf16 %v750
        %v800 = vunpack.c.l.bf16 %v751
        %v801 = vunpack.c.l.bf16 %v752
        %v802 = vunpack.c.l.bf16 %v753
        %v803 = vunpack.c.l.bf16 %v754
        %v804 = vunpack.c.l.bf16 %v755
        %v805 = vunpack.c.l.bf16 %v756
        %v806 = vunpack.c.l.bf16 %v757
        %v807 = vunpack.c.l.bf16 %v758
        %v808 = vunpack.c.l.bf16 %v759
        %v809 = vunpack.c.l.bf16 %v605
        %v810 = vunpack.c.l.bf16 %v606
        %v811 = vunpack.c.l.bf16 %v607
        %v812 = vunpack.c.l.bf16 %v608
        %v813 = vunpack.c.l.bf16 %v609
        %v814 = vunpack.c.l.bf16 %v610
        %v815 = vunpack.c.l.bf16 %v611
        %v816 = vunpack.c.l.bf16 %v612
        %v817 = vunpack.c.l.bf16 %v613
        %v818 = vunpack.c.l.bf16 %v614
        %v819 = vunpack.c.l.bf16 %v615
        %v820 = vunpack.c.l.bf16 %v616
        %v821 = vunpack.c.l.bf16 %v617
        %v822 = vunpack.c.l.bf16 %v618
        %v823 = vunpack.c.l.bf16 %v619
        %v824 = vunpack.c.l.bf16 %v620
        %v825 = vunpack.c.l.bf16 %v621
        %v826 = vunpack.c.l.bf16 %v622
        %v827 = vunpack.c.l.bf16 %v623
        %v828 = vunpack.c.l.bf16 %v624
        %v829 = vunpack.c.l.bf16 %v625
        %v830 = vunpack.c.l.bf16 %v626
        %v831 = vunpack.c.l.bf16 %v627
        %v832 = vunpack.c.l.bf16 %v628
        %v833 = vunpack.c.l.bf16 %v629
        %v834 = vunpack.c.l.bf16 %v630
        %v835 = vunpack.c.l.bf16 %v631
        %v836 = vunpack.c.l.bf16 %v632
        %v837 = vunpack.c.l.bf16 %v633
        %v838 = vunpack.c.l.bf16 %v634
        %v839 = vunpack.c.l.bf16 %v635
        %v840 = vunpack.c.l.bf16 %v636
        %v841 = vunpack.c.l.bf16 %v637
        %v842 = vunpack.c.l.bf16 %v638
        %v843 = vunpack.c.l.bf16 %v639
        %v844 = vunpack.c.l.bf16 %v640
        %v845 = vunpack.c.l.bf16 %v641
        %v846 = vunpack.c.l.bf16 %v642
        %v847 = vunpack.c.l.bf16 %v643
        %v848 = vunpack.c.l.bf16 %v644
        %v849 = vunpack.c.l.bf16 %v645
        %v850 = vunpack.c.l.bf16 %v646
        %v851 = vunpack.c.l.bf16 %v647
        %v852 = vunpack.c.l.bf16 %v648
        %v853 = vunpack.c.l.bf16 %v649
        %v854 = vunpack.c.l.bf16 %v650
        %v855 = vunpack.c.l.bf16 %v651
        %v856 = vunpack.c.l.bf16 %v652
        %v857 = vunpack.c.l.bf16 %v653
        %v858 = vmax.f32 %v760, %v809
        %v859 = vmax.f32 %v761, %v810
        %v860 = vmax.f32 %v762, %v811
        %v861 = vmax.f32 %v763, %v812
        %v862 = vmax.f32 %v764, %v813
        %v863 = vmax.f32 %v765, %v814
        %v864 = vmax.f32 %v766, %v815
        %v865 = vmax.f32 %v767, %v816
        %v866 = vmax.f32 %v768, %v817
        %v867 = vmax.f32 %v769, %v818
        %v868 = vmax.f32 %v770, %v819
        %v869 = vmax.f32 %v771, %v820
        %v870 = vmax.f32 %v772, %v821
        %v871 = vmax.f32 %v773, %v822
        %v872 = vmax.f32 %v774, %v823
        %v873 = vmax.f32 %v775, %v824
        %v874 = vmax.f32 %v776, %v825
        %v875 = vmax.f32 %v777, %v826
        %v876 = vmax.f32 %v778, %v827
        %v877 = vmax.f32 %v779, %v828
        %v878 = vmax.f32 %v780, %v829
        %v879 = vmax.f32 %v781, %v830
        %v880 = vmax.f32 %v782, %v831
        %v881 = vmax.f32 %v783, %v832
        %v882 = vmax.f32 %v784, %v833
        %v883 = vmax.f32 %v785, %v834
        %v884 = vmax.f32 %v786, %v835
        %v885 = vmax.f32 %v787, %v836
        %v886 = vmax.f32 %v788, %v837
        %v887 = vmax.f32 %v789, %v838
        %v888 = vmax.f32 %v790, %v839
        %v889 = vmax.f32 %v791, %v840
        %v890 = vmax.f32 %v792, %v841
        %v891 = vmax.f32 %v793, %v842
        %v892 = vmax.f32 %v794, %v843
        %v893 = vmax.f32 %v795, %v844
        %v894 = vmax.f32 %v796, %v845
        %v895 = vmax.f32 %v797, %v846
        %v896 = vmax.f32 %v798, %v847
        %v897 = vmax.f32 %v799, %v848
        %v898 = vmax.f32 %v800, %v849
        %v899 = vmax.f32 %v801, %v850
        %v900 = vmax.f32 %v802, %v851
        %v901 = vmax.f32 %v803, %v852
        %v902 = vmax.f32 %v804, %v853
        %v903 = vmax.f32 %v805, %v854
        %v904 = vmax.f32 %v806, %v855
        %v905 = vmax.f32 %v807, %v856
        %v906 = vmax.f32 %v808, %v857
        %v907 = vpack.c.bf16 %v858, %v858
        %v908 = vpack.c.bf16 %v859, %v859
        %v909 = vpack.c.bf16 %v860, %v860
        %v910 = vpack.c.bf16 %v861, %v861
        %v911 = vpack.c.bf16 %v862, %v862
        %v912 = vpack.c.bf16 %v863, %v863
        %v913 = vpack.c.bf16 %v864, %v864
        %v914 = vpack.c.bf16 %v865, %v865
        %v915 = vpack.c.bf16 %v866, %v866
        %v916 = vpack.c.bf16 %v867, %v867
        %v917 = vpack.c.bf16 %v868, %v868
        %v918 = vpack.c.bf16 %v869, %v869
        %v919 = vpack.c.bf16 %v870, %v870
        %v920 = vpack.c.bf16 %v871, %v871
        %v921 = vpack.c.bf16 %v872, %v872
        %v922 = vpack.c.bf16 %v873, %v873
        %v923 = vpack.c.bf16 %v874, %v874
        %v924 = vpack.c.bf16 %v875, %v875
        %v925 = vpack.c.bf16 %v876, %v876
        %v926 = vpack.c.bf16 %v877, %v877
        %v927 = vpack.c.bf16 %v878, %v878
        %v928 = vpack.c.bf16 %v879, %v879
        %v929 = vpack.c.bf16 %v880, %v880
        %v930 = vpack.c.bf16 %v881, %v881
        %v931 = vpack.c.bf16 %v882, %v882
        %v932 = vpack.c.bf16 %v883, %v883
        %v933 = vpack.c.bf16 %v884, %v884
        %v934 = vpack.c.bf16 %v885, %v885
        %v935 = vpack.c.bf16 %v886, %v886
        %v936 = vpack.c.bf16 %v887, %v887
        %v937 = vpack.c.bf16 %v888, %v888
        %v938 = vpack.c.bf16 %v889, %v889
        %v939 = vpack.c.bf16 %v890, %v890
        %v940 = vpack.c.bf16 %v891, %v891
        %v941 = vpack.c.bf16 %v892, %v892
        %v942 = vpack.c.bf16 %v893, %v893
        %v943 = vpack.c.bf16 %v894, %v894
        %v944 = vpack.c.bf16 %v895, %v895
        %v945 = vpack.c.bf16 %v896, %v896
        %v946 = vpack.c.bf16 %v897, %v897
        %v947 = vpack.c.bf16 %v898, %v898
        %v948 = vpack.c.bf16 %v899, %v899
        %v949 = vpack.c.bf16 %v900, %v900
        %v950 = vpack.c.bf16 %v901, %v901
        %v951 = vpack.c.bf16 %v902, %v902
        %v952 = vpack.c.bf16 %v903, %v903
        %v953 = vpack.c.bf16 %v904, %v904
        %v954 = vpack.c.bf16 %v905, %v905
        %v955 = vpack.c.bf16 %v906, %v906
        %956 = vst [vmem:[%s3] sm:$0xf] %v907
        %957 = vst [vmem:[%s3 + $0x4] sm:$0xf] %v908
        %958 = vst [vmem:[%s3 + $0x8] sm:$0xf] %v909
        %959 = vst [vmem:[%s3 + $0xc] sm:$0xf] %v910
        %960 = vst [vmem:[%s3 + $0x10] sm:$0xf] %v911
        %961 = vst [vmem:[%s3 + $0x14] sm:$0xf] %v912
        %962 = vst [vmem:[%s3 + $0x18] sm:$0xf] %v913
        %963 = vst [vmem:[%s3 + $0x1c] sm:$0xf] %v914
        %964 = vst [vmem:[%s3 + $0x20] sm:$0xf] %v915
        %965 = vst [vmem:[%s3 + $0x24] sm:$0xf] %v916
        %966 = vst [vmem:[%s3 + $0x28] sm:$0xf] %v917
        %967 = vst [vmem:[%s3 + $0x2c] sm:$0xf] %v918
        %968 = vst [vmem:[%s3 + $0x30] sm:$0xf] %v919
        %969 = vst [vmem:[%s3 + $0x34] sm:$0xf] %v920
        %970 = vst [vmem:[%s3 + $0x38] sm:$0xf] %v921
        %971 = vst [vmem:[%s3 + $0x3c] sm:$0xf] %v922
        %972 = vst [vmem:[%s3 + $0x40] sm:$0xf] %v923
        %973 = vst [vmem:[%s3 + $0x44] sm:$0xf] %v924
        %974 = vst [vmem:[%s3 + $0x48] sm:$0xf] %v925
        %975 = vst [vmem:[%s3 + $0x4c] sm:$0xf] %v926
        %976 = vst [vmem:[%s3 + $0x50] sm:$0xf] %v927
        %977 = vst [vmem:[%s3 + $0x54] sm:$0xf] %v928
        %978 = vst [vmem:[%s3 + $0x58] sm:$0xf] %v929
        %979 = vst [vmem:[%s3 + $0x5c] sm:$0xf] %v930
        %980 = vst [vmem:[%s3 + $0x60] sm:$0xf] %v931
        %981 = vst [vmem:[%s3 + $0x64] sm:$0xf] %v932
        %982 = vst [vmem:[%s3 + $0x68] sm:$0xf] %v933
        %983 = vst [vmem:[%s3 + $0x6c] sm:$0xf] %v934
        %984 = vst [vmem:[%s3 + $0x70] sm:$0xf] %v935
        %985 = vst [vmem:[%s3 + $0x74] sm:$0xf] %v936
        %986 = vst [vmem:[%s3 + $0x78] sm:$0xf] %v937
        %987 = vst [vmem:[%s3 + $0x7c] sm:$0xf] %v938
        %988 = vst [vmem:[%s3 + $0x80] sm:$0xf] %v939
        %989 = vst [vmem:[%s3 + $0x84] sm:$0xf] %v940
        %990 = vst [vmem:[%s3 + $0x88] sm:$0xf] %v941
        %991 = vst [vmem:[%s3 + $0x8c] sm:$0xf] %v942
        %992 = vst [vmem:[%s3 + $0x90] sm:$0xf] %v943
        %993 = vst [vmem:[%s3 + $0x94] sm:$0xf] %v944
        %994 = vst [vmem:[%s3 + $0x98] sm:$0xf] %v945
        %995 = vst [vmem:[%s3 + $0x9c] sm:$0xf] %v946
        %996 = vst [vmem:[%s3 + $0xa0] sm:$0xf] %v947
        %997 = vst [vmem:[%s3 + $0xa4] sm:$0xf] %v948
        %998 = vst [vmem:[%s3 + $0xa8] sm:$0xf] %v949
        %999 = vst [vmem:[%s3 + $0xac] sm:$0xf] %v950
        %1000 = vst [vmem:[%s3 + $0xb0] sm:$0xf] %v951
        %1001 = vst [vmem:[%s3 + $0xb4] sm:$0xf] %v952
        %1002 = vst [vmem:[%s3 + $0xb8] sm:$0xf] %v953
        %1003 = vst [vmem:[%s3 + $0xbc] sm:$0xf] %v954
        %1004 = vst [vmem:[%s3 + $0xc0] sm:$0xf] %v955
      $region40: #{shape_classifier_forward.4} parent=31 // pred_fallthru
        _
      // Predicated region
      $region41: #{shape_classifier_forward.4} parent=31 // pred_check
        %p1005 = pneg %p95
      $region42: #{shape_classifier_forward.4} parent=31 // pred_check_branch
        %1007 = sbr.rel (%p1005) target = $region44
      $region43: #{shape_classifier_forward.4} parent=31 // pred_region
        _
      $region44: #{shape_classifier_forward.4} parent=31 // pred_fallthru
        _
      // Predicated region
      $region45: #{shape_classifier_forward.4} parent=31 // pred_check
        %p1008 = pneg %p95
      $region46: #{shape_classifier_forward.4} parent=31 // pred_check_branch
        %1010 = sbr.rel (%p1008) target = $region48
      $region47: #{shape_classifier_forward.4} parent=31 // pred_region
        _
      $region48: #{shape_classifier_forward.4} parent=31 // pred_fallthru
        _
    $region32: #{shape_classifier_forward.4} parent=5 // pred_fallthru
      _
    %p1011 = scmp.le.s32.totalorder 2, %s9
    // Predicated region
    $region49: #{shape_classifier_forward.4} parent=5 // pred_check
      %p1012 = pneg %p1011
    $region50: #{shape_classifier_forward.4} parent=5 // pred_check_branch
      %1014 = sbr.rel (%p1012) target = $region52
    $region51: #{shape_classifier_forward.4} parent=5 // pred_region
      %s1015 = ssub.s32 %s9, 2
    $region52: #{shape_classifier_forward.4} parent=5 // pred_fallthru
      _
  $region6: #{shape_classifier_forward.4} parent=0 // loop_footer
    %s13 = sadd.s32 1, %s9
  $region7: #{shape_classifier_forward.4} parent=0 // loop_footer_branch
    %8 = sbr.rel target = $region3
  $region8: #{shape_classifier_forward.4} parent=0 // loop_exit
    _

// kernel: shape_classifier_forward.5
$region0: #{shape_classifier_forward.5}
  #allocation0 [shape = 'u32[]', space=smem, size = 0x4, offset = 0x4, fixed_abs, tag = 'smem constant byte address 0x4 - core index']
  #allocation1 [shape = 'u32[72,128]{1,0:T(1,128)}', space=vmem, size = 0x9000, scoped, tag = 'internal scratch']
  %s0 = inlined_call_operand.vmem [shape: bf16[4,98,1152], index: 0, kind: input, shape index: {}]
  %s1 = inlined_call_operand.vmem [shape: bf16[1152,128], index: 1, kind: input, shape index: {}]
  %s2 = inlined_call_operand.vmem [shape: f32[1,128], index: 2, kind: input, shape index: {}]
  %s3 = inlined_call_operand.vmem [shape: bf16[98,128], index: 3, kind: output, shape index: {}]
  %s4 = sld [smem:[#allocation0]]
  $region53: #{shape_classifier_forward.5} parent=0
    _
  %s6 = ssub.s32 1, %s4
  %s7 = scalar_select 0, %s6, %s4
  loop: start=0, step=1, limit=6
  $region2: #{shape_classifier_forward.5} parent=0 // loop_pre_header
    _
  $region3: #{shape_classifier_forward.5} parent=0 // loop_header
    %s9 = sphi 0, %s13
    %p10 = scmp.ge.s32.totalorder %s9, 6
    %s19 = sphi 0, %s21
    %s22 = sphi 0, %s19
    %s23 = sphi 0, %s22
    %s39 = sphi 0, %s23
    %s43 = sphi 0, %s43
    %s45 = sphi 0, %s43
    %s46 = sphi 0, %s45
    %s60 = sphi 0, %s46
    %s64 = sphi 0, %s64
    %s66 = sphi 0, %s64
    %s67 = sphi 0, %s66
    %s81 = sphi 0, %s67
    %s85 = sphi 0, %s85
    %s87 = sphi 0, %s85
    %s88 = sphi 0, %s87
    %s102 = sphi 0, %s88
  $region4: #{shape_classifier_forward.5} parent=0 // loop_header_branch
    %12 = sbr.rel (%p10) target = $region8
  $region5: #{shape_classifier_forward.5} parent=0 // loop_body
    %s14 = ssub.s32 %s9, 1
    %s15 = ssub.s32 %s9, 2
    %s16 = sadd.s32 %s9, 1
    %s17 = ssub.s32 %s9, %s16
    %p18 = scmp.eq.s32.totalorder %s17, 0
    %s20 = sadd.s32 %s19, 1
    %s21 = scalar_select %p18, %s19, %s20
    %p24 = pneg %p18
    %p25 = scmp.eq.s32.totalorder %s9, 3
    %p26 = por %p24, %p25
    %p27 = scmp.ne.s32.totalorder %s19, %s22
    %p28 = scmp.eq.s32.totalorder %s9, 0
    %p29 = por %p27, %p28
    %p30 = scmp.ne.s32.totalorder %s19, %s22
    %p31 = scmp.eq.s32.totalorder %s14, 3
    %p32 = por %p30, %p31
    %p33 = scmp.ne.s32.totalorder %s22, %s23
    %p34 = scmp.eq.s32.totalorder %s14, 0
    %p35 = por %p33, %p34
    %p36 = scmp.ne.s32.totalorder %s22, %s23
    %p37 = scmp.eq.s32.totalorder %s15, 3
    %p38 = por %p36, %p37
    %p40 = scmp.ne.s32.totalorder %s23, %s39
    %p41 = scmp.eq.s32.totalorder %s15, 0
    %p42 = por %p40, %p41
    %s44 = sadd.s32 %s43, 1
    %p47 = scmp.eq.s32.totalorder %s9, 3
    %p48 = scmp.ne.s32.totalorder %s43, %s45
    %p49 = scmp.eq.s32.totalorder %s9, 0
    %p50 = por %p48, %p49
    %p51 = scmp.ne.s32.totalorder %s43, %s45
    %p52 = scmp.eq.s32.totalorder %s14, 3
    %p53 = por %p51, %p52
    %p54 = scmp.ne.s32.totalorder %s45, %s46
    %p55 = scmp.eq.s32.totalorder %s14, 0
    %p56 = por %p54, %p55
    %p57 = scmp.ne.s32.totalorder %s45, %s46
    %p58 = scmp.eq.s32.totalorder %s15, 3
    %p59 = por %p57, %p58
    %p61 = scmp.ne.s32.totalorder %s46, %s60
    %p62 = scmp.eq.s32.totalorder %s15, 0
    %p63 = por %p61, %p62
    %s65 = sadd.s32 %s64, 1
    %p68 = scmp.eq.s32.totalorder %s9, 3
    %p69 = scmp.ne.s32.totalorder %s64, %s66
    %p70 = scmp.eq.s32.totalorder %s9, 0
    %p71 = por %p69, %p70
    %p72 = scmp.ne.s32.totalorder %s64, %s66
    %p73 = scmp.eq.s32.totalorder %s14, 3
    %p74 = por %p72, %p73
    %p75 = scmp.ne.s32.totalorder %s66, %s67
    %p76 = scmp.eq.s32.totalorder %s14, 0
    %p77 = por %p75, %p76
    %p78 = scmp.ne.s32.totalorder %s66, %s67
    %p79 = scmp.eq.s32.totalorder %s15, 3
    %p80 = por %p78, %p79
    %p82 = scmp.ne.s32.totalorder %s67, %s81
    %p83 = scmp.eq.s32.totalorder %s15, 0
    %p84 = por %p82, %p83
    %s86 = sadd.s32 %s85, 1
    %p89 = scmp.eq.s32.totalorder %s9, 3
    %p90 = scmp.ne.s32.totalorder %s85, %s87
    %p91 = scmp.eq.s32.totalorder %s9, 0
    %p92 = por %p90, %p91
    %p93 = scmp.ne.s32.totalorder %s85, %s87
    %p94 = scmp.eq.s32.totalorder %s14, 3
    %p95 = por %p93, %p94
    %p96 = scmp.ne.s32.totalorder %s87, %s88
    %p97 = scmp.eq.s32.totalorder %s14, 0
    %p98 = por %p96, %p97
    %p99 = scmp.ne.s32.totalorder %s87, %s88
    %p100 = scmp.eq.s32.totalorder %s15, 3
    %p101 = por %p99, %p100
    %p103 = scmp.ne.s32.totalorder %s88, %s102
    %p104 = scmp.eq.s32.totalorder %s15, 0
    %p105 = por %p103, %p104
    %p106 = scmp.le.s32.totalorder 1, %s9
    %p107 = scmp.lt.s32.totalorder %s9, 5
    %p108 = pnand %p106, %p107
    %p109 = pneg %p108
    // Predicated region
    $region9: #{shape_classifier_forward.5} parent=5 // pred_check
      _
    $region10: #{shape_classifier_forward.5} parent=5 // pred_check_branch
      %111 = sbr.rel (%p108) target = $region12
    $region11: #{shape_classifier_forward.5} parent=5 // pred_region
      %s112 = ssub.s32 %s9, 1
      // Predicated region
      $region13: #{shape_classifier_forward.5} parent=11 // pred_check
        %p113 = pneg %p56
      $region14: #{shape_classifier_forward.5} parent=11 // pred_check_branch
        %115 = sbr.rel (%p113) target = $region16
      $region15: #{shape_classifier_forward.5} parent=11 // pred_region
        _
      $region16: #{shape_classifier_forward.5} parent=11 // pred_fallthru
        _
      // Predicated region
      $region17: #{shape_classifier_forward.5} parent=11 // pred_check
        %p116 = pneg %p77
      $region18: #{shape_classifier_forward.5} parent=11 // pred_check_branch
        %118 = sbr.rel (%p116) target = $region20
      $region19: #{shape_classifier_forward.5} parent=11 // pred_region
        _
      $region20: #{shape_classifier_forward.5} parent=11 // pred_fallthru
        _
    $region12: #{shape_classifier_forward.5} parent=5 // pred_fallthru
      _
    %p119 = scmp.lt.s32.totalorder %s9, 4
    // Predicated region
    $region21: #{shape_classifier_forward.5} parent=5 // pred_check
      %p120 = pneg %p119
    $region22: #{shape_classifier_forward.5} parent=5 // pred_check_branch
      %122 = sbr.rel (%p120) target = $region24
    $region23: #{shape_classifier_forward.5} parent=5 // pred_region
      // Predicated region
      $region25: #{shape_classifier_forward.5} parent=23 // pred_check
        %p123 = pneg %p29
      $region26: #{shape_classifier_forward.5} parent=23 // pred_check_branch
        %125 = sbr.rel (%p123) target = $region28
      $region27: #{shape_classifier_forward.5} parent=23 // pred_region
        %p126 = scmp.lt.s32.totalorder %s9, 3
        %s127 = scalar_select %p126, %s9, 3
        %s128 = smul.addr %s127, 117
        %s129 = smul.addr %s128, 4
        %s130 = scalar_lea.vmem %s0, %s129
      $region28: #{shape_classifier_forward.5} parent=23 // pred_fallthru
        _
    $region24: #{shape_classifier_forward.5} parent=5 // pred_fallthru
      _
    %p131 = scmp.le.s32.totalorder 1, %s9
    %p132 = scmp.lt.s32.totalorder %s9, 5
    %p133 = pnand %p131, %p132
    %p134 = pneg %p133
    // Predicated region
    $region29: #{shape_classifier_forward.5} parent=5 // pred_check
      _
    $region30: #{shape_classifier_forward.5} parent=5 // pred_check_branch
      %136 = sbr.rel (%p133) target = $region32
    $region31: #{shape_classifier_forward.5} parent=5 // pred_region
      %s137 = ssub.s32 %s9, 1
      %p138 = scmp.lt.s32.totalorder %s14, 3
      %s139 = scalar_select %p138, %s14, 3
      %s140 = smul.addr %s139, 117
      %s141 = smul.addr %s140, 4
      %s142 = scalar_lea.vmem %s0, %s141
      %p143 = pneg %p35
      %p144 = pneg %p32
      %p145 = pneg %p56
      %p146 = pneg %p53
      %p147 = pneg %p77
      %p148 = pneg %p74
      %p149 = pneg %p98
      %p150 = pneg %p95
      %p151 = scmp.lt.s32.totalorder %s14, 3
      %s152 = scalar_select %p151, %s14, 3
      %s153 = smul.addr %s152, 117
      %s154 = smul.addr %s153, 4
      %s155 = scalar_lea.vmem %s0, %s154
      %v156 = vld [vmem:[%s155] sm:$0xff]
      %v157 = vld [vmem:[%s155 + $0x8] sm:$0xff]
      %v158 = vld [vmem:[%s155 + $0x10] sm:$0xff]
      %v159 = vld [vmem:[%s155 + $0x18] sm:$0xff]
      %v160 = vld [vmem:[%s155 + $0x20] sm:$0xf]
      %v161 = vld [vmem:[%s155 + $0x24] sm:$0xff]
      %v162 = vld [vmem:[%s155 + $0x2c] sm:$0xff]
      %v163 = vld [vmem:[%s155 + $0x34] sm:$0xff]
      %v164 = vld [vmem:[%s155 + $0x3c] sm:$0xff]
      %v165 = vld [vmem:[%s155 + $0x44] sm:$0xf]
      %v166 = vld [vmem:[%s155 + $0x48] sm:$0xff]
      %v167 = vld [vmem:[%s155 + $0x50] sm:$0xff]
      %v168 = vld [vmem:[%s155 + $0x58] sm:$0xff]
      %v169 = vld [vmem:[%s155 + $0x60] sm:$0xff]
      %v170 = vld [vmem:[%s155 + $0x68] sm:$0xf]
      %v171 = vld [vmem:[%s155 + $0x6c] sm:$0xff]
      %v172 = vld [vmem:[%s155 + $0x74] sm:$0xff]
      %v173 = vld [vmem:[%s155 + $0x7c] sm:$0xff]
      %v174 = vld [vmem:[%s155 + $0x84] sm:$0xff]
      %v175 = vld [vmem:[%s155 + $0x8c] sm:$0xf]
      %v176 = vld [vmem:[%s155 + $0x90] sm:$0xff]
      %v177 = vld [vmem:[%s155 + $0x98] sm:$0xff]
      %v178 = vld [vmem:[%s155 + $0xa0] sm:$0xff]
      %v179 = vld [vmem:[%s155 + $0xa8] sm:$0xff]
      %v180 = vld [vmem:[%s155 + $0xb0] sm:$0xf]
      %v181 = vld [vmem:[%s155 + $0xb4] sm:$0xff]
      %v182 = vld [vmem:[%s155 + $0xbc] sm:$0xff]
      %v183 = vld [vmem:[%s155 + $0xc4] sm:$0xff]
      %v184 = vld [vmem:[%s155 + $0xcc] sm:$0xff]
      %v185 = vld [vmem:[%s155 + $0xd4] sm:$0xf]
      %v186 = vld [vmem:[%s155 + $0xd8] sm:$0xff]
      %v187 = vld [vmem:[%s155 + $0xe0] sm:$0xff]
      %v188 = vld [vmem:[%s155 + $0xe8] sm:$0xff]
      %v189 = vld [vmem:[%s155 + $0xf0] sm:$0xff]
      %v190 = vld [vmem:[%s155 + $0xf8] sm:$0xf]
      %v191 = vld [vmem:[%s155 + $0xfc] sm:$0xff]
      %v192 = vld [vmem:[%s155 + $0x104] sm:$0xff]
      %v193 = vld [vmem:[%s155 + $0x10c] sm:$0xff]
      %v194 = vld [vmem:[%s155 + $0x114] sm:$0xff]
      %v195 = vld [vmem:[%s155 + $0x11c] sm:$0xf]
      %v196 = vld [vmem:[%s155 + $0x120] sm:$0xff]
      %v197 = vld [vmem:[%s155 + $0x128] sm:$0xff]
      %v198 = vld [vmem:[%s155 + $0x130] sm:$0xff]
      %v199 = vld [vmem:[%s155 + $0x138] sm:$0xff]
      %v200 = vld [vmem:[%s155 + $0x140] sm:$0xf]
      %v201 = vld [vmem:[%s155 + $0x144] sm:$0xff]
      %v202 = vld [vmem:[%s155 + $0x14c] sm:$0xff]
      %v203 = vld [vmem:[%s155 + $0x154] sm:$0xff]
      %v204 = vld [vmem:[%s155 + $0x15c] sm:$0xff]
      %v205 = vld [vmem:[%s155 + $0x164] sm:$0xf]
      %v206 = vld [vmem:[%s155 + $0x168] sm:$0xff]
      %v207 = vld [vmem:[%s155 + $0x170] sm:$0xff]
      %v208 = vld [vmem:[%s155 + $0x178] sm:$0xff]
      %v209 = vld [vmem:[%s155 + $0x180] sm:$0xff]
      %v210 = vld [vmem:[%s155 + $0x188] sm:$0xf]
      %v211 = vld [vmem:[%s155 + $0x18c] sm:$0xff]
      %v212 = vld [vmem:[%s155 + $0x194] sm:$0xff]
      %v213 = vld [vmem:[%s155 + $0x19c] sm:$0xff]
      %v214 = vld [vmem:[%s155 + $0x1a4] sm:$0xff]
      %v215 = vld [vmem:[%s155 + $0x1ac] sm:$0xf]
      %v216 = vld [vmem:[%s155 + $0x1b0] sm:$0x11]
      %v217 = vld [vmem:[%s155 + $0x1b8] sm:$0x11]
      %v218 = vld [vmem:[%s155 + $0x1c0] sm:$0x11]
      %v219 = vld [vmem:[%s155 + $0x1c8] sm:$0x11]
      %v220 = vld [vmem:[%s155 + $0x1d0] sm:$0x1]
      %v221 = vld [vmem:[%s1] sm:$0xf]
      %v222 = vld [vmem:[%s1 + $0x4] sm:$0xf]
      %v223 = vld [vmem:[%s1 + $0x8] sm:$0xf]
      %v224 = vld [vmem:[%s1 + $0xc] sm:$0xf]
      %v225 = vld [vmem:[%s1 + $0x10] sm:$0xf]
      %v226 = vld [vmem:[%s1 + $0x14] sm:$0xf]
      %v227 = vld [vmem:[%s1 + $0x18] sm:$0xf]
      %v228 = vld [vmem:[%s1 + $0x1c] sm:$0xf]
      %v229 = vld [vmem:[%s1 + $0x20] sm:$0xf]
      %v230 = vld [vmem:[%s1 + $0x24] sm:$0xf]
      %v231 = vld [vmem:[%s1 + $0x28] sm:$0xf]
      %v232 = vld [vmem:[%s1 + $0x2c] sm:$0xf]
      %v233 = vld [vmem:[%s1 + $0x30] sm:$0xf]
      %v234 = vld [vmem:[%s1 + $0x34] sm:$0xf]
      %v235 = vld [vmem:[%s1 + $0x38] sm:$0xf]
      %v236 = vld [vmem:[%s1 + $0x3c] sm:$0xf]
      %v237 = vld [vmem:[%s1 + $0x40] sm:$0xf]
      %v238 = vld [vmem:[%s1 + $0x44] sm:$0xf]
      %v239 = vld [vmem:[%s1 + $0x48] sm:$0xf]
      %v240 = vld [vmem:[%s1 + $0x4c] sm:$0xf]
      %v241 = vld [vmem:[%s1 + $0x50] sm:$0xf]
      %v242 = vld [vmem:[%s1 + $0x54] sm:$0xf]
      %v243 = vld [vmem:[%s1 + $0x58] sm:$0xf]
      %v244 = vld [vmem:[%s1 + $0x5c] sm:$0xf]
      %v245 = vld [vmem:[%s1 + $0x60] sm:$0xf]
      %v246 = vld [vmem:[%s1 + $0x64] sm:$0xf]
      %v247 = vld [vmem:[%s1 + $0x68] sm:$0xf]
      %v248 = vld [vmem:[%s1 + $0x6c] sm:$0xf]
      %v249 = vld [vmem:[%s1 + $0x70] sm:$0xf]
      %v250 = vld [vmem:[%s1 + $0x74] sm:$0xf]
      %v251 = vld [vmem:[%s1 + $0x78] sm:$0xf]
      %v252 = vld [vmem:[%s1 + $0x7c] sm:$0xf]
      %v253 = vld [vmem:[%s1 + $0x80] sm:$0xf]
      %v254 = vld [vmem:[%s1 + $0x84] sm:$0xf]
      %v255 = vld [vmem:[%s1 + $0x88] sm:$0xf]
      %v256 = vld [vmem:[%s1 + $0x8c] sm:$0xf]
      %v257 = vld [vmem:[%s1 + $0x90] sm:$0xf]
      %v258 = vld [vmem:[%s1 + $0x94] sm:$0xf]
      %v259 = vld [vmem:[%s1 + $0x98] sm:$0xf]
      %v260 = vld [vmem:[%s1 + $0x9c] sm:$0xf]
      %v261 = vld [vmem:[%s1 + $0xa0] sm:$0xf]
      %v262 = vld [vmem:[%s1 + $0xa4] sm:$0xf]
      %v263 = vld [vmem:[%s1 + $0xa8] sm:$0xf]
      %v264 = vld [vmem:[%s1 + $0xac] sm:$0xf]
      %v265 = vld [vmem:[%s1 + $0xb0] sm:$0xf]
      %v266 = vld [vmem:[%s1 + $0xb4] sm:$0xf]
      %v267 = vld [vmem:[%s1 + $0xb8] sm:$0xf]
      %v268 = vld [vmem:[%s1 + $0xbc] sm:$0xf]
      %v269 = vld [vmem:[%s1 + $0xc0] sm:$0xf]
      %v270 = vld [vmem:[%s1 + $0xc4] sm:$0xf]
      %v271 = vld [vmem:[%s1 + $0xc8] sm:$0xf]
      %v272 = vld [vmem:[%s1 + $0xcc] sm:$0xf]
      %v273 = vld [vmem:[%s1 + $0xd0] sm:$0xf]
      %v274 = vld [vmem:[%s1 + $0xd4] sm:$0xf]
      %v275 = vld [vmem:[%s1 + $0xd8] sm:$0xf]
      %v276 = vld [vmem:[%s1 + $0xdc] sm:$0xf]
      %v277 = vld [vmem:[%s1 + $0xe0] sm:$0xf]
      %v278 = vld [vmem:[%s1 + $0xe4] sm:$0xf]
      %v279 = vld [vmem:[%s1 + $0xe8] sm:$0xf]
      %v280 = vld [vmem:[%s1 + $0xec] sm:$0xf]
      %v281 = vld [vmem:[%s1 + $0xf0] sm:$0xf]
      %v282 = vld [vmem:[%s1 + $0xf4] sm:$0xf]
      %v283 = vld [vmem:[%s1 + $0xf8] sm:$0xf]
      %v284 = vld [vmem:[%s1 + $0xfc] sm:$0xf]
      %v285 = vld [vmem:[%s1 + $0x100] sm:$0xf]
      %v286 = vld [vmem:[%s1 + $0x104] sm:$0xf]
      %v287 = vld [vmem:[%s1 + $0x108] sm:$0xf]
      %v288 = vld [vmem:[%s1 + $0x10c] sm:$0xf]
      %v289 = vld [vmem:[%s1 + $0x110] sm:$0xf]
      %v290 = vld [vmem:[%s1 + $0x114] sm:$0xf]
      %v291 = vld [vmem:[%s1 + $0x118] sm:$0xf]
      %v292 = vld [vmem:[%s1 + $0x11c] sm:$0xf]
      %v293 = vld [vmem:[%s1 + $0x120] sm:$0xf]
      %v294 = vld [vmem:[%s1 + $0x124] sm:$0xf]
      %v295 = vld [vmem:[%s1 + $0x128] sm:$0xf]
      %v296 = vld [vmem:[%s1 + $0x12c] sm:$0xf]
      %v297 = vld [vmem:[%s1 + $0x130] sm:$0xf]
      %v298 = vld [vmem:[%s1 + $0x134] sm:$0xf]
      %v299 = vld [vmem:[%s1 + $0x138] sm:$0xf]
      %v300 = vld [vmem:[%s1 + $0x13c] sm:$0xf]
      %v301 = vld [vmem:[%s1 + $0x140] sm:$0xf]
      %v302 = vld [vmem:[%s1 + $0x144] sm:$0xf]
      %v303 = vld [vmem:[%s1 + $0x148] sm:$0xf]
      %v304 = vld [vmem:[%s1 + $0x14c] sm:$0xf]
      %v305 = vld [vmem:[%s1 + $0x150] sm:$0xf]
      %v306 = vld [vmem:[%s1 + $0x154] sm:$0xf]
      %v307 = vld [vmem:[%s1 + $0x158] sm:$0xf]
      %v308 = vld [vmem:[%s1 + $0x15c] sm:$0xf]
      %v309 = vld [vmem:[%s1 + $0x160] sm:$0xf]
      %v310 = vld [vmem:[%s1 + $0x164] sm:$0xf]
      %v311 = vld [vmem:[%s1 + $0x168] sm:$0xf]
      %v312 = vld [vmem:[%s1 + $0x16c] sm:$0xf]
      %v313 = vld [vmem:[%s1 + $0x170] sm:$0xf]
      %v314 = vld [vmem:[%s1 + $0x174] sm:$0xf]
      %v315 = vld [vmem:[%s1 + $0x178] sm:$0xf]
      %v316 = vld [vmem:[%s1 + $0x17c] sm:$0xf]
      %v317 = vld [vmem:[%s1 + $0x180] sm:$0xf]
      %v318 = vld [vmem:[%s1 + $0x184] sm:$0xf]
      %v319 = vld [vmem:[%s1 + $0x188] sm:$0xf]
      %v320 = vld [vmem:[%s1 + $0x18c] sm:$0xf]
      %v321 = vld [vmem:[%s1 + $0x190] sm:$0xf]
      %v322 = vld [vmem:[%s1 + $0x194] sm:$0xf]
      %v323 = vld [vmem:[%s1 + $0x198] sm:$0xf]
      %v324 = vld [vmem:[%s1 + $0x19c] sm:$0xf]
      %v325 = vld [vmem:[%s1 + $0x1a0] sm:$0xf]
      %v326 = vld [vmem:[%s1 + $0x1a4] sm:$0xf]
      %v327 = vld [vmem:[%s1 + $0x1a8] sm:$0xf]
      %v328 = vld [vmem:[%s1 + $0x1ac] sm:$0xf]
      %v329 = vld [vmem:[%s1 + $0x1b0] sm:$0xf]
      %v330 = vld [vmem:[%s1 + $0x1b4] sm:$0xf]
      %v331 = vld [vmem:[%s1 + $0x1b8] sm:$0xf]
      %v332 = vld [vmem:[%s1 + $0x1bc] sm:$0xf]
      %v333 = vld [vmem:[%s1 + $0x1c0] sm:$0xf]
      %v334 = vld [vmem:[%s1 + $0x1c4] sm:$0xf]
      %v335 = vld [vmem:[%s1 + $0x1c8] sm:$0xf]
      %v336 = vld [vmem:[%s1 + $0x1cc] sm:$0xf]
      %v337 = vld [vmem:[%s1 + $0x1d0] sm:$0xf]
      %v338 = vld [vmem:[%s1 + $0x1d4] sm:$0xf]
      %v339 = vld [vmem:[%s1 + $0x1d8] sm:$0xf]
      %v340 = vld [vmem:[%s1 + $0x1dc] sm:$0xf]
      %v341 = vld [vmem:[%s1 + $0x1e0] sm:$0xf]
      %v342 = vld [vmem:[%s1 + $0x1e4] sm:$0xf]
      %v343 = vld [vmem:[%s1 + $0x1e8] sm:$0xf]
      %v344 = vld [vmem:[%s1 + $0x1ec] sm:$0xf]
      %v345 = vld [vmem:[%s1 + $0x1f0] sm:$0xf]
      %v346 = vld [vmem:[%s1 + $0x1f4] sm:$0xf]
      %v347 = vld [vmem:[%s1 + $0x1f8] sm:$0xf]
      %v348 = vld [vmem:[%s1 + $0x1fc] sm:$0xf]
      %v349 = vld [vmem:[%s1 + $0x200] sm:$0xf]
      %v350 = vld [vmem:[%s1 + $0x204] sm:$0xf]
      %v351 = vld [vmem:[%s1 + $0x208] sm:$0xf]
      %v352 = vld [vmem:[%s1 + $0x20c] sm:$0xf]
      %v353 = vld [vmem:[%s1 + $0x210] sm:$0xf]
      %v354 = vld [vmem:[%s1 + $0x214] sm:$0xf]
      %v355 = vld [vmem:[%s1 + $0x218] sm:$0xf]
      %v356 = vld [vmem:[%s1 + $0x21c] sm:$0xf]
      %v357 = vld [vmem:[%s1 + $0x220] sm:$0xf]
      %v358 = vld [vmem:[%s1 + $0x224] sm:$0xf]
      %v359 = vld [vmem:[%s1 + $0x228] sm:$0xf]
      %v360 = vld [vmem:[%s1 + $0x22c] sm:$0xf]
      %v361 = vld [vmem:[%s1 + $0x230] sm:$0xf]
      %v362 = vld [vmem:[%s1 + $0x234] sm:$0xf]
      %v363 = vld [vmem:[%s1 + $0x238] sm:$0xf]
      %v364 = vld [vmem:[%s1 + $0x23c] sm:$0xf]
      %v365 = vld [vmem:[%s2] sm:$0x1]
      %v367 = vperm.slane %v365, 0
      %v434 = vunpack.c.l.b16 %v156
      %v435 = vunpack.c.h.b16 %v156
      %v436 = vunpack.c.l.b16 %v157
      %v437 = vunpack.c.h.b16 %v157
      %v438 = vunpack.c.l.b16 %v158
      %v439 = vunpack.c.h.b16 %v158
      %v440 = vunpack.c.l.b16 %v159
      %v441 = vunpack.c.h.b16 %v159
      %v442 = vunpack.c.l.b16 %v160
      %v443 = vunpack.c.l.b16 %v161
      %v444 = vunpack.c.h.b16 %v161
      %v445 = vunpack.c.l.b16 %v162
      %v446 = vunpack.c.h.b16 %v162
      %v447 = vunpack.c.l.b16 %v163
      %v448 = vunpack.c.h.b16 %v163
      %v449 = vunpack.c.l.b16 %v164
      %v450 = vunpack.c.h.b16 %v164
      %v451 = vunpack.c.l.b16 %v165
      %v452 = vunpack.c.l.b16 %v166
      %v453 = vunpack.c.h.b16 %v166
      %v454 = vunpack.c.l.b16 %v167
      %v455 = vunpack.c.h.b16 %v167
      %v456 = vunpack.c.l.b16 %v168
      %v457 = vunpack.c.h.b16 %v168
      %v458 = vunpack.c.l.b16 %v169
      %v459 = vunpack.c.h.b16 %v169
      %v460 = vunpack.c.l.b16 %v170
      %v461 = vunpack.c.l.b16 %v171
      %v462 = vunpack.c.h.b16 %v171
      %v463 = vunpack.c.l.b16 %v172
      %v464 = vunpack.c.h.b16 %v172
      %v465 = vunpack.c.l.b16 %v173
      %v466 = vunpack.c.h.b16 %v173
      %v467 = vunpack.c.l.b16 %v174
      %v468 = vunpack.c.h.b16 %v174
      %v469 = vunpack.c.l.b16 %v175
      %v470 = vunpack.c.l.b16 %v176
      %v471 = vunpack.c.h.b16 %v176
      %v472 = vunpack.c.l.b16 %v177
      %v473 = vunpack.c.h.b16 %v177
      %v474 = vunpack.c.l.b16 %v178
      %v475 = vunpack.c.h.b16 %v178
      %v476 = vunpack.c.l.b16 %v179
      %v477 = vunpack.c.h.b16 %v179
      %v478 = vunpack.c.l.b16 %v180
      %v479 = vunpack.c.l.b16 %v181
      %v480 = vunpack.c.h.b16 %v181
      %v481 = vunpack.c.l.b16 %v182
      %v482 = vunpack.c.h.b16 %v182
      %v483 = vunpack.c.l.b16 %v183
      %v484 = vunpack.c.h.b16 %v183
      %v485 = vunpack.c.l.b16 %v184
      %v486 = vunpack.c.h.b16 %v184
      %v487 = vunpack.c.l.b16 %v185
      %v488 = vunpack.c.l.b16 %v186
      %v489 = vunpack.c.h.b16 %v186
      %v490 = vunpack.c.l.b16 %v187
      %v491 = vunpack.c.h.b16 %v187
      %v492 = vunpack.c.l.b16 %v188
      %v493 = vunpack.c.h.b16 %v188
      %v494 = vunpack.c.l.b16 %v189
      %v495 = vunpack.c.h.b16 %v189
      %v496 = vunpack.c.l.b16 %v190
      %v497 = vunpack.c.l.b16 %v191
      %v498 = vunpack.c.h.b16 %v191
      %v499 = vunpack.c.l.b16 %v192
      %v500 = vunpack.c.h.b16 %v192
      %v501 = vunpack.c.l.b16 %v193
      %v502 = vunpack.c.h.b16 %v193
      %v503 = vunpack.c.l.b16 %v194
      %v504 = vunpack.c.h.b16 %v194
      %v505 = vunpack.c.l.b16 %v195
      %v506 = vunpack.c.l.b16 %v196
      %v507 = vunpack.c.h.b16 %v196
      %v508 = vunpack.c.l.b16 %v197
      %v509 = vunpack.c.h.b16 %v197
      %v510 = vunpack.c.l.b16 %v198
      %v511 = vunpack.c.h.b16 %v198
      %v512 = vunpack.c.l.b16 %v199
      %v513 = vunpack.c.h.b16 %v199
      %v514 = vunpack.c.l.b16 %v200
      %v515 = vunpack.c.l.b16 %v201
      %v516 = vunpack.c.h.b16 %v201
      %v517 = vunpack.c.l.b16 %v202
      %v518 = vunpack.c.h.b16 %v202
      %v519 = vunpack.c.l.b16 %v203
      %v520 = vunpack.c.h.b16 %v203
      %v521 = vunpack.c.l.b16 %v204
      %v522 = vunpack.c.h.b16 %v204
      %v523 = vunpack.c.l.b16 %v205
      %v524 = vunpack.c.l.b16 %v206
      %v525 = vunpack.c.h.b16 %v206
      %v526 = vunpack.c.l.b16 %v207
      %v527 = vunpack.c.h.b16 %v207
      %v528 = vunpack.c.l.b16 %v208
      %v529 = vunpack.c.h.b16 %v208
      %v530 = vunpack.c.l.b16 %v209
      %v531 = vunpack.c.h.b16 %v209
      %v532 = vunpack.c.l.b16 %v210
      %v533 = vunpack.c.l.b16 %v211
      %v534 = vunpack.c.h.b16 %v211
      %v535 = vunpack.c.l.b16 %v212
      %v536 = vunpack.c.h.b16 %v212
      %v537 = vunpack.c.l.b16 %v213
      %v538 = vunpack.c.h.b16 %v213
      %v539 = vunpack.c.l.b16 %v214
      %v540 = vunpack.c.h.b16 %v214
      %v541 = vunpack.c.l.b16 %v215
      %v542 = vunpack.c.l.b16 %v216
      %v543 = vunpack.c.h.b16 %v216
      %v544 = vunpack.c.l.b16 %v217
      %v545 = vunpack.c.h.b16 %v217
      %v546 = vunpack.c.l.b16 %v218
      %v547 = vunpack.c.h.b16 %v218
      %v548 = vunpack.c.l.b16 %v219
      %v549 = vunpack.c.h.b16 %v219
      %v550 = vunpack.c.l.b16 %v220
      %v551 = vpack.c.b16 %v443, %v434
      %v552 = vpack.c.b16 %v444, %v435
      %v553 = vpack.c.b16 %v445, %v436
      %v554 = vpack.c.b16 %v446, %v437
      %v555 = vpack.c.b16 %v447, %v438
      %v556 = vpack.c.b16 %v448, %v439
      %v557 = vpack.c.b16 %v449, %v440
      %v558 = vpack.c.b16 %v450, %v441
      %v559 = vpack.c.b16 %v451, %v442
      %v560 = vpack.c.b16 %v461, %v452
      %v561 = vpack.c.b16 %v462, %v453
      %v562 = vpack.c.b16 %v463, %v454
      %v563 = vpack.c.b16 %v464, %v455
      %v564 = vpack.c.b16 %v465, %v456
      %v565 = vpack.c.b16 %v466, %v457
      %v566 = vpack.c.b16 %v467, %v458
      %v567 = vpack.c.b16 %v468, %v459
      %v568 = vpack.c.b16 %v469, %v460
      %v569 = vpack.c.b16 %v479, %v470
      %v570 = vpack.c.b16 %v480, %v471
      %v571 = vpack.c.b16 %v481, %v472
      %v572 = vpack.c.b16 %v482, %v473
      %v573 = vpack.c.b16 %v483, %v474
      %v574 = vpack.c.b16 %v484, %v475
      %v575 = vpack.c.b16 %v485, %v476
      %v576 = vpack.c.b16 %v486, %v477
      %v577 = vpack.c.b16 %v487, %v478
      %v578 = vpack.c.b16 %v497, %v488
      %v579 = vpack.c.b16 %v498, %v489
      %v580 = vpack.c.b16 %v499, %v490
      %v581 = vpack.c.b16 %v500, %v491
      %v582 = vpack.c.b16 %v501, %v492
      %v583 = vpack.c.b16 %v502, %v493
      %v584 = vpack.c.b16 %v503, %v494
      %v585 = vpack.c.b16 %v504, %v495
      %v586 = vpack.c.b16 %v505, %v496
      %v587 = vpack.c.b16 %v515, %v506
      %v588 = vpack.c.b16 %v516, %v507
      %v589 = vpack.c.b16 %v517, %v508
      %v590 = vpack.c.b16 %v518, %v509
      %v591 = vpack.c.b16 %v519, %v510
      %v592 = vpack.c.b16 %v520, %v511
      %v593 = vpack.c.b16 %v521, %v512
      %v594 = vpack.c.b16 %v522, %v513
      %v595 = vpack.c.b16 %v523, %v514
      %v596 = vpack.c.b16 %v533, %v524
      %v597 = vpack.c.b16 %v534, %v525
      %v598 = vpack.c.b16 %v535, %v526
      %v599 = vpack.c.b16 %v536, %v527
      %v600 = vpack.c.b16 %v537, %v528
      %v601 = vpack.c.b16 %v538, %v529
      %v602 = vpack.c.b16 %v539, %v530
      %v603 = vpack.c.b16 %v540, %v531
      %v604 = vpack.c.b16 %v541, %v532
      %v605 = vpack.c.b16 %v542, %v542
      %v606 = vpack.c.b16 %v543, %v543
      %v607 = vpack.c.b16 %v544, %v544
      %v608 = vpack.c.b16 %v545, %v545
      %v609 = vpack.c.b16 %v546, %v546
      %v610 = vpack.c.b16 %v547, %v547
      %v611 = vpack.c.b16 %v548, %v548
      %v612 = vpack.c.b16 %v549, %v549
      %v613 = vpack.c.b16 %v550, %v550
      %v821 = vunpack.c.l.b16 %v221
      %v822 = vunpack.c.l.b16 %v222
      %v823 = vunpack.c.l.b16 %v223
      %v824 = vunpack.c.l.b16 %v224
      %v825 = vunpack.c.l.b16 %v225
      %v826 = vunpack.c.l.b16 %v226
      %v827 = vunpack.c.l.b16 %v227
      %v828 = vunpack.c.l.b16 %v228
      %v829 = vunpack.c.l.b16 %v229
      %v830 = vunpack.c.l.b16 %v230
      %v831 = vunpack.c.l.b16 %v231
      %v832 = vunpack.c.l.b16 %v232
      %v833 = vunpack.c.l.b16 %v233
      %v834 = vunpack.c.l.b16 %v234
      %v835 = vunpack.c.l.b16 %v235
      %v836 = vunpack.c.l.b16 %v236
      %v837 = vunpack.c.l.b16 %v237
      %v838 = vunpack.c.l.b16 %v238
      %v839 = vunpack.c.l.b16 %v239
      %v840 = vunpack.c.l.b16 %v240
      %v841 = vunpack.c.l.b16 %v241
      %v842 = vunpack.c.l.b16 %v242
      %v843 = vunpack.c.l.b16 %v243
      %v844 = vunpack.c.l.b16 %v244
      %v845 = vunpack.c.l.b16 %v245
      %v846 = vunpack.c.l.b16 %v246
      %v847 = vunpack.c.l.b16 %v247
      %v848 = vunpack.c.l.b16 %v248
      %v849 = vunpack.c.l.b16 %v249
      %v850 = vunpack.c.l.b16 %v250
      %v851 = vunpack.c.l.b16 %v251
      %v852 = vunpack.c.l.b16 %v252
      %v853 = vunpack.c.l.b16 %v253
      %v854 = vunpack.c.l.b16 %v254
      %v855 = vunpack.c.l.b16 %v255
      %v856 = vunpack.c.l.b16 %v256
      %v857 = vunpack.c.l.b16 %v257
      %v858 = vunpack.c.l.b16 %v258
      %v859 = vunpack.c.l.b16 %v259
      %v860 = vunpack.c.l.b16 %v260
      %v861 = vunpack.c.l.b16 %v261
      %v862 = vunpack.c.l.b16 %v262
      %v863 = vunpack.c.l.b16 %v263
      %v864 = vunpack.c.l.b16 %v264
      %v865 = vunpack.c.l.b16 %v265
      %v866 = vunpack.c.l.b16 %v266
      %v867 = vunpack.c.l.b16 %v267
      %v868 = vunpack.c.l.b16 %v268
      %v869 = vunpack.c.l.b16 %v269
      %v870 = vunpack.c.l.b16 %v270
      %v871 = vunpack.c.l.b16 %v271
      %v872 = vunpack.c.l.b16 %v272
      %v873 = vunpack.c.l.b16 %v273
      %v874 = vunpack.c.l.b16 %v274
      %v875 = vunpack.c.l.b16 %v275
      %v876 = vunpack.c.l.b16 %v276
      %v877 = vunpack.c.l.b16 %v277
      %v878 = vunpack.c.l.b16 %v278
      %v879 = vunpack.c.l.b16 %v279
      %v880 = vunpack.c.l.b16 %v280
      %v881 = vunpack.c.l.b16 %v281
      %v882 = vunpack.c.l.b16 %v282
      %v883 = vunpack.c.l.b16 %v283
      %v884 = vunpack.c.l.b16 %v284
      %v885 = vunpack.c.l.b16 %v285
      %v886 = vunpack.c.l.b16 %v286
      %v887 = vunpack.c.l.b16 %v287
      %v888 = vunpack.c.l.b16 %v288
      %v889 = vunpack.c.l.b16 %v289
      %v890 = vunpack.c.l.b16 %v290
      %v891 = vunpack.c.l.b16 %v291
      %v892 = vunpack.c.l.b16 %v292
      %v893 = vunpack.c.l.b16 %v293
      %v894 = vunpack.c.l.b16 %v294
      %v895 = vunpack.c.l.b16 %v295
      %v896 = vunpack.c.l.b16 %v296
      %v897 = vunpack.c.l.b16 %v297
      %v898 = vunpack.c.l.b16 %v298
      %v899 = vunpack.c.l.b16 %v299
      %v900 = vunpack.c.l.b16 %v300
      %v901 = vunpack.c.l.b16 %v301
      %v902 = vunpack.c.l.b16 %v302
      %v903 = vunpack.c.l.b16 %v303
      %v904 = vunpack.c.l.b16 %v304
      %v905 = vunpack.c.l.b16 %v305
      %v906 = vunpack.c.l.b16 %v306
      %v907 = vunpack.c.l.b16 %v307
      %v908 = vunpack.c.l.b16 %v308
      %v909 = vunpack.c.l.b16 %v309
      %v910 = vunpack.c.l.b16 %v310
      %v911 = vunpack.c.l.b16 %v311
      %v912 = vunpack.c.l.b16 %v312
      %v913 = vunpack.c.l.b16 %v313
      %v914 = vunpack.c.l.b16 %v314
      %v915 = vunpack.c.l.b16 %v315
      %v916 = vunpack.c.l.b16 %v316
      %v917 = vunpack.c.l.b16 %v317
      %v918 = vunpack.c.l.b16 %v318
      %v919 = vunpack.c.l.b16 %v319
      %v920 = vunpack.c.l.b16 %v320
      %v921 = vunpack.c.l.b16 %v321
      %v922 = vunpack.c.l.b16 %v322
      %v923 = vunpack.c.l.b16 %v323
      %v924 = vunpack.c.l.b16 %v324
      %v925 = vunpack.c.l.b16 %v325
      %v926 = vunpack.c.l.b16 %v326
      %v927 = vunpack.c.l.b16 %v327
      %v928 = vunpack.c.l.b16 %v328
      %v929 = vunpack.c.l.b16 %v329
      %v930 = vunpack.c.l.b16 %v330
      %v931 = vunpack.c.l.b16 %v331
      %v932 = vunpack.c.l.b16 %v332
      %v933 = vunpack.c.l.b16 %v333
      %v934 = vunpack.c.l.b16 %v334
      %v935 = vunpack.c.l.b16 %v335
      %v936 = vunpack.c.l.b16 %v336
      %v937 = vunpack.c.l.b16 %v337
      %v938 = vunpack.c.l.b16 %v338
      %v939 = vunpack.c.l.b16 %v339
      %v940 = vunpack.c.l.b16 %v340
      %v941 = vunpack.c.l.b16 %v341
      %v942 = vunpack.c.l.b16 %v342
      %v943 = vunpack.c.l.b16 %v343
      %v944 = vunpack.c.l.b16 %v344
      %v945 = vunpack.c.l.b16 %v345
      %v946 = vunpack.c.l.b16 %v346
      %v947 = vunpack.c.l.b16 %v347
      %v948 = vunpack.c.l.b16 %v348
      %v949 = vunpack.c.l.b16 %v349
      %v950 = vunpack.c.l.b16 %v350
      %v951 = vunpack.c.l.b16 %v351
      %v952 = vunpack.c.l.b16 %v352
      %v953 = vunpack.c.l.b16 %v353
      %v954 = vunpack.c.l.b16 %v354
      %v955 = vunpack.c.l.b16 %v355
      %v956 = vunpack.c.l.b16 %v356
      %v957 = vunpack.c.l.b16 %v357
      %v958 = vunpack.c.l.b16 %v358
      %v959 = vunpack.c.l.b16 %v359
      %v960 = vunpack.c.l.b16 %v360
      %v961 = vunpack.c.l.b16 %v361
      %v962 = vunpack.c.l.b16 %v362
      %v963 = vunpack.c.l.b16 %v363
      %v964 = vunpack.c.l.b16 %v364
      %v965 = vpack.c.b16 %v822, %v821
      %v966 = vpack.c.b16 %v824, %v823
      %v967 = vpack.c.b16 %v826, %v825
      %v968 = vpack.c.b16 %v828, %v827
      %v969 = vpack.c.b16 %v830, %v829
      %v970 = vpack.c.b16 %v832, %v831
      %v971 = vpack.c.b16 %v834, %v833
      %v972 = vpack.c.b16 %v836, %v835
      %v973 = vpack.c.b16 %v838, %v837
      %v974 = vpack.c.b16 %v840, %v839
      %v975 = vpack.c.b16 %v842, %v841
      %v976 = vpack.c.b16 %v844, %v843
      %v977 = vpack.c.b16 %v846, %v845
      %v978 = vpack.c.b16 %v848, %v847
      %v979 = vpack.c.b16 %v850, %v849
      %v980 = vpack.c.b16 %v852, %v851
      %v981 = vpack.c.b16 %v854, %v853
      %v982 = vpack.c.b16 %v856, %v855
      %v983 = vpack.c.b16 %v858, %v857
      %v984 = vpack.c.b16 %v860, %v859
      %v985 = vpack.c.b16 %v862, %v861
      %v986 = vpack.c.b16 %v864, %v863
      %v987 = vpack.c.b16 %v866, %v865
      %v988 = vpack.c.b16 %v868, %v867
      %v989 = vpack.c.b16 %v870, %v869
      %v990 = vpack.c.b16 %v872, %v871
      %v991 = vpack.c.b16 %v874, %v873
      %v992 = vpack.c.b16 %v876, %v875
      %v993 = vpack.c.b16 %v878, %v877
      %v994 = vpack.c.b16 %v880, %v879
      %v995 = vpack.c.b16 %v882, %v881
      %v996 = vpack.c.b16 %v884, %v883
      %v997 = vpack.c.b16 %v886, %v885
      %v998 = vpack.c.b16 %v888, %v887
      %v999 = vpack.c.b16 %v890, %v889
      %v1000 = vpack.c.b16 %v892, %v891
      %v1001 = vpack.c.b16 %v894, %v893
      %v1002 = vpack.c.b16 %v896, %v895
      %v1003 = vpack.c.b16 %v898, %v897
      %v1004 = vpack.c.b16 %v900, %v899
      %v1005 = vpack.c.b16 %v902, %v901
      %v1006 = vpack.c.b16 %v904, %v903
      %v1007 = vpack.c.b16 %v906, %v905
      %v1008 = vpack.c.b16 %v908, %v907
      %v1009 = vpack.c.b16 %v910, %v909
      %v1010 = vpack.c.b16 %v912, %v911
      %v1011 = vpack.c.b16 %v914, %v913
      %v1012 = vpack.c.b16 %v916, %v915
      %v1013 = vpack.c.b16 %v918, %v917
      %v1014 = vpack.c.b16 %v920, %v919
      %v1015 = vpack.c.b16 %v922, %v921
      %v1016 = vpack.c.b16 %v924, %v923
      %v1017 = vpack.c.b16 %v926, %v925
      %v1018 = vpack.c.b16 %v928, %v927
      %v1019 = vpack.c.b16 %v930, %v929
      %v1020 = vpack.c.b16 %v932, %v931
      %v1021 = vpack.c.b16 %v934, %v933
      %v1022 = vpack.c.b16 %v936, %v935
      %v1023 = vpack.c.b16 %v938, %v937
      %v1024 = vpack.c.b16 %v940, %v939
      %v1025 = vpack.c.b16 %v942, %v941
      %v1026 = vpack.c.b16 %v944, %v943
      %v1027 = vpack.c.b16 %v946, %v945
      %v1028 = vpack.c.b16 %v948, %v947
      %v1029 = vpack.c.b16 %v950, %v949
      %v1030 = vpack.c.b16 %v952, %v951
      %v1031 = vpack.c.b16 %v954, %v953
      %v1032 = vpack.c.b16 %v956, %v955
      %v1033 = vpack.c.b16 %v958, %v957
      %v1034 = vpack.c.b16 %v960, %v959
      %v1035 = vpack.c.b16 %v962, %v961
      %v1036 = vpack.c.b16 %v964, %v963
      %1109 = vmatpush.bf16.msra.mxu0 %v972
      %1110 = vmatpush.bf16.msra.mxu0 %v971
      %1111 = vmatpush.bf16.msra.mxu0 %v970
      %1112 = vmatpush.bf16.msra.mxu0 %v969
      %1113 = vmatpush.bf16.msra.mxu0 %v968
      %1114 = vmatpush.bf16.msra.mxu0 %v967
      %1115 = vmatpush.bf16.msra.mxu0 %v966
      %1116 = vmatpush.bf16.msra.mxu0 %v965
      %1117 = vmatmul.bf16.gmra.mxu0 %v551
      %v1118 = vpop.f32.mrf.mxu0
      %v1119 = vadd.f32 %v367, %v1118
      %v1120 = vpop.f32.mrf.mxu0
      %v1121 = vadd.f32 %v367, %v1120
      %1122 = vmatmul.bf16.gmra.mxu0 %v560
      %v1123 = vpop.f32.mrf.mxu0
      %v1124 = vadd.f32 %v367, %v1123
      %v1125 = vpop.f32.mrf.mxu0
      %v1126 = vadd.f32 %v367, %v1125
      %1127 = vmatmul.bf16.gmra.mxu0 %v569
      %v1128 = vpop.f32.mrf.mxu0
      %v1129 = vadd.f32 %v367, %v1128
      %v1130 = vpop.f32.mrf.mxu0
      %v1131 = vadd.f32 %v367, %v1130
      %1132 = vmatmul.bf16.gmra.mxu0 %v578
      %v1133 = vpop.f32.mrf.mxu0
      %v1134 = vadd.f32 %v367, %v1133
      %v1135 = vpop.f32.mrf.mxu0
      %v1136 = vadd.f32 %v367, %v1135
      %1137 = vmatmul.bf16.gmra.mxu0 %v587
      %v1138 = vpop.f32.mrf.mxu0
      %v1139 = vadd.f32 %v367, %v1138
      %v1140 = vpop.f32.mrf.mxu0
      %v1141 = vadd.f32 %v367, %v1140
      %1142 = vmatmul.bf16.gmra.mxu0 %v596
      %v1143 = vpop.f32.mrf.mxu0
      %v1144 = vadd.f32 %v367, %v1143
      %v1145 = vpop.f32.mrf.mxu0
      %v1146 = vadd.f32 %v367, %v1145
      %1147 = vmatmul.bf16.gmra.mxu0 %v605
      %v1148 = vpop.f32.mrf.mxu0
      %v1149 = vadd.f32 %v367, %v1148
      %v1150 = vpop.f32.mrf.mxu0
      %1151 = vdwg.mxu0
      %1152 = vmatpush.bf16.msra.mxu0 %v980
      %1153 = vmatpush.bf16.msra.mxu0 %v979
      %1154 = vmatpush.bf16.msra.mxu0 %v978
      %1155 = vmatpush.bf16.msra.mxu0 %v977
      %1156 = vmatpush.bf16.msra.mxu0 %v976
      %1157 = vmatpush.bf16.msra.mxu0 %v975
      %1158 = vmatpush.bf16.msra.mxu0 %v974
      %1159 = vmatpush.bf16.msra.mxu0 %v973
      %1160 = vmatmul.bf16.gmra.mxu0 %v552
      %v1161 = vpop.f32.mrf.mxu0
      %v1162 = vadd.f32 %v1119, %v1161
      %v1163 = vpop.f32.mrf.mxu0
      %v1164 = vadd.f32 %v1121, %v1163
      %1165 = vmatmul.bf16.gmra.mxu0 %v561
      %v1166 = vpop.f32.mrf.mxu0
      %v1167 = vadd.f32 %v1124, %v1166
      %v1168 = vpop.f32.mrf.mxu0
      %v1169 = vadd.f32 %v1126, %v1168
      %1170 = vmatmul.bf16.gmra.mxu0 %v570
      %v1171 = vpop.f32.mrf.mxu0
      %v1172 = vadd.f32 %v1129, %v1171
      %v1173 = vpop.f32.mrf.mxu0
      %v1174 = vadd.f32 %v1131, %v1173
      %1175 = vmatmul.bf16.gmra.mxu0 %v579
      %v1176 = vpop.f32.mrf.mxu0
      %v1177 = vadd.f32 %v1134, %v1176
      %v1178 = vpop.f32.mrf.mxu0
      %v1179 = vadd.f32 %v1136, %v1178
      %1180 = vmatmul.bf16.gmra.mxu0 %v588
      %v1181 = vpop.f32.mrf.mxu0
      %v1182 = vadd.f32 %v1139, %v1181
      %v1183 = vpop.f32.mrf.mxu0
      %v1184 = vadd.f32 %v1141, %v1183
      %1185 = vmatmul.bf16.gmra.mxu0 %v597
      %v1186 = vpop.f32.mrf.mxu0
      %v1187 = vadd.f32 %v1144, %v1186
      %v1188 = vpop.f32.mrf.mxu0
      %v1189 = vadd.f32 %v1146, %v1188
      %1190 = vmatmul.bf16.gmra.mxu0 %v606
      %v1191 = vpop.f32.mrf.mxu0
      %v1192 = vadd.f32 %v1149, %v1191
      %v1193 = vpop.f32.mrf.mxu0
      %1194 = vdwg.mxu0
      %1195 = vmatpush.bf16.msra.mxu0 %v988
      %1196 = vmatpush.bf16.msra.mxu0 %v987
      %1197 = vmatpush.bf16.msra.mxu0 %v986
      %1198 = vmatpush.bf16.msra.mxu0 %v985
      %1199 = vmatpush.bf16.msra.mxu0 %v984
      %1200 = vmatpush.bf16.msra.mxu0 %v983
      %1201 = vmatpush.bf16.msra.mxu0 %v982
      %1202 = vmatpush.bf16.msra.mxu0 %v981
      %1203 = vmatmul.bf16.gmra.mxu0 %v553
      %v1204 = vpop.f32.mrf.mxu0
      %v1205 = vadd.f32 %v1162, %v1204
      %v1206 = vpop.f32.mrf.mxu0
      %v1207 = vadd.f32 %v1164, %v1206
      %1208 = vmatmul.bf16.gmra.mxu0 %v562
      %v1209 = vpop.f32.mrf.mxu0
      %v1210 = vadd.f32 %v1167, %v1209
      %v1211 = vpop.f32.mrf.mxu0
      %v1212 = vadd.f32 %v1169, %v1211
      %1213 = vmatmul.bf16.gmra.mxu0 %v571
      %v1214 = vpop.f32.mrf.mxu0
      %v1215 = vadd.f32 %v1172, %v1214
      %v1216 = vpop.f32.mrf.mxu0
      %v1217 = vadd.f32 %v1174, %v1216
      %1218 = vmatmul.bf16.gmra.mxu0 %v580
      %v1219 = vpop.f32.mrf.mxu0
      %v1220 = vadd.f32 %v1177, %v1219
      %v1221 = vpop.f32.mrf.mxu0
      %v1222 = vadd.f32 %v1179, %v1221
      %1223 = vmatmul.bf16.gmra.mxu0 %v589
      %v1224 = vpop.f32.mrf.mxu0
      %v1225 = vadd.f32 %v1182, %v1224
      %v1226 = vpop.f32.mrf.mxu0
      %v1227 = vadd.f32 %v1184, %v1226
      %1228 = vmatmul.bf16.gmra.mxu0 %v598
      %v1229 = vpop.f32.mrf.mxu0
      %v1230 = vadd.f32 %v1187, %v1229
      %v1231 = vpop.f32.mrf.mxu0
      %v1232 = vadd.f32 %v1189, %v1231
      %1233 = vmatmul.bf16.gmra.mxu0 %v607
      %v1234 = vpop.f32.mrf.mxu0
      %v1235 = vadd.f32 %v1192, %v1234
      %v1236 = vpop.f32.mrf.mxu0
      %1237 = vdwg.mxu0
      %1238 = vmatpush.bf16.msra.mxu0 %v996
      %1239 = vmatpush.bf16.msra.mxu0 %v995
      %1240 = vmatpush.bf16.msra.mxu0 %v994
      %1241 = vmatpush.bf16.msra.mxu0 %v993
      %1242 = vmatpush.bf16.msra.mxu0 %v992
      %1243 = vmatpush.bf16.msra.mxu0 %v991
      %1244 = vmatpush.bf16.msra.mxu0 %v990
      %1245 = vmatpush.bf16.msra.mxu0 %v989
      %1246 = vmatmul.bf16.gmra.mxu0 %v554
      %v1247 = vpop.f32.mrf.mxu0
      %v1248 = vadd.f32 %v1205, %v1247
      %v1249 = vpop.f32.mrf.mxu0
      %v1250 = vadd.f32 %v1207, %v1249
      %1251 = vmatmul.bf16.gmra.mxu0 %v563
      %v1252 = vpop.f32.mrf.mxu0
      %v1253 = vadd.f32 %v1210, %v1252
      %v1254 = vpop.f32.mrf.mxu0
      %v1255 = vadd.f32 %v1212, %v1254
      %1256 = vmatmul.bf16.gmra.mxu0 %v572
      %v1257 = vpop.f32.mrf.mxu0
      %v1258 = vadd.f32 %v1215, %v1257
      %v1259 = vpop.f32.mrf.mxu0
      %v1260 = vadd.f32 %v1217, %v1259
      %1261 = vmatmul.bf16.gmra.mxu0 %v581
      %v1262 = vpop.f32.mrf.mxu0
      %v1263 = vadd.f32 %v1220, %v1262
      %v1264 = vpop.f32.mrf.mxu0
      %v1265 = vadd.f32 %v1222, %v1264
      %1266 = vmatmul.bf16.gmra.mxu0 %v590
      %v1267 = vpop.f32.mrf.mxu0
      %v1268 = vadd.f32 %v1225, %v1267
      %v1269 = vpop.f32.mrf.mxu0
      %v1270 = vadd.f32 %v1227, %v1269
      %1271 = vmatmul.bf16.gmra.mxu0 %v599
      %v1272 = vpop.f32.mrf.mxu0
      %v1273 = vadd.f32 %v1230, %v1272
      %v1274 = vpop.f32.mrf.mxu0
      %v1275 = vadd.f32 %v1232, %v1274
      %1276 = vmatmul.bf16.gmra.mxu0 %v608
      %v1277 = vpop.f32.mrf.mxu0
      %v1278 = vadd.f32 %v1235, %v1277
      %v1279 = vpop.f32.mrf.mxu0
      %1280 = vdwg.mxu0
      %1281 = vmatpush.bf16.msra.mxu0 %v1004
      %1282 = vmatpush.bf16.msra.mxu0 %v1003
      %1283 = vmatpush.bf16.msra.mxu0 %v1002
      %1284 = vmatpush.bf16.msra.mxu0 %v1001
      %1285 = vmatpush.bf16.msra.mxu0 %v1000
      %1286 = vmatpush.bf16.msra.mxu0 %v999
      %1287 = vmatpush.bf16.msra.mxu0 %v998
      %1288 = vmatpush.bf16.msra.mxu0 %v997
      %1289 = vmatmul.bf16.gmra.mxu0 %v555
      %v1290 = vpop.f32.mrf.mxu0
      %v1291 = vadd.f32 %v1248, %v1290
      %v1292 = vpop.f32.mrf.mxu0
      %v1293 = vadd.f32 %v1250, %v1292
      %1294 = vmatmul.bf16.gmra.mxu0 %v564
      %v1295 = vpop.f32.mrf.mxu0
      %v1296 = vadd.f32 %v1253, %v1295
      %v1297 = vpop.f32.mrf.mxu0
      %v1298 = vadd.f32 %v1255, %v1297
      %1299 = vmatmul.bf16.gmra.mxu0 %v573
      %v1300 = vpop.f32.mrf.mxu0
      %v1301 = vadd.f32 %v1258, %v1300
      %v1302 = vpop.f32.mrf.mxu0
      %v1303 = vadd.f32 %v1260, %v1302
      %1304 = vmatmul.bf16.gmra.mxu0 %v582
      %v1305 = vpop.f32.mrf.mxu0
      %v1306 = vadd.f32 %v1263, %v1305
      %v1307 = vpop.f32.mrf.mxu0
      %v1308 = vadd.f32 %v1265, %v1307
      %1309 = vmatmul.bf16.gmra.mxu0 %v591
      %v1310 = vpop.f32.mrf.mxu0
      %v1311 = vadd.f32 %v1268, %v1310
      %v1312 = vpop.f32.mrf.mxu0
      %v1313 = vadd.f32 %v1270, %v1312
      %1314 = vmatmul.bf16.gmra.mxu0 %v600
      %v1315 = vpop.f32.mrf.mxu0
      %v1316 = vadd.f32 %v1273, %v1315
      %v1317 = vpop.f32.mrf.mxu0
      %v1318 = vadd.f32 %v1275, %v1317
      %1319 = vmatmul.bf16.gmra.mxu0 %v609
      %v1320 = vpop.f32.mrf.mxu0
      %v1321 = vadd.f32 %v1278, %v1320
      %v1322 = vpop.f32.mrf.mxu0
      %1323 = vdwg.mxu0
      %1324 = vmatpush.bf16.msra.mxu0 %v1012
      %1325 = vmatpush.bf16.msra.mxu0 %v1011
      %1326 = vmatpush.bf16.msra.mxu0 %v1010
      %1327 = vmatpush.bf16.msra.mxu0 %v1009
      %1328 = vmatpush.bf16.msra.mxu0 %v1008
      %1329 = vmatpush.bf16.msra.mxu0 %v1007
      %1330 = vmatpush.bf16.msra.mxu0 %v1006
      %1331 = vmatpush.bf16.msra.mxu0 %v1005
      %1332 = vmatmul.bf16.gmra.mxu0 %v556
      %v1333 = vpop.f32.mrf.mxu0
      %v1334 = vadd.f32 %v1291, %v1333
      %v1335 = vpop.f32.mrf.mxu0
      %v1336 = vadd.f32 %v1293, %v1335
      %1337 = vmatmul.bf16.gmra.mxu0 %v565
      %v1338 = vpop.f32.mrf.mxu0
      %v1339 = vadd.f32 %v1296, %v1338
      %v1340 = vpop.f32.mrf.mxu0
      %v1341 = vadd.f32 %v1298, %v1340
      %1342 = vmatmul.bf16.gmra.mxu0 %v574
      %v1343 = vpop.f32.mrf.mxu0
      %v1344 = vadd.f32 %v1301, %v1343
      %v1345 = vpop.f32.mrf.mxu0
      %v1346 = vadd.f32 %v1303, %v1345
      %1347 = vmatmul.bf16.gmra.mxu0 %v583
      %v1348 = vpop.f32.mrf.mxu0
      %v1349 = vadd.f32 %v1306, %v1348
      %v1350 = vpop.f32.mrf.mxu0
      %v1351 = vadd.f32 %v1308, %v1350
      %1352 = vmatmul.bf16.gmra.mxu0 %v592
      %v1353 = vpop.f32.mrf.mxu0
      %v1354 = vadd.f32 %v1311, %v1353
      %v1355 = vpop.f32.mrf.mxu0
      %v1356 = vadd.f32 %v1313, %v1355
      %1357 = vmatmul.bf16.gmra.mxu0 %v601
      %v1358 = vpop.f32.mrf.mxu0
      %v1359 = vadd.f32 %v1316, %v1358
      %v1360 = vpop.f32.mrf.mxu0
      %v1361 = vadd.f32 %v1318, %v1360
      %1362 = vmatmul.bf16.gmra.mxu0 %v610
      %v1363 = vpop.f32.mrf.mxu0
      %v1364 = vadd.f32 %v1321, %v1363
      %v1365 = vpop.f32.mrf.mxu0
      %1366 = vdwg.mxu0
      %1367 = vmatpush.bf16.msra.mxu0 %v1020
      %1368 = vmatpush.bf16.msra.mxu0 %v1019
      %1369 = vmatpush.bf16.msra.mxu0 %v1018
      %1370 = vmatpush.bf16.msra.mxu0 %v1017
      %1371 = vmatpush.bf16.msra.mxu0 %v1016
      %1372 = vmatpush.bf16.msra.mxu0 %v1015
      %1373 = vmatpush.bf16.msra.mxu0 %v1014
      %1374 = vmatpush.bf16.msra.mxu0 %v1013
      %1375 = vmatmul.bf16.gmra.mxu0 %v557
      %v1376 = vpop.f32.mrf.mxu0
      %v1377 = vadd.f32 %v1334, %v1376
      %v1378 = vpop.f32.mrf.mxu0
      %v1379 = vadd.f32 %v1336, %v1378
      %1380 = vmatmul.bf16.gmra.mxu0 %v566
      %v1381 = vpop.f32.mrf.mxu0
      %v1382 = vadd.f32 %v1339, %v1381
      %v1383 = vpop.f32.mrf.mxu0
      %v1384 = vadd.f32 %v1341, %v1383
      %1385 = vmatmul.bf16.gmra.mxu0 %v575
      %v1386 = vpop.f32.mrf.mxu0
      %v1387 = vadd.f32 %v1344, %v1386
      %v1388 = vpop.f32.mrf.mxu0
      %v1389 = vadd.f32 %v1346, %v1388
      %1390 = vmatmul.bf16.gmra.mxu0 %v584
      %v1391 = vpop.f32.mrf.mxu0
      %v1392 = vadd.f32 %v1349, %v1391
      %v1393 = vpop.f32.mrf.mxu0
      %v1394 = vadd.f32 %v1351, %v1393
      %1395 = vmatmul.bf16.gmra.mxu0 %v593
      %v1396 = vpop.f32.mrf.mxu0
      %v1397 = vadd.f32 %v1354, %v1396
      %v1398 = vpop.f32.mrf.mxu0
      %v1399 = vadd.f32 %v1356, %v1398
      %1400 = vmatmul.bf16.gmra.mxu0 %v602
      %v1401 = vpop.f32.mrf.mxu0
      %v1402 = vadd.f32 %v1359, %v1401
      %v1403 = vpop.f32.mrf.mxu0
      %v1404 = vadd.f32 %v1361, %v1403
      %1405 = vmatmul.bf16.gmra.mxu0 %v611
      %v1406 = vpop.f32.mrf.mxu0
      %v1407 = vadd.f32 %v1364, %v1406
      %v1408 = vpop.f32.mrf.mxu0
      %1409 = vdwg.mxu0
      %1410 = vmatpush.bf16.msra.mxu0 %v1028
      %1411 = vmatpush.bf16.msra.mxu0 %v1027
      %1412 = vmatpush.bf16.msra.mxu0 %v1026
      %1413 = vmatpush.bf16.msra.mxu0 %v1025
      %1414 = vmatpush.bf16.msra.mxu0 %v1024
      %1415 = vmatpush.bf16.msra.mxu0 %v1023
      %1416 = vmatpush.bf16.msra.mxu0 %v1022
      %1417 = vmatpush.bf16.msra.mxu0 %v1021
      %1418 = vmatmul.bf16.gmra.mxu0 %v558
      %v1419 = vpop.f32.mrf.mxu0
      %v1420 = vadd.f32 %v1377, %v1419
      %v1421 = vpop.f32.mrf.mxu0
      %v1422 = vadd.f32 %v1379, %v1421
      %1423 = vmatmul.bf16.gmra.mxu0 %v567
      %v1424 = vpop.f32.mrf.mxu0
      %v1425 = vadd.f32 %v1382, %v1424
      %v1426 = vpop.f32.mrf.mxu0
      %v1427 = vadd.f32 %v1384, %v1426
      %1428 = vmatmul.bf16.gmra.mxu0 %v576
      %v1429 = vpop.f32.mrf.mxu0
      %v1430 = vadd.f32 %v1387, %v1429
      %v1431 = vpop.f32.mrf.mxu0
      %v1432 = vadd.f32 %v1389, %v1431
      %1433 = vmatmul.bf16.gmra.mxu0 %v585
      %v1434 = vpop.f32.mrf.mxu0
      %v1435 = vadd.f32 %v1392, %v1434
      %v1436 = vpop.f32.mrf.mxu0
      %v1437 = vadd.f32 %v1394, %v1436
      %1438 = vmatmul.bf16.gmra.mxu0 %v594
      %v1439 = vpop.f32.mrf.mxu0
      %v1440 = vadd.f32 %v1397, %v1439
      %v1441 = vpop.f32.mrf.mxu0
      %v1442 = vadd.f32 %v1399, %v1441
      %1443 = vmatmul.bf16.gmra.mxu0 %v603
      %v1444 = vpop.f32.mrf.mxu0
      %v1445 = vadd.f32 %v1402, %v1444
      %v1446 = vpop.f32.mrf.mxu0
      %v1447 = vadd.f32 %v1404, %v1446
      %1448 = vmatmul.bf16.gmra.mxu0 %v612
      %v1449 = vpop.f32.mrf.mxu0
      %v1450 = vadd.f32 %v1407, %v1449
      %v1451 = vpop.f32.mrf.mxu0
      %1452 = vdwg.mxu0
      %1453 = vmatpush.bf16.msra.mxu0 %v1036
      %1454 = vmatpush.bf16.msra.mxu0 %v1035
      %1455 = vmatpush.bf16.msra.mxu0 %v1034
      %1456 = vmatpush.bf16.msra.mxu0 %v1033
      %1457 = vmatpush.bf16.msra.mxu0 %v1032
      %1458 = vmatpush.bf16.msra.mxu0 %v1031
      %1459 = vmatpush.bf16.msra.mxu0 %v1030
      %1460 = vmatpush.bf16.msra.mxu0 %v1029
      %1461 = vmatmul.bf16.gmra.mxu0 %v559
      %v1462 = vpop.f32.mrf.mxu0
      %v1463 = vadd.f32 %v1420, %v1462
      %v1464 = vpop.f32.mrf.mxu0
      %v1465 = vadd.f32 %v1422, %v1464
      %1466 = vmatmul.bf16.gmra.mxu0 %v568
      %v1467 = vpop.f32.mrf.mxu0
      %v1468 = vadd.f32 %v1425, %v1467
      %v1469 = vpop.f32.mrf.mxu0
      %v1470 = vadd.f32 %v1427, %v1469
      %1471 = vmatmul.bf16.gmra.mxu0 %v577
      %v1472 = vpop.f32.mrf.mxu0
      %v1473 = vadd.f32 %v1430, %v1472
      %v1474 = vpop.f32.mrf.mxu0
      %v1475 = vadd.f32 %v1432, %v1474
      %1476 = vmatmul.bf16.gmra.mxu0 %v586
      %v1477 = vpop.f32.mrf.mxu0
      %v1478 = vadd.f32 %v1435, %v1477
      %v1479 = vpop.f32.mrf.mxu0
      %v1480 = vadd.f32 %v1437, %v1479
      %1481 = vmatmul.bf16.gmra.mxu0 %v595
      %v1482 = vpop.f32.mrf.mxu0
      %v1483 = vadd.f32 %v1440, %v1482
      %v1484 = vpop.f32.mrf.mxu0
      %v1485 = vadd.f32 %v1442, %v1484
      %1486 = vmatmul.bf16.gmra.mxu0 %v604
      %v1487 = vpop.f32.mrf.mxu0
      %v1488 = vadd.f32 %v1445, %v1487
      %v1489 = vpop.f32.mrf.mxu0
      %v1490 = vadd.f32 %v1447, %v1489
      %1491 = vmatmul.bf16.gmra.mxu0 %v613
      %v1492 = vpop.f32.mrf.mxu0
      %v1493 = vadd.f32 %v1450, %v1492
      %v1494 = vpop.f32.mrf.mxu0
      %1495 = vdwg.mxu0
      %v1496 = vmax.f32 %v1463, 0.0
      %v1497 = vmax.f32 %v1465, 0.0
      %v1498 = vmax.f32 %v1468, 0.0
      %v1499 = vmax.f32 %v1470, 0.0
      %v1500 = vmax.f32 %v1473, 0.0
      %v1501 = vmax.f32 %v1475, 0.0
      %v1502 = vmax.f32 %v1478, 0.0
      %v1503 = vmax.f32 %v1480, 0.0
      %v1504 = vmax.f32 %v1483, 0.0
      %v1505 = vmax.f32 %v1485, 0.0
      %v1506 = vmax.f32 %v1488, 0.0
      %v1507 = vmax.f32 %v1490, 0.0
      %v1508 = vmax.f32 %v1493, 0.0
      %v1509 = vpack.c.bf16 %v1496, %v1496
      %v1510 = vpack.c.bf16 %v1497, %v1497
      %v1511 = vpack.c.bf16 %v1498, %v1498
      %v1512 = vpack.c.bf16 %v1499, %v1499
      %v1513 = vpack.c.bf16 %v1500, %v1500
      %v1514 = vpack.c.bf16 %v1501, %v1501
      %v1515 = vpack.c.bf16 %v1502, %v1502
      %v1516 = vpack.c.bf16 %v1503, %v1503
      %v1517 = vpack.c.bf16 %v1504, %v1504
      %v1518 = vpack.c.bf16 %v1505, %v1505
      %v1519 = vpack.c.bf16 %v1506, %v1506
      %v1520 = vpack.c.bf16 %v1507, %v1507
      %v1521 = vpack.c.bf16 %v1508, %v1508
      %p1522 = scmp.eq.s32.totalorder %s14, 0
      // Predicated region
      $region33: #{shape_classifier_forward.5} parent=31 // pred_check
        %p1523 = pneg %p1522
      $region34: #{shape_classifier_forward.5} parent=31 // pred_check_branch
        %1525 = sbr.rel (%p1523) target = $region36
      $region35: #{shape_classifier_forward.5} parent=31 // pred_region
        %1526 = vst [vmem:[%s3] sm:$0xf] %v1509
        %1527 = vst [vmem:[%s3 + $0x4] sm:$0xf] %v1510
        %1528 = vst [vmem:[%s3 + $0x8] sm:$0xf] %v1511
        %1529 = vst [vmem:[%s3 + $0xc] sm:$0xf] %v1512
        %1530 = vst [vmem:[%s3 + $0x10] sm:$0xf] %v1513
        %1531 = vst [vmem:[%s3 + $0x14] sm:$0xf] %v1514
        %1532 = vst [vmem:[%s3 + $0x18] sm:$0xf] %v1515
        %1533 = vst [vmem:[%s3 + $0x1c] sm:$0xf] %v1516
        %1534 = vst [vmem:[%s3 + $0x20] sm:$0xf] %v1517
        %1535 = vst [vmem:[%s3 + $0x24] sm:$0xf] %v1518
        %1536 = vst [vmem:[%s3 + $0x28] sm:$0xf] %v1519
        %1537 = vst [vmem:[%s3 + $0x2c] sm:$0xf] %v1520
        %1538 = vst [vmem:[%s3 + $0x30] sm:$0x1] %v1521
      $region36: #{shape_classifier_forward.5} parent=31 // pred_fallthru
        _
      %p1539 = scmp.ne.s32.totalorder %s14, 0
      // Predicated region
      $region37: #{shape_classifier_forward.5} parent=31 // pred_check
        %p1540 = pneg %p1539
      $region38: #{shape_classifier_forward.5} parent=31 // pred_check_branch
        %1542 = sbr.rel (%p1540) target = $region40
      $region39: #{shape_classifier_forward.5} parent=31 // pred_region
        %v1543 = vld [vmem:[%s3] sm:$0xf]
        %v1544 = vld [vmem:[%s3 + $0x4] sm:$0xf]
        %v1545 = vld [vmem:[%s3 + $0x8] sm:$0xf]
        %v1546 = vld [vmem:[%s3 + $0xc] sm:$0xf]
        %v1547 = vld [vmem:[%s3 + $0x10] sm:$0xf]
        %v1548 = vld [vmem:[%s3 + $0x14] sm:$0xf]
        %v1549 = vld [vmem:[%s3 + $0x18] sm:$0xf]
        %v1550 = vld [vmem:[%s3 + $0x1c] sm:$0xf]
        %v1551 = vld [vmem:[%s3 + $0x20] sm:$0xf]
        %v1552 = vld [vmem:[%s3 + $0x24] sm:$0xf]
        %v1553 = vld [vmem:[%s3 + $0x28] sm:$0xf]
        %v1554 = vld [vmem:[%s3 + $0x2c] sm:$0xf]
        %v1555 = vld [vmem:[%s3 + $0x30] sm:$0x1]
        %v1556 = vunpack.c.l.bf16 %v1543
        %v1557 = vunpack.c.l.bf16 %v1544
        %v1558 = vunpack.c.l.bf16 %v1545
        %v1559 = vunpack.c.l.bf16 %v1546
        %v1560 = vunpack.c.l.bf16 %v1547
        %v1561 = vunpack.c.l.bf16 %v1548
        %v1562 = vunpack.c.l.bf16 %v1549
        %v1563 = vunpack.c.l.bf16 %v1550
        %v1564 = vunpack.c.l.bf16 %v1551
        %v1565 = vunpack.c.l.bf16 %v1552
        %v1566 = vunpack.c.l.bf16 %v1553
        %v1567 = vunpack.c.l.bf16 %v1554
        %v1568 = vunpack.c.l.bf16 %v1555
        %v1569 = vunpack.c.l.bf16 %v1509
        %v1570 = vunpack.c.l.bf16 %v1510
        %v1571 = vunpack.c.l.bf16 %v1511
        %v1572 = vunpack.c.l.bf16 %v1512
        %v1573 = vunpack.c.l.bf16 %v1513
        %v1574 = vunpack.c.l.bf16 %v1514
        %v1575 = vunpack.c.l.bf16 %v1515
        %v1576 = vunpack.c.l.bf16 %v1516
        %v1577 = vunpack.c.l.bf16 %v1517
        %v1578 = vunpack.c.l.bf16 %v1518
        %v1579 = vunpack.c.l.bf16 %v1519
        %v1580 = vunpack.c.l.bf16 %v1520
        %v1581 = vunpack.c.l.bf16 %v1521
        %v1582 = vmax.f32 %v1556, %v1569
        %v1583 = vmax.f32 %v1557, %v1570
        %v1584 = vmax.f32 %v1558, %v1571
        %v1585 = vmax.f32 %v1559, %v1572
        %v1586 = vmax.f32 %v1560, %v1573
        %v1587 = vmax.f32 %v1561, %v1574
        %v1588 = vmax.f32 %v1562, %v1575
        %v1589 = vmax.f32 %v1563, %v1576
        %v1590 = vmax.f32 %v1564, %v1577
        %v1591 = vmax.f32 %v1565, %v1578
        %v1592 = vmax.f32 %v1566, %v1579
        %v1593 = vmax.f32 %v1567, %v1580
        %v1594 = vmax.f32 %v1568, %v1581
        %v1595 = vpack.c.bf16 %v1582, %v1582
        %v1596 = vpack.c.bf16 %v1583, %v1583
        %v1597 = vpack.c.bf16 %v1584, %v1584
        %v1598 = vpack.c.bf16 %v1585, %v1585
        %v1599 = vpack.c.bf16 %v1586, %v1586
        %v1600 = vpack.c.bf16 %v1587, %v1587
        %v1601 = vpack.c.bf16 %v1588, %v1588
        %v1602 = vpack.c.bf16 %v1589, %v1589
        %v1603 = vpack.c.bf16 %v1590, %v1590
        %v1604 = vpack.c.bf16 %v1591, %v1591
        %v1605 = vpack.c.bf16 %v1592, %v1592
        %v1606 = vpack.c.bf16 %v1593, %v1593
        %v1607 = vpack.c.bf16 %v1594, %v1594
        %1608 = vst [vmem:[%s3] sm:$0xf] %v1595
        %1609 = vst [vmem:[%s3 + $0x4] sm:$0xf] %v1596
        %1610 = vst [vmem:[%s3 + $0x8] sm:$0xf] %v1597
        %1611 = vst [vmem:[%s3 + $0xc] sm:$0xf] %v1598
        %1612 = vst [vmem:[%s3 + $0x10] sm:$0xf] %v1599
        %1613 = vst [vmem:[%s3 + $0x14] sm:$0xf] %v1600
        %1614 = vst [vmem:[%s3 + $0x18] sm:$0xf] %v1601
        %1615 = vst [vmem:[%s3 + $0x1c] sm:$0xf] %v1602
        %1616 = vst [vmem:[%s3 + $0x20] sm:$0xf] %v1603
        %1617 = vst [vmem:[%s3 + $0x24] sm:$0xf] %v1604
        %1618 = vst [vmem:[%s3 + $0x28] sm:$0xf] %v1605
        %1619 = vst [vmem:[%s3 + $0x2c] sm:$0xf] %v1606
        %1620 = vst [vmem:[%s3 + $0x30] sm:$0x1] %v1607
      $region40: #{shape_classifier_forward.5} parent=31 // pred_fallthru
        _
      // Predicated region
      $region41: #{shape_classifier_forward.5} parent=31 // pred_check
        %p1621 = pneg %p95
      $region42: #{shape_classifier_forward.5} parent=31 // pred_check_branch
        %1623 = sbr.rel (%p1621) target = $region44
      $region43: #{shape_classifier_forward.5} parent=31 // pred_region
        _
      $region44: #{shape_classifier_forward.5} parent=31 // pred_fallthru
        _
      // Predicated region
      $region45: #{shape_classifier_forward.5} parent=31 // pred_check
        %p1624 = pneg %p95
      $region46: #{shape_classifier_forward.5} parent=31 // pred_check_branch
        %1626 = sbr.rel (%p1624) target = $region48
      $region47: #{shape_classifier_forward.5} parent=31 // pred_region
        _
      $region48: #{shape_classifier_forward.5} parent=31 // pred_fallthru
        _
    $region32: #{shape_classifier_forward.5} parent=5 // pred_fallthru
      _
    %p1627 = scmp.le.s32.totalorder 2, %s9
    // Predicated region
    $region49: #{shape_classifier_forward.5} parent=5 // pred_check
      %p1628 = pneg %p1627
    $region50: #{shape_classifier_forward.5} parent=5 // pred_check_branch
      %1630 = sbr.rel (%p1628) target = $region52
    $region51: #{shape_classifier_forward.5} parent=5 // pred_region
      %s1631 = ssub.s32 %s9, 2
    $region52: #{shape_classifier_forward.5} parent=5 // pred_fallthru
      _
  $region6: #{shape_classifier_forward.5} parent=0 // loop_footer
    %s13 = sadd.s32 1, %s9
  $region7: #{shape_classifier_forward.5} parent=0 // loop_footer_branch
    %8 = sbr.rel target = $region3
  $region8: #{shape_classifier_forward.5} parent=0 // loop_exit
    _

// kernel: shape_classifier_forward.6
$region0: #{shape_classifier_forward.6}
  #allocation0 [shape = 'u32[]', space=smem, size = 0x4, offset = 0x4, fixed_abs, tag = 'smem constant byte address 0x4 - core index']
  #allocation1 [shape = 'u32[72,128]{1,0:T(1,128)}', space=vmem, size = 0x9000, scoped, tag = 'internal scratch']
  %s0 = inlined_call_operand.vmem [shape: bf16[4,18,1152], index: 0, kind: input, shape index: {}]
  %s1 = inlined_call_operand.vmem [shape: bf16[1152,128], index: 1, kind: input, shape index: {}]
  %s2 = inlined_call_operand.vmem [shape: f32[1,128], index: 2, kind: input, shape index: {}]
  %s3 = inlined_call_operand.vmem [shape: bf16[18,128], index: 3, kind: output, shape index: {}]
  %s4 = sld [smem:[#allocation0]]
  $region53: #{shape_classifier_forward.6} parent=0
    _
  %s6 = ssub.s32 1, %s4
  %s7 = scalar_select 0, %s6, %s4
  loop: start=0, step=1, limit=6
  $region2: #{shape_classifier_forward.6} parent=0 // loop_pre_header
    _
  $region3: #{shape_classifier_forward.6} parent=0 // loop_header
    %s9 = sphi 0, %s13
    %p10 = scmp.ge.s32.totalorder %s9, 6
    %s19 = sphi 0, %s21
    %s22 = sphi 0, %s19
    %s23 = sphi 0, %s22
    %s39 = sphi 0, %s23
    %s43 = sphi 0, %s43
    %s45 = sphi 0, %s43
    %s46 = sphi 0, %s45
    %s60 = sphi 0, %s46
    %s64 = sphi 0, %s64
    %s66 = sphi 0, %s64
    %s67 = sphi 0, %s66
    %s81 = sphi 0, %s67
    %s85 = sphi 0, %s85
    %s87 = sphi 0, %s85
    %s88 = sphi 0, %s87
    %s102 = sphi 0, %s88
  $region4: #{shape_classifier_forward.6} parent=0 // loop_header_branch
    %12 = sbr.rel (%p10) target = $region8
  $region5: #{shape_classifier_forward.6} parent=0 // loop_body
    %s14 = ssub.s32 %s9, 1
    %s15 = ssub.s32 %s9, 2
    %s16 = sadd.s32 %s9, 1
    %s17 = ssub.s32 %s9, %s16
    %p18 = scmp.eq.s32.totalorder %s17, 0
    %s20 = sadd.s32 %s19, 1
    %s21 = scalar_select %p18, %s19, %s20
    %p24 = pneg %p18
    %p25 = scmp.eq.s32.totalorder %s9, 3
    %p26 = por %p24, %p25
    %p27 = scmp.ne.s32.totalorder %s19, %s22
    %p28 = scmp.eq.s32.totalorder %s9, 0
    %p29 = por %p27, %p28
    %p30 = scmp.ne.s32.totalorder %s19, %s22
    %p31 = scmp.eq.s32.totalorder %s14, 3
    %p32 = por %p30, %p31
    %p33 = scmp.ne.s32.totalorder %s22, %s23
    %p34 = scmp.eq.s32.totalorder %s14, 0
    %p35 = por %p33, %p34
    %p36 = scmp.ne.s32.totalorder %s22, %s23
    %p37 = scmp.eq.s32.totalorder %s15, 3
    %p38 = por %p36, %p37
    %p40 = scmp.ne.s32.totalorder %s23, %s39
    %p41 = scmp.eq.s32.totalorder %s15, 0
    %p42 = por %p40, %p41
    %s44 = sadd.s32 %s43, 1
    %p47 = scmp.eq.s32.totalorder %s9, 3
    %p48 = scmp.ne.s32.totalorder %s43, %s45
    %p49 = scmp.eq.s32.totalorder %s9, 0
    %p50 = por %p48, %p49
    %p51 = scmp.ne.s32.totalorder %s43, %s45
    %p52 = scmp.eq.s32.totalorder %s14, 3
    %p53 = por %p51, %p52
    %p54 = scmp.ne.s32.totalorder %s45, %s46
    %p55 = scmp.eq.s32.totalorder %s14, 0
    %p56 = por %p54, %p55
    %p57 = scmp.ne.s32.totalorder %s45, %s46
    %p58 = scmp.eq.s32.totalorder %s15, 3
    %p59 = por %p57, %p58
    %p61 = scmp.ne.s32.totalorder %s46, %s60
    %p62 = scmp.eq.s32.totalorder %s15, 0
    %p63 = por %p61, %p62
    %s65 = sadd.s32 %s64, 1
    %p68 = scmp.eq.s32.totalorder %s9, 3
    %p69 = scmp.ne.s32.totalorder %s64, %s66
    %p70 = scmp.eq.s32.totalorder %s9, 0
    %p71 = por %p69, %p70
    %p72 = scmp.ne.s32.totalorder %s64, %s66
    %p73 = scmp.eq.s32.totalorder %s14, 3
    %p74 = por %p72, %p73
    %p75 = scmp.ne.s32.totalorder %s66, %s67
    %p76 = scmp.eq.s32.totalorder %s14, 0
    %p77 = por %p75, %p76
    %p78 = scmp.ne.s32.totalorder %s66, %s67
    %p79 = scmp.eq.s32.totalorder %s15, 3
    %p80 = por %p78, %p79
    %p82 = scmp.ne.s32.totalorder %s67, %s81
    %p83 = scmp.eq.s32.totalorder %s15, 0
    %p84 = por %p82, %p83
    %s86 = sadd.s32 %s85, 1
    %p89 = scmp.eq.s32.totalorder %s9, 3
    %p90 = scmp.ne.s32.totalorder %s85, %s87
    %p91 = scmp.eq.s32.totalorder %s9, 0
    %p92 = por %p90, %p91
    %p93 = scmp.ne.s32.totalorder %s85, %s87
    %p94 = scmp.eq.s32.totalorder %s14, 3
    %p95 = por %p93, %p94
    %p96 = scmp.ne.s32.totalorder %s87, %s88
    %p97 = scmp.eq.s32.totalorder %s14, 0
    %p98 = por %p96, %p97
    %p99 = scmp.ne.s32.totalorder %s87, %s88
    %p100 = scmp.eq.s32.totalorder %s15, 3
    %p101 = por %p99, %p100
    %p103 = scmp.ne.s32.totalorder %s88, %s102
    %p104 = scmp.eq.s32.totalorder %s15, 0
    %p105 = por %p103, %p104
    %p106 = scmp.le.s32.totalorder 1, %s9
    %p107 = scmp.lt.s32.totalorder %s9, 5
    %p108 = pnand %p106, %p107
    %p109 = pneg %p108
    // Predicated region
    $region9: #{shape_classifier_forward.6} parent=5 // pred_check
      _
    $region10: #{shape_classifier_forward.6} parent=5 // pred_check_branch
      %111 = sbr.rel (%p108) target = $region12
    $region11: #{shape_classifier_forward.6} parent=5 // pred_region
      %s112 = ssub.s32 %s9, 1
      // Predicated region
      $region13: #{shape_classifier_forward.6} parent=11 // pred_check
        %p113 = pneg %p56
      $region14: #{shape_classifier_forward.6} parent=11 // pred_check_branch
        %115 = sbr.rel (%p113) target = $region16
      $region15: #{shape_classifier_forward.6} parent=11 // pred_region
        _
      $region16: #{shape_classifier_forward.6} parent=11 // pred_fallthru
        _
      // Predicated region
      $region17: #{shape_classifier_forward.6} parent=11 // pred_check
        %p116 = pneg %p77
      $region18: #{shape_classifier_forward.6} parent=11 // pred_check_branch
        %118 = sbr.rel (%p116) target = $region20
      $region19: #{shape_classifier_forward.6} parent=11 // pred_region
        _
      $region20: #{shape_classifier_forward.6} parent=11 // pred_fallthru
        _
    $region12: #{shape_classifier_forward.6} parent=5 // pred_fallthru
      _
    %p119 = scmp.lt.s32.totalorder %s9, 4
    // Predicated region
    $region21: #{shape_classifier_forward.6} parent=5 // pred_check
      %p120 = pneg %p119
    $region22: #{shape_classifier_forward.6} parent=5 // pred_check_branch
      %122 = sbr.rel (%p120) target = $region24
    $region23: #{shape_classifier_forward.6} parent=5 // pred_region
      // Predicated region
      $region25: #{shape_classifier_forward.6} parent=23 // pred_check
        %p123 = pneg %p29
      $region26: #{shape_classifier_forward.6} parent=23 // pred_check_branch
        %125 = sbr.rel (%p123) target = $region28
      $region27: #{shape_classifier_forward.6} parent=23 // pred_region
        %p126 = scmp.lt.s32.totalorder %s9, 3
        %s127 = scalar_select %p126, %s9, 3
        %s128 = smul.addr %s127, 27
        %s129 = smul.addr %s128, 4
        %s130 = scalar_lea.vmem %s0, %s129
      $region28: #{shape_classifier_forward.6} parent=23 // pred_fallthru
        _
    $region24: #{shape_classifier_forward.6} parent=5 // pred_fallthru
      _
    %p131 = scmp.le.s32.totalorder 1, %s9
    %p132 = scmp.lt.s32.totalorder %s9, 5
    %p133 = pnand %p131, %p132
    %p134 = pneg %p133
    // Predicated region
    $region29: #{shape_classifier_forward.6} parent=5 // pred_check
      _
    $region30: #{shape_classifier_forward.6} parent=5 // pred_check_branch
      %136 = sbr.rel (%p133) target = $region32
    $region31: #{shape_classifier_forward.6} parent=5 // pred_region
      %s137 = ssub.s32 %s9, 1
      %p138 = scmp.lt.s32.totalorder %s14, 3
      %s139 = scalar_select %p138, %s14, 3
      %s140 = smul.addr %s139, 27
      %s141 = smul.addr %s140, 4
      %s142 = scalar_lea.vmem %s0, %s141
      %p143 = pneg %p35
      %p144 = pneg %p32
      %p145 = pneg %p56
      %p146 = pneg %p53
      %p147 = pneg %p77
      %p148 = pneg %p74
      %p149 = pneg %p98
      %p150 = pneg %p95
      %p151 = scmp.lt.s32.totalorder %s14, 3
      %s152 = scalar_select %p151, %s14, 3
      %s153 = smul.addr %s152, 27
      %s154 = smul.addr %s153, 4
      %s155 = scalar_lea.vmem %s0, %s154
      %v156 = vld [vmem:[%s155] sm:$0xff]
      %v157 = vld [vmem:[%s155 + $0x8] sm:$0xff]
      %v158 = vld [vmem:[%s155 + $0x10] sm:$0xff]
      %v159 = vld [vmem:[%s155 + $0x18] sm:$0xff]
      %v160 = vld [vmem:[%s155 + $0x20] sm:$0xf]
      %v161 = vld [vmem:[%s155 + $0x24] sm:$0xff]
      %v162 = vld [vmem:[%s155 + $0x2c] sm:$0xff]
      %v163 = vld [vmem:[%s155 + $0x34] sm:$0xff]
      %v164 = vld [vmem:[%s155 + $0x3c] sm:$0xff]
      %v165 = vld [vmem:[%s155 + $0x44] sm:$0xf]
      %v166 = vld [vmem:[%s155 + $0x48] sm:$0x11]
      %v167 = vld [vmem:[%s155 + $0x50] sm:$0x11]
      %v168 = vld [vmem:[%s155 + $0x58] sm:$0x11]
      %v169 = vld [vmem:[%s155 + $0x60] sm:$0x11]
      %v170 = vld [vmem:[%s155 + $0x68] sm:$0x1]
      %v171 = vld [vmem:[%s1] sm:$0xf]
      %v172 = vld [vmem:[%s1 + $0x4] sm:$0xf]
      %v173 = vld [vmem:[%s1 + $0x8] sm:$0xf]
      %v174 = vld [vmem:[%s1 + $0xc] sm:$0xf]
      %v175 = vld [vmem:[%s1 + $0x10] sm:$0xf]
      %v176 = vld [vmem:[%s1 + $0x14] sm:$0xf]
      %v177 = vld [vmem:[%s1 + $0x18] sm:$0xf]
      %v178 = vld [vmem:[%s1 + $0x1c] sm:$0xf]
      %v179 = vld [vmem:[%s1 + $0x20] sm:$0xf]
      %v180 = vld [vmem:[%s1 + $0x24] sm:$0xf]
      %v181 = vld [vmem:[%s1 + $0x28] sm:$0xf]
      %v182 = vld [vmem:[%s1 + $0x2c] sm:$0xf]
      %v183 = vld [vmem:[%s1 + $0x30] sm:$0xf]
      %v184 = vld [vmem:[%s1 + $0x34] sm:$0xf]
      %v185 = vld [vmem:[%s1 + $0x38] sm:$0xf]
      %v186 = vld [vmem:[%s1 + $0x3c] sm:$0xf]
      %v187 = vld [vmem:[%s1 + $0x40] sm:$0xf]
      %v188 = vld [vmem:[%s1 + $0x44] sm:$0xf]
      %v189 = vld [vmem:[%s1 + $0x48] sm:$0xf]
      %v190 = vld [vmem:[%s1 + $0x4c] sm:$0xf]
      %v191 = vld [vmem:[%s1 + $0x50] sm:$0xf]
      %v192 = vld [vmem:[%s1 + $0x54] sm:$0xf]
      %v193 = vld [vmem:[%s1 + $0x58] sm:$0xf]
      %v194 = vld [vmem:[%s1 + $0x5c] sm:$0xf]
      %v195 = vld [vmem:[%s1 + $0x60] sm:$0xf]
      %v196 = vld [vmem:[%s1 + $0x64] sm:$0xf]
      %v197 = vld [vmem:[%s1 + $0x68] sm:$0xf]
      %v198 = vld [vmem:[%s1 + $0x6c] sm:$0xf]
      %v199 = vld [vmem:[%s1 + $0x70] sm:$0xf]
      %v200 = vld [vmem:[%s1 + $0x74] sm:$0xf]
      %v201 = vld [vmem:[%s1 + $0x78] sm:$0xf]
      %v202 = vld [vmem:[%s1 + $0x7c] sm:$0xf]
      %v203 = vld [vmem:[%s1 + $0x80] sm:$0xf]
      %v204 = vld [vmem:[%s1 + $0x84] sm:$0xf]
      %v205 = vld [vmem:[%s1 + $0x88] sm:$0xf]
      %v206 = vld [vmem:[%s1 + $0x8c] sm:$0xf]
      %v207 = vld [vmem:[%s1 + $0x90] sm:$0xf]
      %v208 = vld [vmem:[%s1 + $0x94] sm:$0xf]
      %v209 = vld [vmem:[%s1 + $0x98] sm:$0xf]
      %v210 = vld [vmem:[%s1 + $0x9c] sm:$0xf]
      %v211 = vld [vmem:[%s1 + $0xa0] sm:$0xf]
      %v212 = vld [vmem:[%s1 + $0xa4] sm:$0xf]
      %v213 = vld [vmem:[%s1 + $0xa8] sm:$0xf]
      %v214 = vld [vmem:[%s1 + $0xac] sm:$0xf]
      %v215 = vld [vmem:[%s1 + $0xb0] sm:$0xf]
      %v216 = vld [vmem:[%s1 + $0xb4] sm:$0xf]
      %v217 = vld [vmem:[%s1 + $0xb8] sm:$0xf]
      %v218 = vld [vmem:[%s1 + $0xbc] sm:$0xf]
      %v219 = vld [vmem:[%s1 + $0xc0] sm:$0xf]
      %v220 = vld [vmem:[%s1 + $0xc4] sm:$0xf]
      %v221 = vld [vmem:[%s1 + $0xc8] sm:$0xf]
      %v222 = vld [vmem:[%s1 + $0xcc] sm:$0xf]
      %v223 = vld [vmem:[%s1 + $0xd0] sm:$0xf]
      %v224 = vld [vmem:[%s1 + $0xd4] sm:$0xf]
      %v225 = vld [vmem:[%s1 + $0xd8] sm:$0xf]
      %v226 = vld [vmem:[%s1 + $0xdc] sm:$0xf]
      %v227 = vld [vmem:[%s1 + $0xe0] sm:$0xf]
      %v228 = vld [vmem:[%s1 + $0xe4] sm:$0xf]
      %v229 = vld [vmem:[%s1 + $0xe8] sm:$0xf]
      %v230 = vld [vmem:[%s1 + $0xec] sm:$0xf]
      %v231 = vld [vmem:[%s1 + $0xf0] sm:$0xf]
      %v232 = vld [vmem:[%s1 + $0xf4] sm:$0xf]
      %v233 = vld [vmem:[%s1 + $0xf8] sm:$0xf]
      %v234 = vld [vmem:[%s1 + $0xfc] sm:$0xf]
      %v235 = vld [vmem:[%s1 + $0x100] sm:$0xf]
      %v236 = vld [vmem:[%s1 + $0x104] sm:$0xf]
      %v237 = vld [vmem:[%s1 + $0x108] sm:$0xf]
      %v238 = vld [vmem:[%s1 + $0x10c] sm:$0xf]
      %v239 = vld [vmem:[%s1 + $0x110] sm:$0xf]
      %v240 = vld [vmem:[%s1 + $0x114] sm:$0xf]
      %v241 = vld [vmem:[%s1 + $0x118] sm:$0xf]
      %v242 = vld [vmem:[%s1 + $0x11c] sm:$0xf]
      %v243 = vld [vmem:[%s1 + $0x120] sm:$0xf]
      %v244 = vld [vmem:[%s1 + $0x124] sm:$0xf]
      %v245 = vld [vmem:[%s1 + $0x128] sm:$0xf]
      %v246 = vld [vmem:[%s1 + $0x12c] sm:$0xf]
      %v247 = vld [vmem:[%s1 + $0x130] sm:$0xf]
      %v248 = vld [vmem:[%s1 + $0x134] sm:$0xf]
      %v249 = vld [vmem:[%s1 + $0x138] sm:$0xf]
      %v250 = vld [vmem:[%s1 + $0x13c] sm:$0xf]
      %v251 = vld [vmem:[%s1 + $0x140] sm:$0xf]
      %v252 = vld [vmem:[%s1 + $0x144] sm:$0xf]
      %v253 = vld [vmem:[%s1 + $0x148] sm:$0xf]
      %v254 = vld [vmem:[%s1 + $0x14c] sm:$0xf]
      %v255 = vld [vmem:[%s1 + $0x150] sm:$0xf]
      %v256 = vld [vmem:[%s1 + $0x154] sm:$0xf]
      %v257 = vld [vmem:[%s1 + $0x158] sm:$0xf]
      %v258 = vld [vmem:[%s1 + $0x15c] sm:$0xf]
      %v259 = vld [vmem:[%s1 + $0x160] sm:$0xf]
      %v260 = vld [vmem:[%s1 + $0x164] sm:$0xf]
      %v261 = vld [vmem:[%s1 + $0x168] sm:$0xf]
      %v262 = vld [vmem:[%s1 + $0x16c] sm:$0xf]
      %v263 = vld [vmem:[%s1 + $0x170] sm:$0xf]
      %v264 = vld [vmem:[%s1 + $0x174] sm:$0xf]
      %v265 = vld [vmem:[%s1 + $0x178] sm:$0xf]
      %v266 = vld [vmem:[%s1 + $0x17c] sm:$0xf]
      %v267 = vld [vmem:[%s1 + $0x180] sm:$0xf]
      %v268 = vld [vmem:[%s1 + $0x184] sm:$0xf]
      %v269 = vld [vmem:[%s1 + $0x188] sm:$0xf]
      %v270 = vld [vmem:[%s1 + $0x18c] sm:$0xf]
      %v271 = vld [vmem:[%s1 + $0x190] sm:$0xf]
      %v272 = vld [vmem:[%s1 + $0x194] sm:$0xf]
      %v273 = vld [vmem:[%s1 + $0x198] sm:$0xf]
      %v274 = vld [vmem:[%s1 + $0x19c] sm:$0xf]
      %v275 = vld [vmem:[%s1 + $0x1a0] sm:$0xf]
      %v276 = vld [vmem:[%s1 + $0x1a4] sm:$0xf]
      %v277 = vld [vmem:[%s1 + $0x1a8] sm:$0xf]
      %v278 = vld [vmem:[%s1 + $0x1ac] sm:$0xf]
      %v279 = vld [vmem:[%s1 + $0x1b0] sm:$0xf]
      %v280 = vld [vmem:[%s1 + $0x1b4] sm:$0xf]
      %v281 = vld [vmem:[%s1 + $0x1b8] sm:$0xf]
      %v282 = vld [vmem:[%s1 + $0x1bc] sm:$0xf]
      %v283 = vld [vmem:[%s1 + $0x1c0] sm:$0xf]
      %v284 = vld [vmem:[%s1 + $0x1c4] sm:$0xf]
      %v285 = vld [vmem:[%s1 + $0x1c8] sm:$0xf]
      %v286 = vld [vmem:[%s1 + $0x1cc] sm:$0xf]
      %v287 = vld [vmem:[%s1 + $0x1d0] sm:$0xf]
      %v288 = vld [vmem:[%s1 + $0x1d4] sm:$0xf]
      %v289 = vld [vmem:[%s1 + $0x1d8] sm:$0xf]
      %v290 = vld [vmem:[%s1 + $0x1dc] sm:$0xf]
      %v291 = vld [vmem:[%s1 + $0x1e0] sm:$0xf]
      %v292 = vld [vmem:[%s1 + $0x1e4] sm:$0xf]
      %v293 = vld [vmem:[%s1 + $0x1e8] sm:$0xf]
      %v294 = vld [vmem:[%s1 + $0x1ec] sm:$0xf]
      %v295 = vld [vmem:[%s1 + $0x1f0] sm:$0xf]
      %v296 = vld [vmem:[%s1 + $0x1f4] sm:$0xf]
      %v297 = vld [vmem:[%s1 + $0x1f8] sm:$0xf]
      %v298 = vld [vmem:[%s1 + $0x1fc] sm:$0xf]
      %v299 = vld [vmem:[%s1 + $0x200] sm:$0xf]
      %v300 = vld [vmem:[%s1 + $0x204] sm:$0xf]
      %v301 = vld [vmem:[%s1 + $0x208] sm:$0xf]
      %v302 = vld [vmem:[%s1 + $0x20c] sm:$0xf]
      %v303 = vld [vmem:[%s1 + $0x210] sm:$0xf]
      %v304 = vld [vmem:[%s1 + $0x214] sm:$0xf]
      %v305 = vld [vmem:[%s1 + $0x218] sm:$0xf]
      %v306 = vld [vmem:[%s1 + $0x21c] sm:$0xf]
      %v307 = vld [vmem:[%s1 + $0x220] sm:$0xf]
      %v308 = vld [vmem:[%s1 + $0x224] sm:$0xf]
      %v309 = vld [vmem:[%s1 + $0x228] sm:$0xf]
      %v310 = vld [vmem:[%s1 + $0x22c] sm:$0xf]
      %v311 = vld [vmem:[%s1 + $0x230] sm:$0xf]
      %v312 = vld [vmem:[%s1 + $0x234] sm:$0xf]
      %v313 = vld [vmem:[%s1 + $0x238] sm:$0xf]
      %v314 = vld [vmem:[%s1 + $0x23c] sm:$0xf]
      %v315 = vld [vmem:[%s2] sm:$0x1]
      %v317 = vperm.slane %v315, 0
      %v334 = vunpack.c.l.b16 %v156
      %v335 = vunpack.c.h.b16 %v156
      %v336 = vunpack.c.l.b16 %v157
      %v337 = vunpack.c.h.b16 %v157
      %v338 = vunpack.c.l.b16 %v158
      %v339 = vunpack.c.h.b16 %v158
      %v340 = vunpack.c.l.b16 %v159
      %v341 = vunpack.c.h.b16 %v159
      %v342 = vunpack.c.l.b16 %v160
      %v343 = vunpack.c.l.b16 %v161
      %v344 = vunpack.c.h.b16 %v161
      %v345 = vunpack.c.l.b16 %v162
      %v346 = vunpack.c.h.b16 %v162
      %v347 = vunpack.c.l.b16 %v163
      %v348 = vunpack.c.h.b16 %v163
      %v349 = vunpack.c.l.b16 %v164
      %v350 = vunpack.c.h.b16 %v164
      %v351 = vunpack.c.l.b16 %v165
      %v352 = vunpack.c.l.b16 %v166
      %v353 = vunpack.c.h.b16 %v166
      %v354 = vunpack.c.l.b16 %v167
      %v355 = vunpack.c.h.b16 %v167
      %v356 = vunpack.c.l.b16 %v168
      %v357 = vunpack.c.h.b16 %v168
      %v358 = vunpack.c.l.b16 %v169
      %v359 = vunpack.c.h.b16 %v169
      %v360 = vunpack.c.l.b16 %v170
      %v361 = vpack.c.b16 %v343, %v334
      %v362 = vpack.c.b16 %v344, %v335
      %v363 = vpack.c.b16 %v345, %v336
      %v364 = vpack.c.b16 %v346, %v337
      %v365 = vpack.c.b16 %v347, %v338
      %v366 = vpack.c.b16 %v348, %v339
      %v367 = vpack.c.b16 %v349, %v340
      %v368 = vpack.c.b16 %v350, %v341
      %v369 = vpack.c.b16 %v351, %v342
      %v370 = vpack.c.b16 %v352, %v352
      %v371 = vpack.c.b16 %v353, %v353
      %v372 = vpack.c.b16 %v354, %v354
      %v373 = vpack.c.b16 %v355, %v355
      %v374 = vpack.c.b16 %v356, %v356
      %v375 = vpack.c.b16 %v357, %v357
      %v376 = vpack.c.b16 %v358, %v358
      %v377 = vpack.c.b16 %v359, %v359
      %v378 = vpack.c.b16 %v360, %v360
      %v541 = vunpack.c.l.b16 %v171
      %v542 = vunpack.c.l.b16 %v172
      %v543 = vunpack.c.l.b16 %v173
      %v544 = vunpack.c.l.b16 %v174
      %v545 = vunpack.c.l.b16 %v175
      %v546 = vunpack.c.l.b16 %v176
      %v547 = vunpack.c.l.b16 %v177
      %v548 = vunpack.c.l.b16 %v178
      %v549 = vunpack.c.l.b16 %v179
      %v550 = vunpack.c.l.b16 %v180
      %v551 = vunpack.c.l.b16 %v181
      %v552 = vunpack.c.l.b16 %v182
      %v553 = vunpack.c.l.b16 %v183
      %v554 = vunpack.c.l.b16 %v184
      %v555 = vunpack.c.l.b16 %v185
      %v556 = vunpack.c.l.b16 %v186
      %v557 = vunpack.c.l.b16 %v187
      %v558 = vunpack.c.l.b16 %v188
      %v559 = vunpack.c.l.b16 %v189
      %v560 = vunpack.c.l.b16 %v190
      %v561 = vunpack.c.l.b16 %v191
      %v562 = vunpack.c.l.b16 %v192
      %v563 = vunpack.c.l.b16 %v193
      %v564 = vunpack.c.l.b16 %v194
      %v565 = vunpack.c.l.b16 %v195
      %v566 = vunpack.c.l.b16 %v196
      %v567 = vunpack.c.l.b16 %v197
      %v568 = vunpack.c.l.b16 %v198
      %v569 = vunpack.c.l.b16 %v199
      %v570 = vunpack.c.l.b16 %v200
      %v571 = vunpack.c.l.b16 %v201
      %v572 = vunpack.c.l.b16 %v202
      %v573 = vunpack.c.l.b16 %v203
      %v574 = vunpack.c.l.b16 %v204
      %v575 = vunpack.c.l.b16 %v205
      %v576 = vunpack.c.l.b16 %v206
      %v577 = vunpack.c.l.b16 %v207
      %v578 = vunpack.c.l.b16 %v208
      %v579 = vunpack.c.l.b16 %v209
      %v580 = vunpack.c.l.b16 %v210
      %v581 = vunpack.c.l.b16 %v211
      %v582 = vunpack.c.l.b16 %v212
      %v583 = vunpack.c.l.b16 %v213
      %v584 = vunpack.c.l.b16 %v214
      %v585 = vunpack.c.l.b16 %v215
      %v586 = vunpack.c.l.b16 %v216
      %v587 = vunpack.c.l.b16 %v217
      %v588 = vunpack.c.l.b16 %v218
      %v589 = vunpack.c.l.b16 %v219
      %v590 = vunpack.c.l.b16 %v220
      %v591 = vunpack.c.l.b16 %v221
      %v592 = vunpack.c.l.b16 %v222
      %v593 = vunpack.c.l.b16 %v223
      %v594 = vunpack.c.l.b16 %v224
      %v595 = vunpack.c.l.b16 %v225
      %v596 = vunpack.c.l.b16 %v226
      %v597 = vunpack.c.l.b16 %v227
      %v598 = vunpack.c.l.b16 %v228
      %v599 = vunpack.c.l.b16 %v229
      %v600 = vunpack.c.l.b16 %v230
      %v601 = vunpack.c.l.b16 %v231
      %v602 = vunpack.c.l.b16 %v232
      %v603 = vunpack.c.l.b16 %v233
      %v604 = vunpack.c.l.b16 %v234
      %v605 = vunpack.c.l.b16 %v235
      %v606 = vunpack.c.l.b16 %v236
      %v607 = vunpack.c.l.b16 %v237
      %v608 = vunpack.c.l.b16 %v238
      %v609 = vunpack.c.l.b16 %v239
      %v610 = vunpack.c.l.b16 %v240
      %v611 = vunpack.c.l.b16 %v241
      %v612 = vunpack.c.l.b16 %v242
      %v613 = vunpack.c.l.b16 %v243
      %v614 = vunpack.c.l.b16 %v244
      %v615 = vunpack.c.l.b16 %v245
      %v616 = vunpack.c.l.b16 %v246
      %v617 = vunpack.c.l.b16 %v247
      %v618 = vunpack.c.l.b16 %v248
      %v619 = vunpack.c.l.b16 %v249
      %v620 = vunpack.c.l.b16 %v250
      %v621 = vunpack.c.l.b16 %v251
      %v622 = vunpack.c.l.b16 %v252
      %v623 = vunpack.c.l.b16 %v253
      %v624 = vunpack.c.l.b16 %v254
      %v625 = vunpack.c.l.b16 %v255
      %v626 = vunpack.c.l.b16 %v256
      %v627 = vunpack.c.l.b16 %v257
      %v628 = vunpack.c.l.b16 %v258
      %v629 = vunpack.c.l.b16 %v259
      %v630 = vunpack.c.l.b16 %v260
      %v631 = vunpack.c.l.b16 %v261
      %v632 = vunpack.c.l.b16 %v262
      %v633 = vunpack.c.l.b16 %v263
      %v634 = vunpack.c.l.b16 %v264
      %v635 = vunpack.c.l.b16 %v265
      %v636 = vunpack.c.l.b16 %v266
      %v637 = vunpack.c.l.b16 %v267
      %v638 = vunpack.c.l.b16 %v268
      %v639 = vunpack.c.l.b16 %v269
      %v640 = vunpack.c.l.b16 %v270
      %v641 = vunpack.c.l.b16 %v271
      %v642 = vunpack.c.l.b16 %v272
      %v643 = vunpack.c.l.b16 %v273
      %v644 = vunpack.c.l.b16 %v274
      %v645 = vunpack.c.l.b16 %v275
      %v646 = vunpack.c.l.b16 %v276
      %v647 = vunpack.c.l.b16 %v277
      %v648 = vunpack.c.l.b16 %v278
      %v649 = vunpack.c.l.b16 %v279
      %v650 = vunpack.c.l.b16 %v280
      %v651 = vunpack.c.l.b16 %v281
      %v652 = vunpack.c.l.b16 %v282
      %v653 = vunpack.c.l.b16 %v283
      %v654 = vunpack.c.l.b16 %v284
      %v655 = vunpack.c.l.b16 %v285
      %v656 = vunpack.c.l.b16 %v286
      %v657 = vunpack.c.l.b16 %v287
      %v658 = vunpack.c.l.b16 %v288
      %v659 = vunpack.c.l.b16 %v289
      %v660 = vunpack.c.l.b16 %v290
      %v661 = vunpack.c.l.b16 %v291
      %v662 = vunpack.c.l.b16 %v292
      %v663 = vunpack.c.l.b16 %v293
      %v664 = vunpack.c.l.b16 %v294
      %v665 = vunpack.c.l.b16 %v295
      %v666 = vunpack.c.l.b16 %v296
      %v667 = vunpack.c.l.b16 %v297
      %v668 = vunpack.c.l.b16 %v298
      %v669 = vunpack.c.l.b16 %v299
      %v670 = vunpack.c.l.b16 %v300
      %v671 = vunpack.c.l.b16 %v301
      %v672 = vunpack.c.l.b16 %v302
      %v673 = vunpack.c.l.b16 %v303
      %v674 = vunpack.c.l.b16 %v304
      %v675 = vunpack.c.l.b16 %v305
      %v676 = vunpack.c.l.b16 %v306
      %v677 = vunpack.c.l.b16 %v307
      %v678 = vunpack.c.l.b16 %v308
      %v679 = vunpack.c.l.b16 %v309
      %v680 = vunpack.c.l.b16 %v310
      %v681 = vunpack.c.l.b16 %v311
      %v682 = vunpack.c.l.b16 %v312
      %v683 = vunpack.c.l.b16 %v313
      %v684 = vunpack.c.l.b16 %v314
      %v685 = vpack.c.b16 %v542, %v541
      %v686 = vpack.c.b16 %v544, %v543
      %v687 = vpack.c.b16 %v546, %v545
      %v688 = vpack.c.b16 %v548, %v547
      %v689 = vpack.c.b16 %v550, %v549
      %v690 = vpack.c.b16 %v552, %v551
      %v691 = vpack.c.b16 %v554, %v553
      %v692 = vpack.c.b16 %v556, %v555
      %v693 = vpack.c.b16 %v558, %v557
      %v694 = vpack.c.b16 %v560, %v559
      %v695 = vpack.c.b16 %v562, %v561
      %v696 = vpack.c.b16 %v564, %v563
      %v697 = vpack.c.b16 %v566, %v565
      %v698 = vpack.c.b16 %v568, %v567
      %v699 = vpack.c.b16 %v570, %v569
      %v700 = vpack.c.b16 %v572, %v571
      %v701 = vpack.c.b16 %v574, %v573
      %v702 = vpack.c.b16 %v576, %v575
      %v703 = vpack.c.b16 %v578, %v577
      %v704 = vpack.c.b16 %v580, %v579
      %v705 = vpack.c.b16 %v582, %v581
      %v706 = vpack.c.b16 %v584, %v583
      %v707 = vpack.c.b16 %v586, %v585
      %v708 = vpack.c.b16 %v588, %v587
      %v709 = vpack.c.b16 %v590, %v589
      %v710 = vpack.c.b16 %v592, %v591
      %v711 = vpack.c.b16 %v594, %v593
      %v712 = vpack.c.b16 %v596, %v595
      %v713 = vpack.c.b16 %v598, %v597
      %v714 = vpack.c.b16 %v600, %v599
      %v715 = vpack.c.b16 %v602, %v601
      %v716 = vpack.c.b16 %v604, %v603
      %v717 = vpack.c.b16 %v606, %v605
      %v718 = vpack.c.b16 %v608, %v607
      %v719 = vpack.c.b16 %v610, %v609
      %v720 = vpack.c.b16 %v612, %v611
      %v721 = vpack.c.b16 %v614, %v613
      %v722 = vpack.c.b16 %v616, %v615
      %v723 = vpack.c.b16 %v618, %v617
      %v724 = vpack.c.b16 %v620, %v619
      %v725 = vpack.c.b16 %v622, %v621
      %v726 = vpack.c.b16 %v624, %v623
      %v727 = vpack.c.b16 %v626, %v625
      %v728 = vpack.c.b16 %v628, %v627
      %v729 = vpack.c.b16 %v630, %v629
      %v730 = vpack.c.b16 %v632, %v631
      %v731 = vpack.c.b16 %v634, %v633
      %v732 = vpack.c.b16 %v636, %v635
      %v733 = vpack.c.b16 %v638, %v637
      %v734 = vpack.c.b16 %v640, %v639
      %v735 = vpack.c.b16 %v642, %v641
      %v736 = vpack.c.b16 %v644, %v643
      %v737 = vpack.c.b16 %v646, %v645
      %v738 = vpack.c.b16 %v648, %v647
      %v739 = vpack.c.b16 %v650, %v649
      %v740 = vpack.c.b16 %v652, %v651
      %v741 = vpack.c.b16 %v654, %v653
      %v742 = vpack.c.b16 %v656, %v655
      %v743 = vpack.c.b16 %v658, %v657
      %v744 = vpack.c.b16 %v660, %v659
      %v745 = vpack.c.b16 %v662, %v661
      %v746 = vpack.c.b16 %v664, %v663
      %v747 = vpack.c.b16 %v666, %v665
      %v748 = vpack.c.b16 %v668, %v667
      %v749 = vpack.c.b16 %v670, %v669
      %v750 = vpack.c.b16 %v672, %v671
      %v751 = vpack.c.b16 %v674, %v673
      %v752 = vpack.c.b16 %v676, %v675
      %v753 = vpack.c.b16 %v678, %v677
      %v754 = vpack.c.b16 %v680, %v679
      %v755 = vpack.c.b16 %v682, %v681
      %v756 = vpack.c.b16 %v684, %v683
      %829 = vmatpush.bf16.msra.mxu0 %v692
      %830 = vmatpush.bf16.msra.mxu0 %v691
      %831 = vmatpush.bf16.msra.mxu0 %v690
      %832 = vmatpush.bf16.msra.mxu0 %v689
      %833 = vmatpush.bf16.msra.mxu0 %v688
      %834 = vmatpush.bf16.msra.mxu0 %v687
      %835 = vmatpush.bf16.msra.mxu0 %v686
      %836 = vmatpush.bf16.msra.mxu0 %v685
      %837 = vmatmul.bf16.gmra.mxu0 %v361
      %v838 = vpop.f32.mrf.mxu0
      %v839 = vadd.f32 %v317, %v838
      %v840 = vpop.f32.mrf.mxu0
      %v841 = vadd.f32 %v317, %v840
      %842 = vmatmul.bf16.gmra.mxu0 %v370
      %v843 = vpop.f32.mrf.mxu0
      %v844 = vadd.f32 %v317, %v843
      %v845 = vpop.f32.mrf.mxu0
      %846 = vdwg.mxu0
      %847 = vmatpush.bf16.msra.mxu0 %v700
      %848 = vmatpush.bf16.msra.mxu0 %v699
      %849 = vmatpush.bf16.msra.mxu0 %v698
      %850 = vmatpush.bf16.msra.mxu0 %v697
      %851 = vmatpush.bf16.msra.mxu0 %v696
      %852 = vmatpush.bf16.msra.mxu0 %v695
      %853 = vmatpush.bf16.msra.mxu0 %v694
      %854 = vmatpush.bf16.msra.mxu0 %v693
      %855 = vmatmul.bf16.gmra.mxu0 %v362
      %v856 = vpop.f32.mrf.mxu0
      %v857 = vadd.f32 %v839, %v856
      %v858 = vpop.f32.mrf.mxu0
      %v859 = vadd.f32 %v841, %v858
      %860 = vmatmul.bf16.gmra.mxu0 %v371
      %v861 = vpop.f32.mrf.mxu0
      %v862 = vadd.f32 %v844, %v861
      %v863 = vpop.f32.mrf.mxu0
      %864 = vdwg.mxu0
      %865 = vmatpush.bf16.msra.mxu0 %v708
      %866 = vmatpush.bf16.msra.mxu0 %v707
      %867 = vmatpush.bf16.msra.mxu0 %v706
      %868 = vmatpush.bf16.msra.mxu0 %v705
      %869 = vmatpush.bf16.msra.mxu0 %v704
      %870 = vmatpush.bf16.msra.mxu0 %v703
      %871 = vmatpush.bf16.msra.mxu0 %v702
      %872 = vmatpush.bf16.msra.mxu0 %v701
      %873 = vmatmul.bf16.gmra.mxu0 %v363
      %v874 = vpop.f32.mrf.mxu0
      %v875 = vadd.f32 %v857, %v874
      %v876 = vpop.f32.mrf.mxu0
      %v877 = vadd.f32 %v859, %v876
      %878 = vmatmul.bf16.gmra.mxu0 %v372
      %v879 = vpop.f32.mrf.mxu0
      %v880 = vadd.f32 %v862, %v879
      %v881 = vpop.f32.mrf.mxu0
      %882 = vdwg.mxu0
      %883 = vmatpush.bf16.msra.mxu0 %v716
      %884 = vmatpush.bf16.msra.mxu0 %v715
      %885 = vmatpush.bf16.msra.mxu0 %v714
      %886 = vmatpush.bf16.msra.mxu0 %v713
      %887 = vmatpush.bf16.msra.mxu0 %v712
      %888 = vmatpush.bf16.msra.mxu0 %v711
      %889 = vmatpush.bf16.msra.mxu0 %v710
      %890 = vmatpush.bf16.msra.mxu0 %v709
      %891 = vmatmul.bf16.gmra.mxu0 %v364
      %v892 = vpop.f32.mrf.mxu0
      %v893 = vadd.f32 %v875, %v892
      %v894 = vpop.f32.mrf.mxu0
      %v895 = vadd.f32 %v877, %v894
      %896 = vmatmul.bf16.gmra.mxu0 %v373
      %v897 = vpop.f32.mrf.mxu0
      %v898 = vadd.f32 %v880, %v897
      %v899 = vpop.f32.mrf.mxu0
      %900 = vdwg.mxu0
      %901 = vmatpush.bf16.msra.mxu0 %v724
      %902 = vmatpush.bf16.msra.mxu0 %v723
      %903 = vmatpush.bf16.msra.mxu0 %v722
      %904 = vmatpush.bf16.msra.mxu0 %v721
      %905 = vmatpush.bf16.msra.mxu0 %v720
      %906 = vmatpush.bf16.msra.mxu0 %v719
      %907 = vmatpush.bf16.msra.mxu0 %v718
      %908 = vmatpush.bf16.msra.mxu0 %v717
      %909 = vmatmul.bf16.gmra.mxu0 %v365
      %v910 = vpop.f32.mrf.mxu0
      %v911 = vadd.f32 %v893, %v910
      %v912 = vpop.f32.mrf.mxu0
      %v913 = vadd.f32 %v895, %v912
      %914 = vmatmul.bf16.gmra.mxu0 %v374
      %v915 = vpop.f32.mrf.mxu0
      %v916 = vadd.f32 %v898, %v915
      %v917 = vpop.f32.mrf.mxu0
      %918 = vdwg.mxu0
      %919 = vmatpush.bf16.msra.mxu0 %v732
      %920 = vmatpush.bf16.msra.mxu0 %v731
      %921 = vmatpush.bf16.msra.mxu0 %v730
      %922 = vmatpush.bf16.msra.mxu0 %v729
      %923 = vmatpush.bf16.msra.mxu0 %v728
      %924 = vmatpush.bf16.msra.mxu0 %v727
      %925 = vmatpush.bf16.msra.mxu0 %v726
      %926 = vmatpush.bf16.msra.mxu0 %v725
      %927 = vmatmul.bf16.gmra.mxu0 %v366
      %v928 = vpop.f32.mrf.mxu0
      %v929 = vadd.f32 %v911, %v928
      %v930 = vpop.f32.mrf.mxu0
      %v931 = vadd.f32 %v913, %v930
      %932 = vmatmul.bf16.gmra.mxu0 %v375
      %v933 = vpop.f32.mrf.mxu0
      %v934 = vadd.f32 %v916, %v933
      %v935 = vpop.f32.mrf.mxu0
      %936 = vdwg.mxu0
      %937 = vmatpush.bf16.msra.mxu0 %v740
      %938 = vmatpush.bf16.msra.mxu0 %v739
      %939 = vmatpush.bf16.msra.mxu0 %v738
      %940 = vmatpush.bf16.msra.mxu0 %v737
      %941 = vmatpush.bf16.msra.mxu0 %v736
      %942 = vmatpush.bf16.msra.mxu0 %v735
      %943 = vmatpush.bf16.msra.mxu0 %v734
      %944 = vmatpush.bf16.msra.mxu0 %v733
      %945 = vmatmul.bf16.gmra.mxu0 %v367
      %v946 = vpop.f32.mrf.mxu0
      %v947 = vadd.f32 %v929, %v946
      %v948 = vpop.f32.mrf.mxu0
      %v949 = vadd.f32 %v931, %v948
      %950 = vmatmul.bf16.gmra.mxu0 %v376
      %v951 = vpop.f32.mrf.mxu0
      %v952 = vadd.f32 %v934, %v951
      %v953 = vpop.f32.mrf.mxu0
      %954 = vdwg.mxu0
      %955 = vmatpush.bf16.msra.mxu0 %v748
      %956 = vmatpush.bf16.msra.mxu0 %v747
      %957 = vmatpush.bf16.msra.mxu0 %v746
      %958 = vmatpush.bf16.msra.mxu0 %v745
      %959 = vmatpush.bf16.msra.mxu0 %v744
      %960 = vmatpush.bf16.msra.mxu0 %v743
      %961 = vmatpush.bf16.msra.mxu0 %v742
      %962 = vmatpush.bf16.msra.mxu0 %v741
      %963 = vmatmul.bf16.gmra.mxu0 %v368
      %v964 = vpop.f32.mrf.mxu0
      %v965 = vadd.f32 %v947, %v964
      %v966 = vpop.f32.mrf.mxu0
      %v967 = vadd.f32 %v949, %v966
      %968 = vmatmul.bf16.gmra.mxu0 %v377
      %v969 = vpop.f32.mrf.mxu0
      %v970 = vadd.f32 %v952, %v969
      %v971 = vpop.f32.mrf.mxu0
      %972 = vdwg.mxu0
      %973 = vmatpush.bf16.msra.mxu0 %v756
      %974 = vmatpush.bf16.msra.mxu0 %v755
      %975 = vmatpush.bf16.msra.mxu0 %v754
      %976 = vmatpush.bf16.msra.mxu0 %v753
      %977 = vmatpush.bf16.msra.mxu0 %v752
      %978 = vmatpush.bf16.msra.mxu0 %v751
      %979 = vmatpush.bf16.msra.mxu0 %v750
      %980 = vmatpush.bf16.msra.mxu0 %v749
      %981 = vmatmul.bf16.gmra.mxu0 %v369
      %v982 = vpop.f32.mrf.mxu0
      %v983 = vadd.f32 %v965, %v982
      %v984 = vpop.f32.mrf.mxu0
      %v985 = vadd.f32 %v967, %v984
      %986 = vmatmul.bf16.gmra.mxu0 %v378
      %v987 = vpop.f32.mrf.mxu0
      %v988 = vadd.f32 %v970, %v987
      %v989 = vpop.f32.mrf.mxu0
      %990 = vdwg.mxu0
      %v991 = vmax.f32 %v983, 0.0
      %v992 = vmax.f32 %v985, 0.0
      %v993 = vmax.f32 %v988, 0.0
      %v994 = vpack.c.bf16 %v991, %v991
      %v995 = vpack.c.bf16 %v992, %v992
      %v996 = vpack.c.bf16 %v993, %v993
      %p997 = scmp.eq.s32.totalorder %s14, 0
      // Predicated region
      $region33: #{shape_classifier_forward.6} parent=31 // pred_check
        %p998 = pneg %p997
      $region34: #{shape_classifier_forward.6} parent=31 // pred_check_branch
        %1000 = sbr.rel (%p998) target = $region36
      $region35: #{shape_classifier_forward.6} parent=31 // pred_region
        %1001 = vst [vmem:[%s3] sm:$0xf] %v994
        %1002 = vst [vmem:[%s3 + $0x4] sm:$0xf] %v995
        %1003 = vst [vmem:[%s3 + $0x8] sm:$0x1] %v996
      $region36: #{shape_classifier_forward.6} parent=31 // pred_fallthru
        _
      %p1004 = scmp.ne.s32.totalorder %s14, 0
      // Predicated region
      $region37: #{shape_classifier_forward.6} parent=31 // pred_check
        %p1005 = pneg %p1004
      $region38: #{shape_classifier_forward.6} parent=31 // pred_check_branch
        %1007 = sbr.rel (%p1005) target = $region40
      $region39: #{shape_classifier_forward.6} parent=31 // pred_region
        %v1008 = vld [vmem:[%s3] sm:$0xf]
        %v1009 = vld [vmem:[%s3 + $0x4] sm:$0xf]
        %v1010 = vld [vmem:[%s3 + $0x8] sm:$0x1]
        %v1011 = vunpack.c.l.bf16 %v1008
        %v1012 = vunpack.c.l.bf16 %v1009
        %v1013 = vunpack.c.l.bf16 %v1010
        %v1014 = vunpack.c.l.bf16 %v994
        %v1015 = vunpack.c.l.bf16 %v995
        %v1016 = vunpack.c.l.bf16 %v996
        %v1017 = vmax.f32 %v1011, %v1014
        %v1018 = vmax.f32 %v1012, %v1015
        %v1019 = vmax.f32 %v1013, %v1016
        %v1020 = vpack.c.bf16 %v1017, %v1017
        %v1021 = vpack.c.bf16 %v1018, %v1018
        %v1022 = vpack.c.bf16 %v1019, %v1019
        %1023 = vst [vmem:[%s3] sm:$0xf] %v1020
        %1024 = vst [vmem:[%s3 + $0x4] sm:$0xf] %v1021
        %1025 = vst [vmem:[%s3 + $0x8] sm:$0x1] %v1022
      $region40: #{shape_classifier_forward.6} parent=31 // pred_fallthru
        _
      // Predicated region
      $region41: #{shape_classifier_forward.6} parent=31 // pred_check
        %p1026 = pneg %p95
      $region42: #{shape_classifier_forward.6} parent=31 // pred_check_branch
        %1028 = sbr.rel (%p1026) target = $region44
      $region43: #{shape_classifier_forward.6} parent=31 // pred_region
        _
      $region44: #{shape_classifier_forward.6} parent=31 // pred_fallthru
        _
      // Predicated region
      $region45: #{shape_classifier_forward.6} parent=31 // pred_check
        %p1029 = pneg %p95
      $region46: #{shape_classifier_forward.6} parent=31 // pred_check_branch
        %1031 = sbr.rel (%p1029) target = $region48
      $region47: #{shape_classifier_forward.6} parent=31 // pred_region
        _
      $region48: #{shape_classifier_forward.6} parent=31 // pred_fallthru
        _
    $region32: #{shape_classifier_forward.6} parent=5 // pred_fallthru
      _
    %p1032 = scmp.le.s32.totalorder 2, %s9
    // Predicated region
    $region49: #{shape_classifier_forward.6} parent=5 // pred_check
      %p1033 = pneg %p1032
    $region50: #{shape_classifier_forward.6} parent=5 // pred_check_branch
      %1035 = sbr.rel (%p1033) target = $region52
    $region51: #{shape_classifier_forward.6} parent=5 // pred_region
      %s1036 = ssub.s32 %s9, 2
    $region52: #{shape_classifier_forward.6} parent=5 // pred_fallthru
      _
  $region6: #{shape_classifier_forward.6} parent=0 // loop_footer
    %s13 = sadd.s32 1, %s9
  $region7: #{shape_classifier_forward.6} parent=0 // loop_footer_branch
    %8 = sbr.rel target = $region3
  $region8: #{shape_classifier_forward.6} parent=0 // loop_exit
    _

// kernel: shape_classifier_forward.7
$region0: #{shape_classifier_forward.7}
  #allocation0 [shape = 'u32[]', space=smem, size = 0x4, offset = 0x4, fixed_abs, tag = 'smem constant byte address 0x4 - core index']
  #allocation1 [shape = 'u32[72,128]{1,0:T(1,128)}', space=vmem, size = 0x9000, scoped, tag = 'internal scratch']
  %s0 = inlined_call_operand.vmem [shape: bf16[2,1152], index: 0, kind: input, shape index: {}]
  %s1 = inlined_call_operand.vmem [shape: bf16[1152,256], index: 1, kind: input, shape index: {}]
  %s2 = inlined_call_operand.vmem [shape: f32[1,256], index: 2, kind: input, shape index: {}]
  %s3 = inlined_call_operand.vmem [shape: bf16[256,128], index: 3, kind: input, shape index: {}]
  %s4 = inlined_call_operand.vmem [shape: f32[1,128], index: 4, kind: input, shape index: {}]
  %s5 = inlined_call_operand.hbm [shape: f32[2,128], index: 5, kind: output, shape index: {}]
  %s6 = sld [smem:[#allocation0]]
  $region30: #{shape_classifier_forward.7} parent=0
    _
  %s8 = ssub.s32 1, %s6
  %s9 = scalar_select 0, %s8, %s6
  $region1: #{shape_classifier_forward.7} parent=0
    #allocation2 [shape = 'u8[1024]{0}', space=vmem, size = 0x400, scoped, tag = 'output window, operand 0, single buffered']
    #allocation3 [shape = 's32[1]{0}', space=sflag, size = 0x4, scoped, tag = 'scoped memory for shape_classifier_forward.7']
    %10 = vsyncpa [#allocation3], 0
    // Predicated region
    $region2: #{shape_classifier_forward.7} parent=1 // pred_check
      _
    $region3: #{shape_classifier_forward.7} parent=1 // pred_check_branch
      %12 = sbr.rel (0) target = $region5
    $region4: #{shape_classifier_forward.7} parent=1 // pred_region
      _
    $region5: #{shape_classifier_forward.7} parent=1 // pred_fallthru
      _
    // Predicated region
    $region6: #{shape_classifier_forward.7} parent=1 // pred_check
      _
    $region7: #{shape_classifier_forward.7} parent=1 // pred_check_branch
      %14 = sbr.rel (0) target = $region9
    $region8: #{shape_classifier_forward.7} parent=1 // pred_region
      _
    $region9: #{shape_classifier_forward.7} parent=1 // pred_fallthru
      _
    // Predicated region
    $region10: #{shape_classifier_forward.7} parent=1 // pred_check
      _
    $region11: #{shape_classifier_forward.7} parent=1 // pred_check_branch
      %16 = sbr.rel (0) target = $region13
    $region12: #{shape_classifier_forward.7} parent=1 // pred_region
      _
    $region13: #{shape_classifier_forward.7} parent=1 // pred_fallthru
      _
    // Predicated region
    $region14: #{shape_classifier_forward.7} parent=1 // pred_check
      _
    $region15: #{shape_classifier_forward.7} parent=1 // pred_check_branch
      %18 = sbr.rel (0) target = $region17
    $region16: #{shape_classifier_forward.7} parent=1 // pred_region
      _
    $region17: #{shape_classifier_forward.7} parent=1 // pred_fallthru
      _
    // Predicated region
    $region18: #{shape_classifier_forward.7} parent=1 // pred_check
      _
    $region19: #{shape_classifier_forward.7} parent=1 // pred_check_branch
      %20 = sbr.rel (0) target = $region21
    $region20: #{shape_classifier_forward.7} parent=1 // pred_region
      _
    $region21: #{shape_classifier_forward.7} parent=1 // pred_fallthru
      _
    %v21 = vld [vmem:[%s0] sm:$0xff]
    %v22 = vld [vmem:[%s0 + $0x8] sm:$0x1]
    %v23 = vld [vmem:[%s1] sm:$0xff]
    %v24 = vld [vmem:[%s1 + $0x8] sm:$0xff]
    %v25 = vld [vmem:[%s1 + $0x10] sm:$0xff]
    %v26 = vld [vmem:[%s1 + $0x18] sm:$0xff]
    %v27 = vld [vmem:[%s1 + $0x20] sm:$0xff]
    %v28 = vld [vmem:[%s1 + $0x28] sm:$0xff]
    %v29 = vld [vmem:[%s1 + $0x30] sm:$0xff]
    %v30 = vld [vmem:[%s1 + $0x38] sm:$0xff]
    %v31 = vld [vmem:[%s1 + $0x40] sm:$0xff]
    %v32 = vld [vmem:[%s1 + $0x48] sm:$0xff]
    %v33 = vld [vmem:[%s1 + $0x50] sm:$0xff]
    %v34 = vld [vmem:[%s1 + $0x58] sm:$0xff]
    %v35 = vld [vmem:[%s1 + $0x60] sm:$0xff]
    %v36 = vld [vmem:[%s1 + $0x68] sm:$0xff]
    %v37 = vld [vmem:[%s1 + $0x70] sm:$0xff]
    %v38 = vld [vmem:[%s1 + $0x78] sm:$0xff]
    %v39 = vld [vmem:[%s1 + $0x80] sm:$0xff]
    %v40 = vld [vmem:[%s1 + $0x88] sm:$0xff]
    %v41 = vld [vmem:[%s1 + $0x90] sm:$0xff]
    %v42 = vld [vmem:[%s1 + $0x98] sm:$0xff]
    %v43 = vld [vmem:[%s1 + $0xa0] sm:$0xff]
    %v44 = vld [vmem:[%s1 + $0xa8] sm:$0xff]
    %v45 = vld [vmem:[%s1 + $0xb0] sm:$0xff]
    %v46 = vld [vmem:[%s1 + $0xb8] sm:$0xff]
    %v47 = vld [vmem:[%s1 + $0xc0] sm:$0xff]
    %v48 = vld [vmem:[%s1 + $0xc8] sm:$0xff]
    %v49 = vld [vmem:[%s1 + $0xd0] sm:$0xff]
    %v50 = vld [vmem:[%s1 + $0xd8] sm:$0xff]
    %v51 = vld [vmem:[%s1 + $0xe0] sm:$0xff]
    %v52 = vld [vmem:[%s1 + $0xe8] sm:$0xff]
    %v53 = vld [vmem:[%s1 + $0xf0] sm:$0xff]
    %v54 = vld [vmem:[%s1 + $0xf8] sm:$0xff]
    %v55 = vld [vmem:[%s1 + $0x100] sm:$0xff]
    %v56 = vld [vmem:[%s1 + $0x108] sm:$0xff]
    %v57 = vld [vmem:[%s1 + $0x110] sm:$0xff]
    %v58 = vld [vmem:[%s1 + $0x118] sm:$0xff]
    %v59 = vld [vmem:[%s1 + $0x120] sm:$0xff]
    %v60 = vld [vmem:[%s1 + $0x128] sm:$0xff]
    %v61 = vld [vmem:[%s1 + $0x130] sm:$0xff]
    %v62 = vld [vmem:[%s1 + $0x138] sm:$0xff]
    %v63 = vld [vmem:[%s1 + $0x140] sm:$0xff]
    %v64 = vld [vmem:[%s1 + $0x148] sm:$0xff]
    %v65 = vld [vmem:[%s1 + $0x150] sm:$0xff]
    %v66 = vld [vmem:[%s1 + $0x158] sm:$0xff]
    %v67 = vld [vmem:[%s1 + $0x160] sm:$0xff]
    %v68 = vld [vmem:[%s1 + $0x168] sm:$0xff]
    %v69 = vld [vmem:[%s1 + $0x170] sm:$0xff]
    %v70 = vld [vmem:[%s1 + $0x178] sm:$0xff]
    %v71 = vld [vmem:[%s1 + $0x180] sm:$0xff]
    %v72 = vld [vmem:[%s1 + $0x188] sm:$0xff]
    %v73 = vld [vmem:[%s1 + $0x190] sm:$0xff]
    %v74 = vld [vmem:[%s1 + $0x198] sm:$0xff]
    %v75 = vld [vmem:[%s1 + $0x1a0] sm:$0xff]
    %v76 = vld [vmem:[%s1 + $0x1a8] sm:$0xff]
    %v77 = vld [vmem:[%s1 + $0x1b0] sm:$0xff]
    %v78 = vld [vmem:[%s1 + $0x1b8] sm:$0xff]
    %v79 = vld [vmem:[%s1 + $0x1c0] sm:$0xff]
    %v80 = vld [vmem:[%s1 + $0x1c8] sm:$0xff]
    %v81 = vld [vmem:[%s1 + $0x1d0] sm:$0xff]
    %v82 = vld [vmem:[%s1 + $0x1d8] sm:$0xff]
    %v83 = vld [vmem:[%s1 + $0x1e0] sm:$0xff]
    %v84 = vld [vmem:[%s1 + $0x1e8] sm:$0xff]
    %v85 = vld [vmem:[%s1 + $0x1f0] sm:$0xff]
    %v86 = vld [vmem:[%s1 + $0x1f8] sm:$0xff]
    %v87 = vld [vmem:[%s1 + $0x200] sm:$0xff]
    %v88 = vld [vmem:[%s1 + $0x208] sm:$0xff]
    %v89 = vld [vmem:[%s1 + $0x210] sm:$0xff]
    %v90 = vld [vmem:[%s1 + $0x218] sm:$0xff]
    %v91 = vld [vmem:[%s1 + $0x220] sm:$0xff]
    %v92 = vld [vmem:[%s1 + $0x228] sm:$0xff]
    %v93 = vld [vmem:[%s1 + $0x230] sm:$0xff]
    %v94 = vld [vmem:[%s1 + $0x238] sm:$0xff]
    %v95 = vld [vmem:[%s1 + $0x240] sm:$0xff]
    %v96 = vld [vmem:[%s1 + $0x248] sm:$0xff]
    %v97 = vld [vmem:[%s1 + $0x250] sm:$0xff]
    %v98 = vld [vmem:[%s1 + $0x258] sm:$0xff]
    %v99 = vld [vmem:[%s1 + $0x260] sm:$0xff]
    %v100 = vld [vmem:[%s1 + $0x268] sm:$0xff]
    %v101 = vld [vmem:[%s1 + $0x270] sm:$0xff]
    %v102 = vld [vmem:[%s1 + $0x278] sm:$0xff]
    %v103 = vld [vmem:[%s1 + $0x280] sm:$0xff]
    %v104 = vld [vmem:[%s1 + $0x288] sm:$0xff]
    %v105 = vld [vmem:[%s1 + $0x290] sm:$0xff]
    %v106 = vld [vmem:[%s1 + $0x298] sm:$0xff]
    %v107 = vld [vmem:[%s1 + $0x2a0] sm:$0xff]
    %v108 = vld [vmem:[%s1 + $0x2a8] sm:$0xff]
    %v109 = vld [vmem:[%s1 + $0x2b0] sm:$0xff]
    %v110 = vld [vmem:[%s1 + $0x2b8] sm:$0xff]
    %v111 = vld [vmem:[%s1 + $0x2c0] sm:$0xff]
    %v112 = vld [vmem:[%s1 + $0x2c8] sm:$0xff]
    %v113 = vld [vmem:[%s1 + $0x2d0] sm:$0xff]
    %v114 = vld [vmem:[%s1 + $0x2d8] sm:$0xff]
    %v115 = vld [vmem:[%s1 + $0x2e0] sm:$0xff]
    %v116 = vld [vmem:[%s1 + $0x2e8] sm:$0xff]
    %v117 = vld [vmem:[%s1 + $0x2f0] sm:$0xff]
    %v118 = vld [vmem:[%s1 + $0x2f8] sm:$0xff]
    %v119 = vld [vmem:[%s1 + $0x300] sm:$0xff]
    %v120 = vld [vmem:[%s1 + $0x308] sm:$0xff]
    %v121 = vld [vmem:[%s1 + $0x310] sm:$0xff]
    %v122 = vld [vmem:[%s1 + $0x318] sm:$0xff]
    %v123 = vld [vmem:[%s1 + $0x320] sm:$0xff]
    %v124 = vld [vmem:[%s1 + $0x328] sm:$0xff]
    %v125 = vld [vmem:[%s1 + $0x330] sm:$0xff]
    %v126 = vld [vmem:[%s1 + $0x338] sm:$0xff]
    %v127 = vld [vmem:[%s1 + $0x340] sm:$0xff]
    %v128 = vld [vmem:[%s1 + $0x348] sm:$0xff]
    %v129 = vld [vmem:[%s1 + $0x350] sm:$0xff]
    %v130 = vld [vmem:[%s1 + $0x358] sm:$0xff]
    %v131 = vld [vmem:[%s1 + $0x360] sm:$0xff]
    %v132 = vld [vmem:[%s1 + $0x368] sm:$0xff]
    %v133 = vld [vmem:[%s1 + $0x370] sm:$0xff]
    %v134 = vld [vmem:[%s1 + $0x378] sm:$0xff]
    %v135 = vld [vmem:[%s1 + $0x380] sm:$0xff]
    %v136 = vld [vmem:[%s1 + $0x388] sm:$0xff]
    %v137 = vld [vmem:[%s1 + $0x390] sm:$0xff]
    %v138 = vld [vmem:[%s1 + $0x398] sm:$0xff]
    %v139 = vld [vmem:[%s1 + $0x3a0] sm:$0xff]
    %v140 = vld [vmem:[%s1 + $0x3a8] sm:$0xff]
    %v141 = vld [vmem:[%s1 + $0x3b0] sm:$0xff]
    %v142 = vld [vmem:[%s1 + $0x3b8] sm:$0xff]
    %v143 = vld [vmem:[%s1 + $0x3c0] sm:$0xff]
    %v144 = vld [vmem:[%s1 + $0x3c8] sm:$0xff]
    %v145 = vld [vmem:[%s1 + $0x3d0] sm:$0xff]
    %v146 = vld [vmem:[%s1 + $0x3d8] sm:$0xff]
    %v147 = vld [vmem:[%s1 + $0x3e0] sm:$0xff]
    %v148 = vld [vmem:[%s1 + $0x3e8] sm:$0xff]
    %v149 = vld [vmem:[%s1 + $0x3f0] sm:$0xff]
    %v150 = vld [vmem:[%s1 + $0x3f8] sm:$0xff]
    %v151 = vld [vmem:[%s1 + $0x400] sm:$0xff]
    %v152 = vld [vmem:[%s1 + $0x408] sm:$0xff]
    %v153 = vld [vmem:[%s1 + $0x410] sm:$0xff]
    %v154 = vld [vmem:[%s1 + $0x418] sm:$0xff]
    %v155 = vld [vmem:[%s1 + $0x420] sm:$0xff]
    %v156 = vld [vmem:[%s1 + $0x428] sm:$0xff]
    %v157 = vld [vmem:[%s1 + $0x430] sm:$0xff]
    %v158 = vld [vmem:[%s1 + $0x438] sm:$0xff]
    %v159 = vld [vmem:[%s1 + $0x440] sm:$0xff]
    %v160 = vld [vmem:[%s1 + $0x448] sm:$0xff]
    %v161 = vld [vmem:[%s1 + $0x450] sm:$0xff]
    %v162 = vld [vmem:[%s1 + $0x458] sm:$0xff]
    %v163 = vld [vmem:[%s1 + $0x460] sm:$0xff]
    %v164 = vld [vmem:[%s1 + $0x468] sm:$0xff]
    %v165 = vld [vmem:[%s1 + $0x470] sm:$0xff]
    %v166 = vld [vmem:[%s1 + $0x478] sm:$0xff]
    %v167 = vld [vmem:[%s2] sm:$0x3]
    %v169 = vperm.slane %v167, 0
    %v170 = vperm.slane %v167, 1
    %174 = vst [vmem:[#allocation1] ss:$9 sm:$0xff] %v21
    %v175 = vld [vmem:[#allocation1] sm:$0xff]
    %v176 = vld [vmem:[#allocation1 + $0x9] sm:$0xff]
    %v177 = vld [vmem:[#allocation1 + $0x12] sm:$0xff]
    %v178 = vld [vmem:[#allocation1 + $0x1b] sm:$0xff]
    %v179 = vld [vmem:[#allocation1 + $0x24] sm:$0xff]
    %v180 = vld [vmem:[#allocation1 + $0x2d] sm:$0xff]
    %v181 = vld [vmem:[#allocation1 + $0x36] sm:$0xff]
    %v182 = vld [vmem:[#allocation1 + $0x3f] sm:$0xff]
    %184 = vst [vmem:[#allocation1] ss:$9 sm:$0xff] %v22
    %v185 = vld [vmem:[#allocation1] sm:$0xff]
    %v339 = vunpack.c.l.b16 %v23
    %v340 = vunpack.c.h.b16 %v23
    %v341 = vunpack.c.l.b16 %v24
    %v342 = vunpack.c.h.b16 %v24
    %v343 = vunpack.c.l.b16 %v25
    %v344 = vunpack.c.h.b16 %v25
    %v345 = vunpack.c.l.b16 %v26
    %v346 = vunpack.c.h.b16 %v26
    %v347 = vunpack.c.l.b16 %v27
    %v348 = vunpack.c.h.b16 %v27
    %v349 = vunpack.c.l.b16 %v28
    %v350 = vunpack.c.h.b16 %v28
    %v351 = vunpack.c.l.b16 %v29
    %v352 = vunpack.c.h.b16 %v29
    %v353 = vunpack.c.l.b16 %v30
    %v354 = vunpack.c.h.b16 %v30
    %v355 = vunpack.c.l.b16 %v31
    %v356 = vunpack.c.h.b16 %v31
    %v357 = vunpack.c.l.b16 %v32
    %v358 = vunpack.c.h.b16 %v32
    %v359 = vunpack.c.l.b16 %v33
    %v360 = vunpack.c.h.b16 %v33
    %v361 = vunpack.c.l.b16 %v34
    %v362 = vunpack.c.h.b16 %v34
    %v363 = vunpack.c.l.b16 %v35
    %v364 = vunpack.c.h.b16 %v35
    %v365 = vunpack.c.l.b16 %v36
    %v366 = vunpack.c.h.b16 %v36
    %v367 = vunpack.c.l.b16 %v37
    %v368 = vunpack.c.h.b16 %v37
    %v369 = vunpack.c.l.b16 %v38
    %v370 = vunpack.c.h.b16 %v38
    %v371 = vunpack.c.l.b16 %v39
    %v372 = vunpack.c.h.b16 %v39
    %v373 = vunpack.c.l.b16 %v40
    %v374 = vunpack.c.h.b16 %v40
    %v375 = vunpack.c.l.b16 %v41
    %v376 = vunpack.c.h.b16 %v41
    %v377 = vunpack.c.l.b16 %v42
    %v378 = vunpack.c.h.b16 %v42
    %v379 = vunpack.c.l.b16 %v43
    %v380 = vunpack.c.h.b16 %v43
    %v381 = vunpack.c.l.b16 %v44
    %v382 = vunpack.c.h.b16 %v44
    %v383 = vunpack.c.l.b16 %v45
    %v384 = vunpack.c.h.b16 %v45
    %v385 = vunpack.c.l.b16 %v46
    %v386 = vunpack.c.h.b16 %v46
    %v387 = vunpack.c.l.b16 %v47
    %v388 = vunpack.c.h.b16 %v47
    %v389 = vunpack.c.l.b16 %v48
    %v390 = vunpack.c.h.b16 %v48
    %v391 = vunpack.c.l.b16 %v49
    %v392 = vunpack.c.h.b16 %v49
    %v393 = vunpack.c.l.b16 %v50
    %v394 = vunpack.c.h.b16 %v50
    %v395 = vunpack.c.l.b16 %v51
    %v396 = vunpack.c.h.b16 %v51
    %v397 = vunpack.c.l.b16 %v52
    %v398 = vunpack.c.h.b16 %v52
    %v399 = vunpack.c.l.b16 %v53
    %v400 = vunpack.c.h.b16 %v53
    %v401 = vunpack.c.l.b16 %v54
    %v402 = vunpack.c.h.b16 %v54
    %v403 = vunpack.c.l.b16 %v55
    %v404 = vunpack.c.h.b16 %v55
    %v405 = vunpack.c.l.b16 %v56
    %v406 = vunpack.c.h.b16 %v56
    %v407 = vunpack.c.l.b16 %v57
    %v408 = vunpack.c.h.b16 %v57
    %v409 = vunpack.c.l.b16 %v58
    %v410 = vunpack.c.h.b16 %v58
    %v411 = vunpack.c.l.b16 %v59
    %v412 = vunpack.c.h.b16 %v59
    %v413 = vunpack.c.l.b16 %v60
    %v414 = vunpack.c.h.b16 %v60
    %v415 = vunpack.c.l.b16 %v61
    %v416 = vunpack.c.h.b16 %v61
    %v417 = vunpack.c.l.b16 %v62
    %v418 = vunpack.c.h.b16 %v62
    %v419 = vunpack.c.l.b16 %v63
    %v420 = vunpack.c.h.b16 %v63
    %v421 = vunpack.c.l.b16 %v64
    %v422 = vunpack.c.h.b16 %v64
    %v423 = vunpack.c.l.b16 %v65
    %v424 = vunpack.c.h.b16 %v65
    %v425 = vunpack.c.l.b16 %v66
    %v426 = vunpack.c.h.b16 %v66
    %v427 = vunpack.c.l.b16 %v67
    %v428 = vunpack.c.h.b16 %v67
    %v429 = vunpack.c.l.b16 %v68
    %v430 = vunpack.c.h.b16 %v68
    %v431 = vunpack.c.l.b16 %v69
    %v432 = vunpack.c.h.b16 %v69
    %v433 = vunpack.c.l.b16 %v70
    %v434 = vunpack.c.h.b16 %v70
    %v435 = vunpack.c.l.b16 %v71
    %v436 = vunpack.c.h.b16 %v71
    %v437 = vunpack.c.l.b16 %v72
    %v438 = vunpack.c.h.b16 %v72
    %v439 = vunpack.c.l.b16 %v73
    %v440 = vunpack.c.h.b16 %v73
    %v441 = vunpack.c.l.b16 %v74
    %v442 = vunpack.c.h.b16 %v74
    %v443 = vunpack.c.l.b16 %v75
    %v444 = vunpack.c.h.b16 %v75
    %v445 = vunpack.c.l.b16 %v76
    %v446 = vunpack.c.h.b16 %v76
    %v447 = vunpack.c.l.b16 %v77
    %v448 = vunpack.c.h.b16 %v77
    %v449 = vunpack.c.l.b16 %v78
    %v450 = vunpack.c.h.b16 %v78
    %v451 = vunpack.c.l.b16 %v79
    %v452 = vunpack.c.h.b16 %v79
    %v453 = vunpack.c.l.b16 %v80
    %v454 = vunpack.c.h.b16 %v80
    %v455 = vunpack.c.l.b16 %v81
    %v456 = vunpack.c.h.b16 %v81
    %v457 = vunpack.c.l.b16 %v82
    %v458 = vunpack.c.h.b16 %v82
    %v459 = vunpack.c.l.b16 %v83
    %v460 = vunpack.c.h.b16 %v83
    %v461 = vunpack.c.l.b16 %v84
    %v462 = vunpack.c.h.b16 %v84
    %v463 = vunpack.c.l.b16 %v85
    %v464 = vunpack.c.h.b16 %v85
    %v465 = vunpack.c.l.b16 %v86
    %v466 = vunpack.c.h.b16 %v86
    %v467 = vunpack.c.l.b16 %v87
    %v468 = vunpack.c.h.b16 %v87
    %v469 = vunpack.c.l.b16 %v88
    %v470 = vunpack.c.h.b16 %v88
    %v471 = vunpack.c.l.b16 %v89
    %v472 = vunpack.c.h.b16 %v89
    %v473 = vunpack.c.l.b16 %v90
    %v474 = vunpack.c.h.b16 %v90
    %v475 = vunpack.c.l.b16 %v91
    %v476 = vunpack.c.h.b16 %v91
    %v477 = vunpack.c.l.b16 %v92
    %v478 = vunpack.c.h.b16 %v92
    %v479 = vunpack.c.l.b16 %v93
    %v480 = vunpack.c.h.b16 %v93
    %v481 = vunpack.c.l.b16 %v94
    %v482 = vunpack.c.h.b16 %v94
    %v483 = vunpack.c.l.b16 %v95
    %v484 = vunpack.c.h.b16 %v95
    %v485 = vunpack.c.l.b16 %v96
    %v486 = vunpack.c.h.b16 %v96
    %v487 = vunpack.c.l.b16 %v97
    %v488 = vunpack.c.h.b16 %v97
    %v489 = vunpack.c.l.b16 %v98
    %v490 = vunpack.c.h.b16 %v98
    %v491 = vunpack.c.l.b16 %v99
    %v492 = vunpack.c.h.b16 %v99
    %v493 = vunpack.c.l.b16 %v100
    %v494 = vunpack.c.h.b16 %v100
    %v495 = vunpack.c.l.b16 %v101
    %v496 = vunpack.c.h.b16 %v101
    %v497 = vunpack.c.l.b16 %v102
    %v498 = vunpack.c.h.b16 %v102
    %v499 = vunpack.c.l.b16 %v103
    %v500 = vunpack.c.h.b16 %v103
    %v501 = vunpack.c.l.b16 %v104
    %v502 = vunpack.c.h.b16 %v104
    %v503 = vunpack.c.l.b16 %v105
    %v504 = vunpack.c.h.b16 %v105
    %v505 = vunpack.c.l.b16 %v106
    %v506 = vunpack.c.h.b16 %v106
    %v507 = vunpack.c.l.b16 %v107
    %v508 = vunpack.c.h.b16 %v107
    %v509 = vunpack.c.l.b16 %v108
    %v510 = vunpack.c.h.b16 %v108
    %v511 = vunpack.c.l.b16 %v109
    %v512 = vunpack.c.h.b16 %v109
    %v513 = vunpack.c.l.b16 %v110
    %v514 = vunpack.c.h.b16 %v110
    %v515 = vunpack.c.l.b16 %v111
    %v516 = vunpack.c.h.b16 %v111
    %v517 = vunpack.c.l.b16 %v112
    %v518 = vunpack.c.h.b16 %v112
    %v519 = vunpack.c.l.b16 %v113
    %v520 = vunpack.c.h.b16 %v113
    %v521 = vunpack.c.l.b16 %v114
    %v522 = vunpack.c.h.b16 %v114
    %v523 = vunpack.c.l.b16 %v115
    %v524 = vunpack.c.h.b16 %v115
    %v525 = vunpack.c.l.b16 %v116
    %v526 = vunpack.c.h.b16 %v116
    %v527 = vunpack.c.l.b16 %v117
    %v528 = vunpack.c.h.b16 %v117
    %v529 = vunpack.c.l.b16 %v118
    %v530 = vunpack.c.h.b16 %v118
    %v531 = vunpack.c.l.b16 %v119
    %v532 = vunpack.c.h.b16 %v119
    %v533 = vunpack.c.l.b16 %v120
    %v534 = vunpack.c.h.b16 %v120
    %v535 = vunpack.c.l.b16 %v121
    %v536 = vunpack.c.h.b16 %v121
    %v537 = vunpack.c.l.b16 %v122
    %v538 = vunpack.c.h.b16 %v122
    %v539 = vunpack.c.l.b16 %v123
    %v540 = vunpack.c.h.b16 %v123
    %v541 = vunpack.c.l.b16 %v124
    %v542 = vunpack.c.h.b16 %v124
    %v543 = vunpack.c.l.b16 %v125
    %v544 = vunpack.c.h.b16 %v125
    %v545 = vunpack.c.l.b16 %v126
    %v546 = vunpack.c.h.b16 %v126
    %v547 = vunpack.c.l.b16 %v127
    %v548 = vunpack.c.h.b16 %v127
    %v549 = vunpack.c.l.b16 %v128
    %v550 = vunpack.c.h.b16 %v128
    %v551 = vunpack.c.l.b16 %v129
    %v552 = vunpack.c.h.b16 %v129
    %v553 = vunpack.c.l.b16 %v130
    %v554 = vunpack.c.h.b16 %v130
    %v555 = vunpack.c.l.b16 %v131
    %v556 = vunpack.c.h.b16 %v131
    %v557 = vunpack.c.l.b16 %v132
    %v558 = vunpack.c.h.b16 %v132
    %v559 = vunpack.c.l.b16 %v133
    %v560 = vunpack.c.h.b16 %v133
    %v561 = vunpack.c.l.b16 %v134
    %v562 = vunpack.c.h.b16 %v134
    %v563 = vunpack.c.l.b16 %v135
    %v564 = vunpack.c.h.b16 %v135
    %v565 = vunpack.c.l.b16 %v136
    %v566 = vunpack.c.h.b16 %v136
    %v567 = vunpack.c.l.b16 %v137
    %v568 = vunpack.c.h.b16 %v137
    %v569 = vunpack.c.l.b16 %v138
    %v570 = vunpack.c.h.b16 %v138
    %v571 = vunpack.c.l.b16 %v139
    %v572 = vunpack.c.h.b16 %v139
    %v573 = vunpack.c.l.b16 %v140
    %v574 = vunpack.c.h.b16 %v140
    %v575 = vunpack.c.l.b16 %v141
    %v576 = vunpack.c.h.b16 %v141
    %v577 = vunpack.c.l.b16 %v142
    %v578 = vunpack.c.h.b16 %v142
    %v579 = vunpack.c.l.b16 %v143
    %v580 = vunpack.c.h.b16 %v143
    %v581 = vunpack.c.l.b16 %v144
    %v582 = vunpack.c.h.b16 %v144
    %v583 = vunpack.c.l.b16 %v145
    %v584 = vunpack.c.h.b16 %v145
    %v585 = vunpack.c.l.b16 %v146
    %v586 = vunpack.c.h.b16 %v146
    %v587 = vunpack.c.l.b16 %v147
    %v588 = vunpack.c.h.b16 %v147
    %v589 = vunpack.c.l.b16 %v148
    %v590 = vunpack.c.h.b16 %v148
    %v591 = vunpack.c.l.b16 %v149
    %v592 = vunpack.c.h.b16 %v149
    %v593 = vunpack.c.l.b16 %v150
    %v594 = vunpack.c.h.b16 %v150
    %v595 = vunpack.c.l.b16 %v151
    %v596 = vunpack.c.h.b16 %v151
    %v597 = vunpack.c.l.b16 %v152
    %v598 = vunpack.c.h.b16 %v152
    %v599 = vunpack.c.l.b16 %v153
    %v600 = vunpack.c.h.b16 %v153
    %v601 = vunpack.c.l.b16 %v154
    %v602 = vunpack.c.h.b16 %v154
    %v603 = vunpack.c.l.b16 %v155
    %v604 = vunpack.c.h.b16 %v155
    %v605 = vunpack.c.l.b16 %v156
    %v606 = vunpack.c.h.b16 %v156
    %v607 = vunpack.c.l.b16 %v157
    %v608 = vunpack.c.h.b16 %v157
    %v609 = vunpack.c.l.b16 %v158
    %v610 = vunpack.c.h.b16 %v158
    %v611 = vunpack.c.l.b16 %v159
    %v612 = vunpack.c.h.b16 %v159
    %v613 = vunpack.c.l.b16 %v160
    %v614 = vunpack.c.h.b16 %v160
    %v615 = vunpack.c.l.b16 %v161
    %v616 = vunpack.c.h.b16 %v161
    %v617 = vunpack.c.l.b16 %v162
    %v618 = vunpack.c.h.b16 %v162
    %v619 = vunpack.c.l.b16 %v163
    %v620 = vunpack.c.h.b16 %v163
    %v621 = vunpack.c.l.b16 %v164
    %v622 = vunpack.c.h.b16 %v164
    %v623 = vunpack.c.l.b16 %v165
    %v624 = vunpack.c.h.b16 %v165
    %v625 = vunpack.c.l.b16 %v166
    %v626 = vunpack.c.h.b16 %v166
    %v627 = vpack.c.b16 %v341, %v339
    %v628 = vpack.c.b16 %v342, %v340
    %v629 = vpack.c.b16 %v345, %v343
    %v630 = vpack.c.b16 %v346, %v344
    %v631 = vpack.c.b16 %v349, %v347
    %v632 = vpack.c.b16 %v350, %v348
    %v633 = vpack.c.b16 %v353, %v351
    %v634 = vpack.c.b16 %v354, %v352
    %v635 = vpack.c.b16 %v357, %v355
    %v636 = vpack.c.b16 %v358, %v356
    %v637 = vpack.c.b16 %v361, %v359
    %v638 = vpack.c.b16 %v362, %v360
    %v639 = vpack.c.b16 %v365, %v363
    %v640 = vpack.c.b16 %v366, %v364
    %v641 = vpack.c.b16 %v369, %v367
    %v642 = vpack.c.b16 %v370, %v368
    %v643 = vpack.c.b16 %v373, %v371
    %v644 = vpack.c.b16 %v374, %v372
    %v645 = vpack.c.b16 %v377, %v375
    %v646 = vpack.c.b16 %v378, %v376
    %v647 = vpack.c.b16 %v381, %v379
    %v648 = vpack.c.b16 %v382, %v380
    %v649 = vpack.c.b16 %v385, %v383
    %v650 = vpack.c.b16 %v386, %v384
    %v651 = vpack.c.b16 %v389, %v387
    %v652 = vpack.c.b16 %v390, %v388
    %v653 = vpack.c.b16 %v393, %v391
    %v654 = vpack.c.b16 %v394, %v392
    %v655 = vpack.c.b16 %v397, %v395
    %v656 = vpack.c.b16 %v398, %v396
    %v657 = vpack.c.b16 %v401, %v399
    %v658 = vpack.c.b16 %v402, %v400
    %v659 = vpack.c.b16 %v405, %v403
    %v660 = vpack.c.b16 %v406, %v404
    %v661 = vpack.c.b16 %v409, %v407
    %v662 = vpack.c.b16 %v410, %v408
    %v663 = vpack.c.b16 %v413, %v411
    %v664 = vpack.c.b16 %v414, %v412
    %v665 = vpack.c.b16 %v417, %v415
    %v666 = vpack.c.b16 %v418, %v416
    %v667 = vpack.c.b16 %v421, %v419
    %v668 = vpack.c.b16 %v422, %v420
    %v669 = vpack.c.b16 %v425, %v423
    %v670 = vpack.c.b16 %v426, %v424
    %v671 = vpack.c.b16 %v429, %v427
    %v672 = vpack.c.b16 %v430, %v428
    %v673 = vpack.c.b16 %v433, %v431
    %v674 = vpack.c.b16 %v434, %v432
    %v675 = vpack.c.b16 %v437, %v435
    %v676 = vpack.c.b16 %v438, %v436
    %v677 = vpack.c.b16 %v441, %v439
    %v678 = vpack.c.b16 %v442, %v440
    %v679 = vpack.c.b16 %v445, %v443
    %v680 = vpack.c.b16 %v446, %v444
    %v681 = vpack.c.b16 %v449, %v447
    %v682 = vpack.c.b16 %v450, %v448
    %v683 = vpack.c.b16 %v453, %v451
    %v684 = vpack.c.b16 %v454, %v452
    %v685 = vpack.c.b16 %v457, %v455
    %v686 = vpack.c.b16 %v458, %v456
    %v687 = vpack.c.b16 %v461, %v459
    %v688 = vpack.c.b16 %v462, %v460
    %v689 = vpack.c.b16 %v465, %v463
    %v690 = vpack.c.b16 %v466, %v464
    %v691 = vpack.c.b16 %v469, %v467
    %v692 = vpack.c.b16 %v470, %v468
    %v693 = vpack.c.b16 %v473, %v471
    %v694 = vpack.c.b16 %v474, %v472
    %v695 = vpack.c.b16 %v477, %v475
    %v696 = vpack.c.b16 %v478, %v476
    %v697 = vpack.c.b16 %v481, %v479
    %v698 = vpack.c.b16 %v482, %v480
    %v699 = vpack.c.b16 %v485, %v483
    %v700 = vpack.c.b16 %v486, %v484
    %v701 = vpack.c.b16 %v489, %v487
    %v702 = vpack.c.b16 %v490, %v488
    %v703 = vpack.c.b16 %v493, %v491
    %v704 = vpack.c.b16 %v494, %v492
    %v705 = vpack.c.b16 %v497, %v495
    %v706 = vpack.c.b16 %v498, %v496
    %v707 = vpack.c.b16 %v501, %v499
    %v708 = vpack.c.b16 %v502, %v500
    %v709 = vpack.c.b16 %v505, %v503
    %v710 = vpack.c.b16 %v506, %v504
    %v711 = vpack.c.b16 %v509, %v507
    %v712 = vpack.c.b16 %v510, %v508
    %v713 = vpack.c.b16 %v513, %v511
    %v714 = vpack.c.b16 %v514, %v512
    %v715 = vpack.c.b16 %v517, %v515
    %v716 = vpack.c.b16 %v518, %v516
    %v717 = vpack.c.b16 %v521, %v519
    %v718 = vpack.c.b16 %v522, %v520
    %v719 = vpack.c.b16 %v525, %v523
    %v720 = vpack.c.b16 %v526, %v524
    %v721 = vpack.c.b16 %v529, %v527
    %v722 = vpack.c.b16 %v530, %v528
    %v723 = vpack.c.b16 %v533, %v531
    %v724 = vpack.c.b16 %v534, %v532
    %v725 = vpack.c.b16 %v537, %v535
    %v726 = vpack.c.b16 %v538, %v536
    %v727 = vpack.c.b16 %v541, %v539
    %v728 = vpack.c.b16 %v542, %v540
    %v729 = vpack.c.b16 %v545, %v543
    %v730 = vpack.c.b16 %v546, %v544
    %v731 = vpack.c.b16 %v549, %v547
    %v732 = vpack.c.b16 %v550, %v548
    %v733 = vpack.c.b16 %v553, %v551
    %v734 = vpack.c.b16 %v554, %v552
    %v735 = vpack.c.b16 %v557, %v555
    %v736 = vpack.c.b16 %v558, %v556
    %v737 = vpack.c.b16 %v561, %v559
    %v738 = vpack.c.b16 %v562, %v560
    %v739 = vpack.c.b16 %v565, %v563
    %v740 = vpack.c.b16 %v566, %v564
    %v741 = vpack.c.b16 %v569, %v567
    %v742 = vpack.c.b16 %v570, %v568
    %v743 = vpack.c.b16 %v573, %v571
    %v744 = vpack.c.b16 %v574, %v572
    %v745 = vpack.c.b16 %v577, %v575
    %v746 = vpack.c.b16 %v578, %v576
    %v747 = vpack.c.b16 %v581, %v579
    %v748 = vpack.c.b16 %v582, %v580
    %v749 = vpack.c.b16 %v585, %v583
    %v750 = vpack.c.b16 %v586, %v584
    %v751 = vpack.c.b16 %v589, %v587
    %v752 = vpack.c.b16 %v590, %v588
    %v753 = vpack.c.b16 %v593, %v591
    %v754 = vpack.c.b16 %v594, %v592
    %v755 = vpack.c.b16 %v597, %v595
    %v756 = vpack.c.b16 %v598, %v596
    %v757 = vpack.c.b16 %v601, %v599
    %v758 = vpack.c.b16 %v602, %v600
    %v759 = vpack.c.b16 %v605, %v603
    %v760 = vpack.c.b16 %v606, %v604
    %v761 = vpack.c.b16 %v609, %v607
    %v762 = vpack.c.b16 %v610, %v608
    %v763 = vpack.c.b16 %v613, %v611
    %v764 = vpack.c.b16 %v614, %v612
    %v765 = vpack.c.b16 %v617, %v615
    %v766 = vpack.c.b16 %v618, %v616
    %v767 = vpack.c.b16 %v621, %v619
    %v768 = vpack.c.b16 %v622, %v620
    %v769 = vpack.c.b16 %v625, %v623
    %v770 = vpack.c.b16 %v626, %v624
    %915 = vmatpush.bf16.msra.mxu0 %v641
    %916 = vmatpush.bf16.msra.mxu0 %v639
    %917 = vmatpush.bf16.msra.mxu0 %v637
    %918 = vmatpush.bf16.msra.mxu0 %v635
    %919 = vmatpush.bf16.msra.mxu0 %v633
    %920 = vmatpush.bf16.msra.mxu0 %v631
    %921 = vmatpush.bf16.msra.mxu0 %v629
    %922 = vmatpush.bf16.msra.mxu0 %v627
    %923 = vmatmul.bf16.gmra.mxu0 %v175
    %v924 = vpop.f32.mrf.mxu0
    %v925 = vadd.f32 %v169, %v924
    %v926 = vpop.f32.mrf.mxu0
    %927 = vdwg.mxu0
    %928 = vmatpush.bf16.msra.mxu0 %v657
    %929 = vmatpush.bf16.msra.mxu0 %v655
    %930 = vmatpush.bf16.msra.mxu0 %v653
    %931 = vmatpush.bf16.msra.mxu0 %v651
    %932 = vmatpush.bf16.msra.mxu0 %v649
    %933 = vmatpush.bf16.msra.mxu0 %v647
    %934 = vmatpush.bf16.msra.mxu0 %v645
    %935 = vmatpush.bf16.msra.mxu0 %v643
    %936 = vmatmul.bf16.gmra.mxu0 %v176
    %v937 = vpop.f32.mrf.mxu0
    %v938 = vadd.f32 %v925, %v937
    %v939 = vpop.f32.mrf.mxu0
    %940 = vdwg.mxu0
    %941 = vmatpush.bf16.msra.mxu0 %v673
    %942 = vmatpush.bf16.msra.mxu0 %v671
    %943 = vmatpush.bf16.msra.mxu0 %v669
    %944 = vmatpush.bf16.msra.mxu0 %v667
    %945 = vmatpush.bf16.msra.mxu0 %v665
    %946 = vmatpush.bf16.msra.mxu0 %v663
    %947 = vmatpush.bf16.msra.mxu0 %v661
    %948 = vmatpush.bf16.msra.mxu0 %v659
    %949 = vmatmul.bf16.gmra.mxu0 %v177
    %v950 = vpop.f32.mrf.mxu0
    %v951 = vadd.f32 %v938, %v950
    %v952 = vpop.f32.mrf.mxu0
    %953 = vdwg.mxu0
    %954 = vmatpush.bf16.msra.mxu0 %v689
    %955 = vmatpush.bf16.msra.mxu0 %v687
    %956 = vmatpush.bf16.msra.mxu0 %v685
    %957 = vmatpush.bf16.msra.mxu0 %v683
    %958 = vmatpush.bf16.msra.mxu0 %v681
    %959 = vmatpush.bf16.msra.mxu0 %v679
    %960 = vmatpush.bf16.msra.mxu0 %v677
    %961 = vmatpush.bf16.msra.mxu0 %v675
    %962 = vmatmul.bf16.gmra.mxu0 %v178
    %v963 = vpop.f32.mrf.mxu0
    %v964 = vadd.f32 %v951, %v963
    %v965 = vpop.f32.mrf.mxu0
    %966 = vdwg.mxu0
    %967 = vmatpush.bf16.msra.mxu0 %v705
    %968 = vmatpush.bf16.msra.mxu0 %v703
    %969 = vmatpush.bf16.msra.mxu0 %v701
    %970 = vmatpush.bf16.msra.mxu0 %v699
    %971 = vmatpush.bf16.msra.mxu0 %v697
    %972 = vmatpush.bf16.msra.mxu0 %v695
    %973 = vmatpush.bf16.msra.mxu0 %v693
    %974 = vmatpush.bf16.msra.mxu0 %v691
    %975 = vmatmul.bf16.gmra.mxu0 %v179
    %v976 = vpop.f32.mrf.mxu0
    %v977 = vadd.f32 %v964, %v976
    %v978 = vpop.f32.mrf.mxu0
    %979 = vdwg.mxu0
    %980 = vmatpush.bf16.msra.mxu0 %v721
    %981 = vmatpush.bf16.msra.mxu0 %v719
    %982 = vmatpush.bf16.msra.mxu0 %v717
    %983 = vmatpush.bf16.msra.mxu0 %v715
    %984 = vmatpush.bf16.msra.mxu0 %v713
    %985 = vmatpush.bf16.msra.mxu0 %v711
    %986 = vmatpush.bf16.msra.mxu0 %v709
    %987 = vmatpush.bf16.msra.mxu0 %v707
    %988 = vmatmul.bf16.gmra.mxu0 %v180
    %v989 = vpop.f32.mrf.mxu0
    %v990 = vadd.f32 %v977, %v989
    %v991 = vpop.f32.mrf.mxu0
    %992 = vdwg.mxu0
    %993 = vmatpush.bf16.msra.mxu0 %v737
    %994 = vmatpush.bf16.msra.mxu0 %v735
    %995 = vmatpush.bf16.msra.mxu0 %v733
    %996 = vmatpush.bf16.msra.mxu0 %v731
    %997 = vmatpush.bf16.msra.mxu0 %v729
    %998 = vmatpush.bf16.msra.mxu0 %v727
    %999 = vmatpush.bf16.msra.mxu0 %v725
    %1000 = vmatpush.bf16.msra.mxu0 %v723
    %1001 = vmatmul.bf16.gmra.mxu0 %v181
    %v1002 = vpop.f32.mrf.mxu0
    %v1003 = vadd.f32 %v990, %v1002
    %v1004 = vpop.f32.mrf.mxu0
    %1005 = vdwg.mxu0
    %1006 = vmatpush.bf16.msra.mxu0 %v753
    %1007 = vmatpush.bf16.msra.mxu0 %v751
    %1008 = vmatpush.bf16.msra.mxu0 %v749
    %1009 = vmatpush.bf16.msra.mxu0 %v747
    %1010 = vmatpush.bf16.msra.mxu0 %v745
    %1011 = vmatpush.bf16.msra.mxu0 %v743
    %1012 = vmatpush.bf16.msra.mxu0 %v741
    %1013 = vmatpush.bf16.msra.mxu0 %v739
    %1014 = vmatmul.bf16.gmra.mxu0 %v182
    %v1015 = vpop.f32.mrf.mxu0
    %v1016 = vadd.f32 %v1003, %v1015
    %v1017 = vpop.f32.mrf.mxu0
    %1018 = vdwg.mxu0
    %1019 = vmatpush.bf16.msra.mxu0 %v769
    %1020 = vmatpush.bf16.msra.mxu0 %v767
    %1021 = vmatpush.bf16.msra.mxu0 %v765
    %1022 = vmatpush.bf16.msra.mxu0 %v763
    %1023 = vmatpush.bf16.msra.mxu0 %v761
    %1024 = vmatpush.bf16.msra.mxu0 %v759
    %1025 = vmatpush.bf16.msra.mxu0 %v757
    %1026 = vmatpush.bf16.msra.mxu0 %v755
    %1027 = vmatmul.bf16.gmra.mxu0 %v185
    %v1028 = vpop.f32.mrf.mxu0
    %v1029 = vadd.f32 %v1016, %v1028
    %v1030 = vpop.f32.mrf.mxu0
    %1031 = vdwg.mxu0
    %1032 = vmatpush.bf16.msra.mxu0 %v642
    %1033 = vmatpush.bf16.msra.mxu0 %v640
    %1034 = vmatpush.bf16.msra.mxu0 %v638
    %1035 = vmatpush.bf16.msra.mxu0 %v636
    %1036 = vmatpush.bf16.msra.mxu0 %v634
    %1037 = vmatpush.bf16.msra.mxu0 %v632
    %1038 = vmatpush.bf16.msra.mxu0 %v630
    %1039 = vmatpush.bf16.msra.mxu0 %v628
    %1040 = vmatmul.bf16.gmra.mxu0 %v175
    %v1041 = vpop.f32.mrf.mxu0
    %v1042 = vadd.f32 %v170, %v1041
    %v1043 = vpop.f32.mrf.mxu0
    %1044 = vdwg.mxu0
    %1045 = vmatpush.bf16.msra.mxu0 %v658
    %1046 = vmatpush.bf16.msra.mxu0 %v656
    %1047 = vmatpush.bf16.msra.mxu0 %v654
    %1048 = vmatpush.bf16.msra.mxu0 %v652
    %1049 = vmatpush.bf16.msra.mxu0 %v650
    %1050 = vmatpush.bf16.msra.mxu0 %v648
    %1051 = vmatpush.bf16.msra.mxu0 %v646
    %1052 = vmatpush.bf16.msra.mxu0 %v644
    %1053 = vmatmul.bf16.gmra.mxu0 %v176
    %v1054 = vpop.f32.mrf.mxu0
    %v1055 = vadd.f32 %v1042, %v1054
    %v1056 = vpop.f32.mrf.mxu0
    %1057 = vdwg.mxu0
    %1058 = vmatpush.bf16.msra.mxu0 %v674
    %1059 = vmatpush.bf16.msra.mxu0 %v672
    %1060 = vmatpush.bf16.msra.mxu0 %v670
    %1061 = vmatpush.bf16.msra.mxu0 %v668
    %1062 = vmatpush.bf16.msra.mxu0 %v666
    %1063 = vmatpush.bf16.msra.mxu0 %v664
    %1064 = vmatpush.bf16.msra.mxu0 %v662
    %1065 = vmatpush.bf16.msra.mxu0 %v660
    %1066 = vmatmul.bf16.gmra.mxu0 %v177
    %v1067 = vpop.f32.mrf.mxu0
    %v1068 = vadd.f32 %v1055, %v1067
    %v1069 = vpop.f32.mrf.mxu0
    %1070 = vdwg.mxu0
    %1071 = vmatpush.bf16.msra.mxu0 %v690
    %1072 = vmatpush.bf16.msra.mxu0 %v688
    %1073 = vmatpush.bf16.msra.mxu0 %v686
    %1074 = vmatpush.bf16.msra.mxu0 %v684
    %1075 = vmatpush.bf16.msra.mxu0 %v682
    %1076 = vmatpush.bf16.msra.mxu0 %v680
    %1077 = vmatpush.bf16.msra.mxu0 %v678
    %1078 = vmatpush.bf16.msra.mxu0 %v676
    %1079 = vmatmul.bf16.gmra.mxu0 %v178
    %v1080 = vpop.f32.mrf.mxu0
    %v1081 = vadd.f32 %v1068, %v1080
    %v1082 = vpop.f32.mrf.mxu0
    %1083 = vdwg.mxu0
    %1084 = vmatpush.bf16.msra.mxu0 %v706
    %1085 = vmatpush.bf16.msra.mxu0 %v704
    %1086 = vmatpush.bf16.msra.mxu0 %v702
    %1087 = vmatpush.bf16.msra.mxu0 %v700
    %1088 = vmatpush.bf16.msra.mxu0 %v698
    %1089 = vmatpush.bf16.msra.mxu0 %v696
    %1090 = vmatpush.bf16.msra.mxu0 %v694
    %1091 = vmatpush.bf16.msra.mxu0 %v692
    %1092 = vmatmul.bf16.gmra.mxu0 %v179
    %v1093 = vpop.f32.mrf.mxu0
    %v1094 = vadd.f32 %v1081, %v1093
    %v1095 = vpop.f32.mrf.mxu0
    %1096 = vdwg.mxu0
    %1097 = vmatpush.bf16.msra.mxu0 %v722
    %1098 = vmatpush.bf16.msra.mxu0 %v720
    %1099 = vmatpush.bf16.msra.mxu0 %v718
    %1100 = vmatpush.bf16.msra.mxu0 %v716
    %1101 = vmatpush.bf16.msra.mxu0 %v714
    %1102 = vmatpush.bf16.msra.mxu0 %v712
    %1103 = vmatpush.bf16.msra.mxu0 %v710
    %1104 = vmatpush.bf16.msra.mxu0 %v708
    %1105 = vmatmul.bf16.gmra.mxu0 %v180
    %v1106 = vpop.f32.mrf.mxu0
    %v1107 = vadd.f32 %v1094, %v1106
    %v1108 = vpop.f32.mrf.mxu0
    %1109 = vdwg.mxu0
    %1110 = vmatpush.bf16.msra.mxu0 %v738
    %1111 = vmatpush.bf16.msra.mxu0 %v736
    %1112 = vmatpush.bf16.msra.mxu0 %v734
    %1113 = vmatpush.bf16.msra.mxu0 %v732
    %1114 = vmatpush.bf16.msra.mxu0 %v730
    %1115 = vmatpush.bf16.msra.mxu0 %v728
    %1116 = vmatpush.bf16.msra.mxu0 %v726
    %1117 = vmatpush.bf16.msra.mxu0 %v724
    %1118 = vmatmul.bf16.gmra.mxu0 %v181
    %v1119 = vpop.f32.mrf.mxu0
    %v1120 = vadd.f32 %v1107, %v1119
    %v1121 = vpop.f32.mrf.mxu0
    %1122 = vdwg.mxu0
    %1123 = vmatpush.bf16.msra.mxu0 %v754
    %1124 = vmatpush.bf16.msra.mxu0 %v752
    %1125 = vmatpush.bf16.msra.mxu0 %v750
    %1126 = vmatpush.bf16.msra.mxu0 %v748
    %1127 = vmatpush.bf16.msra.mxu0 %v746
    %1128 = vmatpush.bf16.msra.mxu0 %v744
    %1129 = vmatpush.bf16.msra.mxu0 %v742
    %1130 = vmatpush.bf16.msra.mxu0 %v740
    %1131 = vmatmul.bf16.gmra.mxu0 %v182
    %v1132 = vpop.f32.mrf.mxu0
    %v1133 = vadd.f32 %v1120, %v1132
    %v1134 = vpop.f32.mrf.mxu0
    %1135 = vdwg.mxu0
    %1136 = vmatpush.bf16.msra.mxu0 %v770
    %1137 = vmatpush.bf16.msra.mxu0 %v768
    %1138 = vmatpush.bf16.msra.mxu0 %v766
    %1139 = vmatpush.bf16.msra.mxu0 %v764
    %1140 = vmatpush.bf16.msra.mxu0 %v762
    %1141 = vmatpush.bf16.msra.mxu0 %v760
    %1142 = vmatpush.bf16.msra.mxu0 %v758
    %1143 = vmatpush.bf16.msra.mxu0 %v756
    %1144 = vmatmul.bf16.gmra.mxu0 %v185
    %v1145 = vpop.f32.mrf.mxu0
    %v1146 = vadd.f32 %v1133, %v1145
    %v1147 = vpop.f32.mrf.mxu0
    %1148 = vdwg.mxu0
    %v1149 = vmax.f32 %v1029, 0.0
    %v1150 = vmax.f32 %v1146, 0.0
    %v1151 = vpack.c.bf16 %v1149, %v1149
    %v1152 = vpack.c.bf16 %v1150, %v1150
    %v1153 = vld [vmem:[%s3] sm:$0xf]
    %v1154 = vld [vmem:[%s3 + $0x4] sm:$0xf]
    %v1155 = vld [vmem:[%s3 + $0x8] sm:$0xf]
    %v1156 = vld [vmem:[%s3 + $0xc] sm:$0xf]
    %v1157 = vld [vmem:[%s3 + $0x10] sm:$0xf]
    %v1158 = vld [vmem:[%s3 + $0x14] sm:$0xf]
    %v1159 = vld [vmem:[%s3 + $0x18] sm:$0xf]
    %v1160 = vld [vmem:[%s3 + $0x1c] sm:$0xf]
    %v1161 = vld [vmem:[%s3 + $0x20] sm:$0xf]
    %v1162 = vld [vmem:[%s3 + $0x24] sm:$0xf]
    %v1163 = vld [vmem:[%s3 + $0x28] sm:$0xf]
    %v1164 = vld [vmem:[%s3 + $0x2c] sm:$0xf]
    %v1165 = vld [vmem:[%s3 + $0x30] sm:$0xf]
    %v1166 = vld [vmem:[%s3 + $0x34] sm:$0xf]
    %v1167 = vld [vmem:[%s3 + $0x38] sm:$0xf]
    %v1168 = vld [vmem:[%s3 + $0x3c] sm:$0xf]
    %v1169 = vld [vmem:[%s3 + $0x40] sm:$0xf]
    %v1170 = vld [vmem:[%s3 + $0x44] sm:$0xf]
    %v1171 = vld [vmem:[%s3 + $0x48] sm:$0xf]
    %v1172 = vld [vmem:[%s3 + $0x4c] sm:$0xf]
    %v1173 = vld [vmem:[%s3 + $0x50] sm:$0xf]
    %v1174 = vld [vmem:[%s3 + $0x54] sm:$0xf]
    %v1175 = vld [vmem:[%s3 + $0x58] sm:$0xf]
    %v1176 = vld [vmem:[%s3 + $0x5c] sm:$0xf]
    %v1177 = vld [vmem:[%s3 + $0x60] sm:$0xf]
    %v1178 = vld [vmem:[%s3 + $0x64] sm:$0xf]
    %v1179 = vld [vmem:[%s3 + $0x68] sm:$0xf]
    %v1180 = vld [vmem:[%s3 + $0x6c] sm:$0xf]
    %v1181 = vld [vmem:[%s3 + $0x70] sm:$0xf]
    %v1182 = vld [vmem:[%s3 + $0x74] sm:$0xf]
    %v1183 = vld [vmem:[%s3 + $0x78] sm:$0xf]
    %v1184 = vld [vmem:[%s3 + $0x7c] sm:$0xf]
    %v1185 = vld [vmem:[%s4] sm:$0x1]
    %v1187 = vperm.slane %v1185, 0
    %v1221 = vunpack.c.l.b16 %v1153
    %v1222 = vunpack.c.l.b16 %v1154
    %v1223 = vunpack.c.l.b16 %v1155
    %v1224 = vunpack.c.l.b16 %v1156
    %v1225 = vunpack.c.l.b16 %v1157
    %v1226 = vunpack.c.l.b16 %v1158
    %v1227 = vunpack.c.l.b16 %v1159
    %v1228 = vunpack.c.l.b16 %v1160
    %v1229 = vunpack.c.l.b16 %v1161
    %v1230 = vunpack.c.l.b16 %v1162
    %v1231 = vunpack.c.l.b16 %v1163
    %v1232 = vunpack.c.l.b16 %v1164
    %v1233 = vunpack.c.l.b16 %v1165
    %v1234 = vunpack.c.l.b16 %v1166
    %v1235 = vunpack.c.l.b16 %v1167
    %v1236 = vunpack.c.l.b16 %v1168
    %v1237 = vunpack.c.l.b16 %v1169
    %v1238 = vunpack.c.l.b16 %v1170
    %v1239 = vunpack.c.l.b16 %v1171
    %v1240 = vunpack.c.l.b16 %v1172
    %v1241 = vunpack.c.l.b16 %v1173
    %v1242 = vunpack.c.l.b16 %v1174
    %v1243 = vunpack.c.l.b16 %v1175
    %v1244 = vunpack.c.l.b16 %v1176
    %v1245 = vunpack.c.l.b16 %v1177
    %v1246 = vunpack.c.l.b16 %v1178
    %v1247 = vunpack.c.l.b16 %v1179
    %v1248 = vunpack.c.l.b16 %v1180
    %v1249 = vunpack.c.l.b16 %v1181
    %v1250 = vunpack.c.l.b16 %v1182
    %v1251 = vunpack.c.l.b16 %v1183
    %v1252 = vunpack.c.l.b16 %v1184
    %v1253 = vpack.c.b16 %v1222, %v1221
    %v1254 = vpack.c.b16 %v1224, %v1223
    %v1255 = vpack.c.b16 %v1226, %v1225
    %v1256 = vpack.c.b16 %v1228, %v1227
    %v1257 = vpack.c.b16 %v1230, %v1229
    %v1258 = vpack.c.b16 %v1232, %v1231
    %v1259 = vpack.c.b16 %v1234, %v1233
    %v1260 = vpack.c.b16 %v1236, %v1235
    %v1261 = vpack.c.b16 %v1238, %v1237
    %v1262 = vpack.c.b16 %v1240, %v1239
    %v1263 = vpack.c.b16 %v1242, %v1241
    %v1264 = vpack.c.b16 %v1244, %v1243
    %v1265 = vpack.c.b16 %v1246, %v1245
    %v1266 = vpack.c.b16 %v1248, %v1247
    %v1267 = vpack.c.b16 %v1250, %v1249
    %v1268 = vpack.c.b16 %v1252, %v1251
    %1285 = vmatpush.bf16.msra.mxu0 %v1260
    %1286 = vmatpush.bf16.msra.mxu0 %v1259
    %1287 = vmatpush.bf16.msra.mxu0 %v1258
    %1288 = vmatpush.bf16.msra.mxu0 %v1257
    %1289 = vmatpush.bf16.msra.mxu0 %v1256
    %1290 = vmatpush.bf16.msra.mxu0 %v1255
    %1291 = vmatpush.bf16.msra.mxu0 %v1254
    %1292 = vmatpush.bf16.msra.mxu0 %v1253
    %1293 = vmatmul.bf16.gmra.mxu0 %v1151
    %v1294 = vpop.f32.mrf.mxu0
    %v1295 = vadd.f32 %v1187, %v1294
    %v1296 = vpop.f32.mrf.mxu0
    %1297 = vdwg.mxu0
    %1298 = vmatpush.bf16.msra.mxu0 %v1268
    %1299 = vmatpush.bf16.msra.mxu0 %v1267
    %1300 = vmatpush.bf16.msra.mxu0 %v1266
    %1301 = vmatpush.bf16.msra.mxu0 %v1265
    %1302 = vmatpush.bf16.msra.mxu0 %v1264
    %1303 = vmatpush.bf16.msra.mxu0 %v1263
    %1304 = vmatpush.bf16.msra.mxu0 %v1262
    %1305 = vmatpush.bf16.msra.mxu0 %v1261
    %1306 = vmatmul.bf16.gmra.mxu0 %v1152
    %v1307 = vpop.f32.mrf.mxu0
    %v1308 = vadd.f32 %v1295, %v1307
    %v1309 = vpop.f32.mrf.mxu0
    %1310 = vdwg.mxu0
    %1311 = vst [vmem:[#allocation2] sm:$0x3] %v1308
    // Predicated region
    $region22: #{shape_classifier_forward.7} parent=1 // pred_check
      _
    $region23: #{shape_classifier_forward.7} parent=1 // pred_check_branch
      %1313 = sbr.rel (0) target = $region25
    $region24: #{shape_classifier_forward.7} parent=1 // pred_region
      %1315 = vsyncadd [#allocation3], 0
      %s1317 = sshll.u32 [#allocation2], 4
      %s1318 = int_to_ptr.vmem [resolvable:$true] %s1317
      %s1319 = sshll.u32 %s5, 4
      %s1320 = int_to_ptr.hbm [resolvable:$true] %s1319
      %1322 = dma.vmem_to_hbm [thread:$0]  %s1318, 32, %s1320, [#allocation3]
    $region25: #{shape_classifier_forward.7} parent=1 // pred_fallthru
      _
    // Predicated region
    $region26: #{shape_classifier_forward.7} parent=1 // pred_check
      _
    $region27: #{shape_classifier_forward.7} parent=1 // pred_check_branch
      %1324 = sbr.rel (0) target = $region29
    $region28: #{shape_classifier_forward.7} parent=1 // pred_region
      %1326 = dma.done [#allocation3], 32
    $region29: #{shape_classifier_forward.7} parent=1 // pred_fallthru
      _
    %1327 = vsyncpa [#allocation3], 1

</llo_original>
